<compile_context>
chip_gen: v6e
topology: v6e:2x2x1
jax: 0.10.0
libtpu: 0.0.40
codegen_flags: <defaults>
</compile_context>

<pallas_src>
import functools

import jax
import jax.numpy as jnp
from jax import lax
from jax.experimental import pallas as pl
from jax.experimental.pallas import tpu as pltpu


def _round_up(n, m):
    return ((n + m - 1) // m) * m


def _cdiv(a, b):
    return (a + b - 1) // b


def _block_diag(w, pack):
    """`pack` copies of w on the diagonal: (pack*out, pack*in)."""
    if pack == 1:
        return w
    return jax.scipy.linalg.block_diag(*([w] * pack))


def _shared_ae_kernel(n_layers, matmul_dtype, x_ref, *refs):
    """refs = (w0, b0, w1, b1, ..., out_ref).

    x_ref / out_ref : (TILE_R, pack*input_size) packed batch tile.
    w_i             : (pack*out_i, pack*in_i) block-diag tied weight, VMEM-resident.
    b_i             : (1, pack*out_i) f32 bias, broadcast over the tile rows.
    """
    out_ref = refs[-1]
    param_refs = refs[:-1]

    # Contract the activation feature axis (1) against:
    #   weight axis 1 (in)  -> x @ Wbd.T  (encoder; no in-kernel transpose op)
    #   weight axis 0 (out) -> x @ Wbd    (tied decoder / output layer)
    dn_xwT = (((1,), (1,)), ((), ()))
    dn_xw = (((1,), (0,)), ((), ()))
    # f32 checking path: full-precision MXU passes so the 1e-5 check is tight.
    prec = lax.Precision.HIGHEST if matmul_dtype == jnp.float32 else None

    x = x_ref[...]

    # ---- encoder: relu(x @ W.T + b) -----------------------------------------
    for i in range(n_layers):
        w = param_refs[2 * i][...]
        b = param_refs[2 * i + 1][...]            # (1, pack*out), f32
        y = lax.dot_general(x, w, dimension_numbers=dn_xwT,
                            preferred_element_type=jnp.float32, precision=prec)
        x = jnp.maximum(y + b, 0.0).astype(matmul_dtype)

    # ---- tied decoder: relu(x @ W); weights re-read from VMEM ----------------
    for i in range(n_layers - 1):
        w = param_refs[2 * (n_layers - 1 - i)][...]
        y = lax.dot_general(x, w, dimension_numbers=dn_xw,
                            preferred_element_type=jnp.float32, precision=prec)
        x = jnp.maximum(y, 0.0).astype(matmul_dtype)

    # ---- final tied layer: sigmoid(x @ W0) ------------------------------------
    w0 = param_refs[0][...]
    y = lax.dot_general(x, w0, dimension_numbers=dn_xw,
                        preferred_element_type=jnp.float32, precision=prec)
    out_ref[...] = jax.nn.sigmoid(y).astype(out_ref.dtype)


def shared_weights_autoencoder(x, params, *, tile_b=4096, use_bf16=True, pack=None):
    """Forward pass.  x: (batch, input_size).  params: [(W_i, b_i)] per encoder layer."""
    n_layers = len(params)
    batch, input_size = x.shape
    out_dtype = x.dtype

    # ---- batch-in-lanes packing factor (4 for input_size=32) ------------------
    if pack is None:
        pack = 128 // input_size if (input_size < 128 and 128 % input_size == 0) else 1
    packed_in = pack * input_size

    matmul_dtype = jnp.bfloat16 if use_bf16 else jnp.float32

    # ---- row tiling over the packed batch --------------------------------------
    rows = _cdiv(batch, pack)                             # packed rows needed
    tile_r = max(8, min(_round_up(max(tile_b // pack, 1), 8), _round_up(rows, 8)))
    if rows > 8:
        # Keep >= 2 grid steps so ("parallel",) can shard across v7x's 2 TCs.
        tile_r = min(tile_r, _round_up(_cdiv(rows, 2), 8))
    padded_rows = _round_up(rows, tile_r)

    # ---- pack x: pad the batch, then a free contiguous reshape -----------------
    padded_batch = padded_rows * pack
    if padded_batch != batch:
        x = jnp.pad(x, ((0, padded_batch - batch), (0, 0)))
    x_packed = x.reshape(padded_rows, packed_in).astype(matmul_dtype)

    # ---- block-diagonal tied weights, built once in the wrapper ----------------
    flat_inputs = [x_packed]
    param_specs = []
    for w, b in params:
        wbd = _block_diag(jnp.asarray(w, jnp.float32), pack).astype(matmul_dtype)
        bp = jnp.tile(jnp.asarray(b, jnp.float32).reshape(1, -1), (1, pack))
        flat_inputs += [wbd, bp]
        # Full-array blocks with constant index_map -> DMA'd once, VMEM-resident
        # across all grid steps; the tied weight is stored a single time and the
        # encoder / decoder / output read it from the same VMEM ref.
        param_specs += [
            pl.BlockSpec(wbd.shape, lambda i: (0, 0)),
            pl.BlockSpec(bp.shape, lambda i: (0, 0)),
        ]

    grid = (padded_rows // tile_r,)
    x_spec = pl.BlockSpec((tile_r, packed_in), lambda i: (i, 0))
    out_spec = pl.BlockSpec((tile_r, packed_in), lambda i: (i, 0))

    kernel = functools.partial(_shared_ae_kernel, n_layers, matmul_dtype)

    # NOTE: an opt-in fp8 weight path (activations bf16, f32 accumulate) would
    # halve resident weight bytes again on v7x; kept off by default for accuracy.
    out = pl.pallas_call(
        kernel,
        out_shape=jax.ShapeDtypeStruct((padded_rows, packed_in), out_dtype),
        grid_spec=pltpu.PrefetchScalarGridSpec(
            num_scalar_prefetch=0,
            grid=grid,
            in_specs=[x_spec] + param_specs,
            out_specs=out_spec,
        ),
        compiler_params=pltpu.CompilerParams(
            dimension_semantics=("parallel",),   # shard packed-row tiles across TCs
            vmem_limit_bytes=32 << 20,           # explicit; safe on v5e/v6e/v7x
        ),
    )(*flat_inputs)

    # unpack: (padded_rows, pack*input_size) -> (padded_batch, input_size), slice pad
    return out.reshape(padded_batch, input_size)[:batch]


def _reference_forward(x, params):
    """Pure-JAX reference replicating the PyTorch forward exactly (f32)."""
    h = x
    for w, b in params:
        h = jnp.maximum(h @ w.T + b, 0.0)
    for i in range(len(params) - 1):
        w, _ = params[len(params) - 1 - i]
        h = jnp.maximum(h @ w, 0.0)
    w0, _ = params[0]
    return jax.nn.sigmoid(h @ w0)


def _init_params(key, input_size, encoder_layers, latent_space):
    """Deterministic PyTorch-style uniform init for each nn.Linear."""
    dims = [input_size] + list(encoder_layers) + [latent_space]
    params = []
    for in_dim, out_dim in zip(dims[:-1], dims[1:]):
        key, kw, kb = jax.random.split(key, 3)
        bound = 1.0 / jnp.sqrt(in_dim)
        w = jax.random.uniform(kw, (out_dim, in_dim), jnp.float32, -bound, bound)
        b = jax.random.uniform(kb, (out_dim,), jnp.float32, -bound, bound)
        params.append((w, b))
    return params


if __name__ == "__main__":
    input_size = 32
    encoder_layers = [24, 16]
    latent_space = 8

    key = jax.random.PRNGKey(0)
    key, kx1, kx2 = jax.random.split(key, 3)
    params = _init_params(key, input_size, encoder_layers, latent_space)

    # --- case 1: tiny batch, f32 HIGHEST-precision matmuls, tight check --------
    x_small = jax.random.normal(kx1, (8, input_size), jnp.float32)
    out = jax.block_until_ready(
        shared_weights_autoencoder(x_small, params, use_bf16=False))
    ref = _reference_forward(x_small, params)
    assert out.shape == (8, input_size)
    assert jnp.allclose(out, ref, atol=1e-5, rtol=1e-5), "f32 mismatch vs reference"

    # --- case 2: batch not divisible by pack*tile, default bf16, 2-step grid ----
    x_big = jax.random.normal(kx2, (300, input_size), jnp.float32)
    out_big = jax.block_until_ready(shared_weights_autoencoder(x_big, params))
    ref_big = _reference_forward(x_big, params)
    assert out_big.shape == (300, input_size)
    assert jnp.allclose(out_big, ref_big, atol=5e-2, rtol=5e-2), "bf16 mismatch"

    # --- case 3: f32 path with a small tile (exercises a 5-step pipelined grid) --
    out_f32 = jax.block_until_ready(
        shared_weights_autoencoder(x_big, params, tile_b=64, use_bf16=False))
    assert out_f32.shape == (300, input_size)
    assert jnp.allclose(out_f32, ref_big, atol=1e-5, rtol=1e-5), "tiled f32 mismatch"

    print("KERNEL_OK")
</pallas_src>

<mosaic_0001>
module attributes {stable_mosaic.version = 11 : i64} {
  func.func @_shared_ae_kernel(%arg0: i32, %arg1: memref<8x128xf32, #tpu.memory_space<vmem>>, %arg2: memref<96x128xf32, #tpu.memory_space<vmem>>, %arg3: memref<1x96xf32, #tpu.memory_space<vmem>>, %arg4: memref<64x96xf32, #tpu.memory_space<vmem>>, %arg5: memref<1x64xf32, #tpu.memory_space<vmem>>, %arg6: memref<32x64xf32, #tpu.memory_space<vmem>>, %arg7: memref<1x32xf32, #tpu.memory_space<vmem>>, %arg8: memref<8x128xf32, #tpu.memory_space<vmem>>) attributes {dimension_semantics = [#tpu.dimension_semantics<parallel>], iteration_bounds = array<i64: 1>, scalar_prefetch = 0 : i64, scratch_operands = 0 : i64, tpu.core_type = #tpu.core_type<tc>, window_params = [{transform_indices = @transform_0, window_bounds = array<i64: 8, 128>}, {pipeline_mode = #tpu.pipeline_mode<synchronous>, transform_indices = @transform_1, window_bounds = array<i64: 96, 128>}, {pipeline_mode = #tpu.pipeline_mode<synchronous>, transform_indices = @transform_2, window_bounds = array<i64: 1, 96>}, {pipeline_mode = #tpu.pipeline_mode<synchronous>, transform_indices = @transform_3, window_bounds = array<i64: 64, 96>}, {pipeline_mode = #tpu.pipeline_mode<synchronous>, transform_indices = @transform_4, window_bounds = array<i64: 1, 64>}, {pipeline_mode = #tpu.pipeline_mode<synchronous>, transform_indices = @transform_5, window_bounds = array<i64: 32, 64>}, {pipeline_mode = #tpu.pipeline_mode<synchronous>, transform_indices = @transform_6, window_bounds = array<i64: 1, 32>}, {transform_indices = @transform_7, window_bounds = array<i64: 8, 128>}]} {
    %c0 = arith.constant 0 : index
    %c0_0 = arith.constant 0 : index
    %0 = vector.load %arg1[%c0, %c0_0] : memref<8x128xf32, #tpu.memory_space<vmem>>, vector<8x128xf32>
    %c0_1 = arith.constant 0 : index
    %c0_2 = arith.constant 0 : index
    %1 = vector.load %arg2[%c0_1, %c0_2] : memref<96x128xf32, #tpu.memory_space<vmem>>, vector<96x128xf32>
    %c0_3 = arith.constant 0 : index
    %c0_4 = arith.constant 0 : index
    %2 = vector.load %arg3[%c0_3, %c0_4] : memref<1x96xf32, #tpu.memory_space<vmem>>, vector<1x96xf32>
    %cst = arith.constant dense<0.000000e+00> : vector<8x96xf32>
    %3 = tpu.matmul %0, %1, %cst {dimension_numbers = #tpu.dot_dimension_numbers<[1], [1], [0], [0], [0, 0, 1, 0], [], []>, precision = #tpu.contract_precision<fp32>} : vector<8x128xf32>, vector<96x128xf32>, vector<8x96xf32> -> vector<8x96xf32>
    %4 = vector.broadcast %2 : vector<1x96xf32> to vector<8x96xf32>
    %5 = arith.addf %3, %4 : vector<8x96xf32>
    %cst_5 = arith.constant 0.000000e+00 : f32
    %6 = vector.broadcast %cst_5 : f32 to vector<8x96xf32>
    %7 = arith.maximumf %5, %6 : vector<8x96xf32>
    %c0_6 = arith.constant 0 : index
    %c0_7 = arith.constant 0 : index
    %8 = vector.load %arg4[%c0_6, %c0_7] : memref<64x96xf32, #tpu.memory_space<vmem>>, vector<64x96xf32>
    %c0_8 = arith.constant 0 : index
    %c0_9 = arith.constant 0 : index
    %9 = vector.load %arg5[%c0_8, %c0_9] : memref<1x64xf32, #tpu.memory_space<vmem>>, vector<1x64xf32>
    %cst_10 = arith.constant dense<0.000000e+00> : vector<8x64xf32>
    %10 = tpu.matmul %7, %8, %cst_10 {dimension_numbers = #tpu.dot_dimension_numbers<[1], [1], [0], [0], [0, 0, 1, 0], [], []>, precision = #tpu.contract_precision<fp32>} : vector<8x96xf32>, vector<64x96xf32>, vector<8x64xf32> -> vector<8x64xf32>
    %11 = vector.broadcast %9 : vector<1x64xf32> to vector<8x64xf32>
    %12 = arith.addf %10, %11 : vector<8x64xf32>
    %cst_11 = arith.constant 0.000000e+00 : f32
    %13 = vector.broadcast %cst_11 : f32 to vector<8x64xf32>
    %14 = arith.maximumf %12, %13 : vector<8x64xf32>
    %c0_12 = arith.constant 0 : index
    %c0_13 = arith.constant 0 : index
    %15 = vector.load %arg6[%c0_12, %c0_13] : memref<32x64xf32, #tpu.memory_space<vmem>>, vector<32x64xf32>
    %c0_14 = arith.constant 0 : index
    %c0_15 = arith.constant 0 : index
    %16 = vector.load %arg7[%c0_14, %c0_15] : memref<1x32xf32, #tpu.memory_space<vmem>>, vector<1x32xf32>
    %cst_16 = arith.constant dense<0.000000e+00> : vector<8x32xf32>
    %17 = tpu.matmul %14, %15, %cst_16 {dimension_numbers = #tpu.dot_dimension_numbers<[1], [1], [0], [0], [0, 0, 1, 0], [], []>, precision = #tpu.contract_precision<fp32>} : vector<8x64xf32>, vector<32x64xf32>, vector<8x32xf32> -> vector<8x32xf32>
    %18 = vector.broadcast %16 : vector<1x32xf32> to vector<8x32xf32>
    %19 = arith.addf %17, %18 : vector<8x32xf32>
    %cst_17 = arith.constant 0.000000e+00 : f32
    %20 = vector.broadcast %cst_17 : f32 to vector<8x32xf32>
    %21 = arith.maximumf %19, %20 : vector<8x32xf32>
    %c0_18 = arith.constant 0 : index
    %c0_19 = arith.constant 0 : index
    %22 = vector.load %arg6[%c0_18, %c0_19] : memref<32x64xf32, #tpu.memory_space<vmem>>, vector<32x64xf32>
    %cst_20 = arith.constant dense<0.000000e+00> : vector<8x64xf32>
    %23 = tpu.matmul %21, %22, %cst_20 {dimension_numbers = #tpu.dot_dimension_numbers<[1], [0], [0], [1], [0, 0, 1, 1], [], []>, precision = #tpu.contract_precision<fp32>} : vector<8x32xf32>, vector<32x64xf32>, vector<8x64xf32> -> vector<8x64xf32>
    %cst_21 = arith.constant 0.000000e+00 : f32
    %24 = vector.broadcast %cst_21 : f32 to vector<8x64xf32>
    %25 = arith.maximumf %23, %24 : vector<8x64xf32>
    %c0_22 = arith.constant 0 : index
    %c0_23 = arith.constant 0 : index
    %26 = vector.load %arg4[%c0_22, %c0_23] : memref<64x96xf32, #tpu.memory_space<vmem>>, vector<64x96xf32>
    %cst_24 = arith.constant dense<0.000000e+00> : vector<8x96xf32>
    %27 = tpu.matmul %25, %26, %cst_24 {dimension_numbers = #tpu.dot_dimension_numbers<[1], [0], [0], [1], [0, 0, 1, 1], [], []>, precision = #tpu.contract_precision<fp32>} : vector<8x64xf32>, vector<64x96xf32>, vector<8x96xf32> -> vector<8x96xf32>
    %cst_25 = arith.constant 0.000000e+00 : f32
    %28 = vector.broadcast %cst_25 : f32 to vector<8x96xf32>
    %29 = arith.maximumf %27, %28 : vector<8x96xf32>
    %c0_26 = arith.constant 0 : index
    %c0_27 = arith.constant 0 : index
    %30 = vector.load %arg2[%c0_26, %c0_27] : memref<96x128xf32, #tpu.memory_space<vmem>>, vector<96x128xf32>
    %cst_28 = arith.constant dense<0.000000e+00> : vector<8x128xf32>
    %31 = tpu.matmul %29, %30, %cst_28 {dimension_numbers = #tpu.dot_dimension_numbers<[1], [0], [0], [1], [0, 0, 1, 1], [], []>, precision = #tpu.contract_precision<fp32>} : vector<8x96xf32>, vector<96x128xf32>, vector<8x128xf32> -> vector<8x128xf32>
    %32 = arith.negf %31 : vector<8x128xf32>
    %33 = math.exp %32 : vector<8x128xf32>
    %cst_29 = arith.constant 1.000000e+00 : f32
    %34 = vector.broadcast %cst_29 : f32 to vector<8x128xf32>
    %35 = arith.addf %34, %33 : vector<8x128xf32>
    %36 = arith.divf %34, %35 : vector<8x128xf32>
    %c0_30 = arith.constant 0 : index
    %c0_31 = arith.constant 0 : index
    %37 = vector.load %arg8[%c0_30, %c0_31] : memref<8x128xf32, #tpu.memory_space<vmem>>, vector<8x128xf32>
    tpu.vector_store %arg8[%c0_30, %c0_31], %36 {strides = array<i32>} : memref<8x128xf32, #tpu.memory_space<vmem>>, vector<8x128xf32>,
    return
  }
  func.func @transform_0(%arg0: i32) -> (i32, i32) {
    %c0_i32 = arith.constant 0 : i32
    %c0_i32_0 = arith.constant 0 : i32
    return %arg0, %c0_i32 : i32, i32
  }
  func.func @transform_1(%arg0: i32) -> (i32, i32) {
    %c0_i32 = arith.constant 0 : i32
    %c0_i32_0 = arith.constant 0 : i32
    %c0_i32_1 = arith.constant 0 : i32
    return %c0_i32, %c0_i32_0 : i32, i32
  }
  func.func @transform_2(%arg0: i32) -> (i32, i32) {
    %c0_i32 = arith.constant 0 : i32
    %c0_i32_0 = arith.constant 0 : i32
    %c0_i32_1 = arith.constant 0 : i32
    return %c0_i32, %c0_i32_0 : i32, i32
  }
  func.func @transform_3(%arg0: i32) -> (i32, i32) {
    %c0_i32 = arith.constant 0 : i32
    %c0_i32_0 = arith.constant 0 : i32
    %c0_i32_1 = arith.constant 0 : i32
    return %c0_i32, %c0_i32_0 : i32, i32
  }
  func.func @transform_4(%arg0: i32) -> (i32, i32) {
    %c0_i32 = arith.constant 0 : i32
    %c0_i32_0 = arith.constant 0 : i32
    %c0_i32_1 = arith.constant 0 : i32
    return %c0_i32, %c0_i32_0 : i32, i32
  }
  func.func @transform_5(%arg0: i32) -> (i32, i32) {
    %c0_i32 = arith.constant 0 : i32
    %c0_i32_0 = arith.constant 0 : i32
    %c0_i32_1 = arith.constant 0 : i32
    return %c0_i32, %c0_i32_0 : i32, i32
  }
  func.func @transform_6(%arg0: i32) -> (i32, i32) {
    %c0_i32 = arith.constant 0 : i32
    %c0_i32_0 = arith.constant 0 : i32
    %c0_i32_1 = arith.constant 0 : i32
    return %c0_i32, %c0_i32_0 : i32, i32
  }
  func.func @transform_7(%arg0: i32) -> (i32, i32) {
    %c0_i32 = arith.constant 0 : i32
    %c0_i32_0 = arith.constant 0 : i32
    return %arg0, %c0_i32 : i32, i32
  }
}

</mosaic_0001>

<llo_original>
// kernel: tpu_custom_call.1
$region0: #{tpu_custom_call.1}
  #allocation0 [shape = 'u32[]', space=smem, size = 0x4, offset = 0x4, fixed_abs, tag = 'smem constant byte address 0x4 - core index']
  #allocation1 [shape = 'u32[144,128]{1,0:T(1,128)}', space=vmem, size = 0x12000, scoped, tag = 'internal scratch']
  %s0 = inlined_call_operand.hbm [shape: f32[8,128], index: 0, kind: input, shape index: {}]
  %s1 = inlined_call_operand.hbm [shape: f32[96,128], index: 1, kind: input, shape index: {}]
  %s2 = inlined_call_operand.vmem [shape: f32[1,96], index: 2, kind: input, shape index: {}]
  %s3 = inlined_call_operand.hbm [shape: f32[64,96], index: 3, kind: input, shape index: {}]
  %s4 = inlined_call_operand.vmem [shape: f32[1,64], index: 4, kind: input, shape index: {}]
  %s5 = inlined_call_operand.hbm [shape: f32[32,64], index: 5, kind: input, shape index: {}]
  %s6 = inlined_call_operand.vmem [shape: f32[1,32], index: 6, kind: input, shape index: {}]
  %s7 = inlined_call_operand.hbm [shape: f32[8,128], index: 7, kind: output, shape index: {}]
  %s8 = sld [smem:[#allocation0]]
  $region54: #{tpu_custom_call.1} parent=0
    _
  %s10 = ssub.s32 1, %s8
  %s11 = scalar_select 0, %s10, %s8
  $region1: #{tpu_custom_call.1} parent=0
    #allocation2 [shape = 'u8[4096]{0}', space=vmem, size = 0x1000, scoped, tag = 'input window, operand 0, single buffered']
    #allocation3 [shape = 's32[1]{0}', space=sflag, size = 0x4, scoped, tag = 'scoped memory for tpu_custom_call.1']
    #allocation4 [shape = 's32[1]{0}', space=sflag, size = 0x4, scoped, tag = 'scoped memory for tpu_custom_call.1']
    #allocation5 [shape = 'u8[49152]{0}', space=vmem, size = 0xc000, scoped, tag = 'input window, operand 1, single buffered']
    #allocation6 [shape = 's32[1]{0}', space=sflag, size = 0x4, scoped, tag = 'scoped memory for tpu_custom_call.1']
    #allocation7 [shape = 'u8[32768]{0}', space=vmem, size = 0x8000, scoped, tag = 'input window, operand 3, single buffered']
    #allocation8 [shape = 'u8[16384]{0}', space=vmem, size = 0x4000, scoped, tag = 'input window, operand 5, single buffered']
    #allocation9 [shape = 's32[1]{0}', space=sflag, size = 0x4, scoped, tag = 'scoped memory for tpu_custom_call.1']
    #allocation10 [shape = 'u8[4096]{0}', space=vmem, size = 0x1000, scoped, tag = 'output window, operand 0, single buffered']
    %12 = vsyncpa [#allocation3], 0
    %13 = vsyncpa [#allocation6], 0
    %14 = vsyncpa [#allocation9], 0
    %15 = vsyncpa [#allocation4], 0
    // Predicated region
    $region2: #{tpu_custom_call.1} parent=1 // pred_check
      _
    $region3: #{tpu_custom_call.1} parent=1 // pred_check_branch
      %17 = sbr.rel (0) target = $region5
    $region4: #{tpu_custom_call.1} parent=1 // pred_region
      %s19 = ssub.s32 128, 128
      %20 = vsyncadd [#allocation3], %s19
      %s22 = sshll.u32 [#allocation2], 4
      %s23 = int_to_ptr.vmem [resolvable:$true] %s22
      %25 = dma.hbm_to_vmem [thread:$0]  %s0, 128, %s23, [#allocation3]
    $region5: #{tpu_custom_call.1} parent=1 // pred_fallthru
      _
    // Predicated region
    $region6: #{tpu_custom_call.1} parent=1 // pred_check
      _
    $region7: #{tpu_custom_call.1} parent=1 // pred_check_branch
      %27 = sbr.rel (0) target = $region9
    $region8: #{tpu_custom_call.1} parent=1 // pred_region
      %s29 = ssub.s32 1536, 1536
      %30 = vsyncadd [#allocation6], %s29
      %s31 = sshll.u32 [#allocation5], 4
      %s32 = int_to_ptr.vmem [resolvable:$true] %s31
      %37 = dma.hbm_to_vmem [thread:$0]  %s1, 1536, %s32, [#allocation6], 128, 128, 8
    $region9: #{tpu_custom_call.1} parent=1 // pred_fallthru
      _
    // Predicated region
    $region10: #{tpu_custom_call.1} parent=1 // pred_check
      _
    $region11: #{tpu_custom_call.1} parent=1 // pred_check_branch
      %39 = sbr.rel (0) target = $region13
    $region12: #{tpu_custom_call.1} parent=1 // pred_region
      _
    $region13: #{tpu_custom_call.1} parent=1 // pred_fallthru
      _
    // Predicated region
    $region14: #{tpu_custom_call.1} parent=1 // pred_check
      _
    $region15: #{tpu_custom_call.1} parent=1 // pred_check_branch
      %41 = sbr.rel (0) target = $region17
    $region16: #{tpu_custom_call.1} parent=1 // pred_region
      %s43 = ssub.s32 1024, 1024
      %44 = vsyncadd [#allocation6], %s43
      %s45 = sshll.u32 [#allocation7], 4
      %s46 = int_to_ptr.vmem [resolvable:$true] %s45
      %51 = dma.hbm_to_vmem [thread:$0]  %s3, 1024, %s46, [#allocation6], 128, 128, 8
    $region17: #{tpu_custom_call.1} parent=1 // pred_fallthru
      _
    // Predicated region
    $region18: #{tpu_custom_call.1} parent=1 // pred_check
      _
    $region19: #{tpu_custom_call.1} parent=1 // pred_check_branch
      %53 = sbr.rel (0) target = $region21
    $region20: #{tpu_custom_call.1} parent=1 // pred_region
      _
    $region21: #{tpu_custom_call.1} parent=1 // pred_fallthru
      _
    // Predicated region
    $region22: #{tpu_custom_call.1} parent=1 // pred_check
      _
    $region23: #{tpu_custom_call.1} parent=1 // pred_check_branch
      %55 = sbr.rel (0) target = $region25
    $region24: #{tpu_custom_call.1} parent=1 // pred_region
      %s57 = ssub.s32 512, 512
      %58 = vsyncadd [#allocation9], %s57
      %s59 = sshll.u32 [#allocation8], 4
      %s60 = int_to_ptr.vmem [resolvable:$true] %s59
      %65 = dma.hbm_to_vmem [thread:$0]  %s5, 512, %s60, [#allocation9], 128, 128, 8
    $region25: #{tpu_custom_call.1} parent=1 // pred_fallthru
      _
    // Predicated region
    $region26: #{tpu_custom_call.1} parent=1 // pred_check
      _
    $region27: #{tpu_custom_call.1} parent=1 // pred_check_branch
      %67 = sbr.rel (0) target = $region29
    $region28: #{tpu_custom_call.1} parent=1 // pred_region
      _
    $region29: #{tpu_custom_call.1} parent=1 // pred_fallthru
      _
    // Predicated region
    $region30: #{tpu_custom_call.1} parent=1 // pred_check
      _
    $region31: #{tpu_custom_call.1} parent=1 // pred_check_branch
      %69 = sbr.rel (0) target = $region33
    $region32: #{tpu_custom_call.1} parent=1 // pred_region
      %70 = dma.done [#allocation3], 128
    $region33: #{tpu_custom_call.1} parent=1 // pred_fallthru
      _
    // Predicated region
    $region34: #{tpu_custom_call.1} parent=1 // pred_check
      _
    $region35: #{tpu_custom_call.1} parent=1 // pred_check_branch
      %72 = sbr.rel (0) target = $region37
    $region36: #{tpu_custom_call.1} parent=1 // pred_region
      %73 = dma.done [#allocation6], 1536
    $region37: #{tpu_custom_call.1} parent=1 // pred_fallthru
      _
    // Predicated region
    $region38: #{tpu_custom_call.1} parent=1 // pred_check
      _
    $region39: #{tpu_custom_call.1} parent=1 // pred_check_branch
      %75 = sbr.rel (0) target = $region41
    $region40: #{tpu_custom_call.1} parent=1 // pred_region
      %76 = dma.done [#allocation6], 1024
    $region41: #{tpu_custom_call.1} parent=1 // pred_fallthru
      _
    // Predicated region
    $region42: #{tpu_custom_call.1} parent=1 // pred_check
      _
    $region43: #{tpu_custom_call.1} parent=1 // pred_check_branch
      %78 = sbr.rel (0) target = $region45
    $region44: #{tpu_custom_call.1} parent=1 // pred_region
      %79 = dma.done [#allocation9], 512
    $region45: #{tpu_custom_call.1} parent=1 // pred_fallthru
      _
    %v80 = vld [vmem:[#allocation2] sm:$0xff]
    %v81 = vld [vmem:[#allocation5] sm:$0xff]
    %v82 = vld [vmem:[#allocation5 + $0x8] sm:$0xff]
    %v83 = vld [vmem:[#allocation5 + $0x10] sm:$0xff]
    %v84 = vld [vmem:[#allocation5 + $0x18] sm:$0xff]
    %v85 = vld [vmem:[#allocation5 + $0x20] sm:$0xff]
    %v86 = vld [vmem:[#allocation5 + $0x28] sm:$0xff]
    %v87 = vld [vmem:[#allocation5 + $0x30] sm:$0xff]
    %v88 = vld [vmem:[#allocation5 + $0x38] sm:$0xff]
    %v89 = vld [vmem:[#allocation5 + $0x40] sm:$0xff]
    %v90 = vld [vmem:[#allocation5 + $0x48] sm:$0xff]
    %v91 = vld [vmem:[#allocation5 + $0x50] sm:$0xff]
    %v92 = vld [vmem:[#allocation5 + $0x58] sm:$0xff]
    %v93 = vld [vmem:[%s2] sm:$0x1]
    %v95 = vlaneseq
    %v96 = vshrl.u32 %v95, 7
    %v97 = vsub.s32 0, %v96
    %v98 = vrot.slane %v93, %v97
    %100 = vmatprep.subr.mxu0 0.0
    %101 = vmatpush1.xpose.msra.mxu0 0.0
    %102 = vmatprep.subr.mxu0 0.0
    %103 = vmatpush1.xpose.msra.mxu0 0.0
    %104 = vmatprep.subr.mxu0 0.0
    %105 = vmatpush1.xpose.msra.mxu0 0.0
    %106 = vmatprep.subr.mxu0 0.0
    %107 = vmatpush1.xpose.msra.mxu0 0.0
    %108 = vmatprep.subr.mxu0 0.0
    %v109 = vand.u32 %v92, 4294901760
    %110 = vmatpush1.xpose.msra.mxu0 %v109
    %111 = vmatprep.subr.mxu0 0.0
    %v112 = vand.u32 %v91, 4294901760
    %113 = vmatpush1.xpose.msra.mxu0 %v112
    %114 = vmatprep.subr.mxu0 0.0
    %v115 = vand.u32 %v90, 4294901760
    %116 = vmatpush1.xpose.msra.mxu0 %v115
    %117 = vmatprep.subr.mxu0 0.0
    %v118 = vand.u32 %v89, 4294901760
    %119 = vmatpush1.xpose.msra.mxu0 %v118
    %120 = vmatprep.subr.mxu0 0.0
    %v121 = vand.u32 %v88, 4294901760
    %122 = vmatpush1.xpose.msra.mxu0 %v121
    %123 = vmatprep.subr.mxu0 0.0
    %v124 = vand.u32 %v87, 4294901760
    %125 = vmatpush1.xpose.msra.mxu0 %v124
    %126 = vmatprep.subr.mxu0 0.0
    %v127 = vand.u32 %v86, 4294901760
    %128 = vmatpush1.xpose.msra.mxu0 %v127
    %129 = vmatprep.subr.mxu0 0.0
    %v130 = vand.u32 %v85, 4294901760
    %131 = vmatpush1.xpose.msra.mxu0 %v130
    %132 = vmatprep.subr.mxu0 0.0
    %v133 = vand.u32 %v84, 4294901760
    %134 = vmatpush1.xpose.msra.mxu0 %v133
    %135 = vmatprep.subr.mxu0 0.0
    %v136 = vand.u32 %v83, 4294901760
    %137 = vmatpush1.xpose.msra.mxu0 %v136
    %138 = vmatprep.subr.mxu0 0.0
    %v139 = vand.u32 %v82, 4294901760
    %140 = vmatpush1.xpose.msra.mxu0 %v139
    %141 = vmatprep.subr.mxu0 0.0
    %v142 = vand.u32 %v81, 4294901760
    %143 = vmatpush1.xpose.msra.mxu0 %v142
    %144 = vmatprep.subr.mxu0 0.0
    %145 = vmatpush2.xpose.msra.mxu0 0.0
    %146 = vmatprep.subr.mxu0 0.0
    %147 = vmatpush2.xpose.msra.mxu0 0.0
    %148 = vmatprep.subr.mxu0 0.0
    %149 = vmatpush2.xpose.msra.mxu0 0.0
    %150 = vmatprep.subr.mxu0 0.0
    %151 = vmatpush2.xpose.msra.mxu0 0.0
    %152 = vmatprep.subr.mxu0 0.0
    %153 = vmatpush2.xpose.msra.mxu0 0.0
    %154 = vmatprep.subr.mxu0 0.0
    %155 = vmatpush2.xpose.msra.mxu0 0.0
    %156 = vmatprep.subr.mxu0 0.0
    %157 = vmatpush2.xpose.msra.mxu0 0.0
    %158 = vmatprep.subr.mxu0 0.0
    %159 = vmatpush2.xpose.msra.mxu0 0.0
    %160 = vmatprep.subr.mxu0 0.0
    %161 = vmatpush2.xpose.msra.mxu0 0.0
    %162 = vmatprep.subr.mxu0 0.0
    %163 = vmatpush2.xpose.msra.mxu0 0.0
    %164 = vmatprep.subr.mxu0 0.0
    %165 = vmatpush2.xpose.msra.mxu0 0.0
    %166 = vmatprep.subr.mxu0 0.0
    %167 = vmatpush2.xpose.msra.mxu0 0.0
    %168 = vmatprep.subr.mxu0 0.0
    %169 = vmatpush2.xpose.msra.mxu0 0.0
    %170 = vmatprep.subr.mxu0 0.0
    %171 = vmatpush2.xpose.msra.mxu0 0.0
    %172 = vmatprep.subr.mxu0 0.0
    %173 = vmatpush2.xpose.msra.mxu0 0.0
    %174 = vmatprep.subr.mxu0 0.0
    %175 = vmatpush2.xpose.msra.mxu0 0.0
    %176 = vmatprep.mubr.f32.mxu0 0.0
    %v177 = vand.u32 %v80, 4294901760
    %v178 = vsub.f32 %v80, %v177
    %v179 = vand.u32 %v178, 4294901760
    %v180 = vsub.f32 %v178, %v179
    %v181 = vand.u32 %v180, 4294901760
    %182 = vmatmul.mubr.f32.gmra.mxu0 %v181
    %v183 = vpop.f32.mrf.mxu0
    %v184 = vadd.f32 %v98, %v183
    %v185 = vpop.f32.mrf.mxu0
    %186 = vdwg.mxu0
    %187 = vmatprep.subr.mxu0 0.0
    %188 = vmatpush1.xpose.msra.mxu0 0.0
    %189 = vmatprep.subr.mxu0 0.0
    %190 = vmatpush1.xpose.msra.mxu0 0.0
    %191 = vmatprep.subr.mxu0 0.0
    %192 = vmatpush1.xpose.msra.mxu0 0.0
    %193 = vmatprep.subr.mxu0 0.0
    %194 = vmatpush1.xpose.msra.mxu0 0.0
    %195 = vmatprep.subr.mxu0 0.0
    %v196 = vand.u32 %v92, 4294901760
    %v197 = vsub.f32 %v92, %v196
    %v198 = vand.u32 %v197, 4294901760
    %v199 = vsub.f32 %v197, %v198
    %v200 = vand.u32 %v199, 4294901760
    %201 = vmatpush1.xpose.msra.mxu0 %v200
    %202 = vmatprep.subr.mxu0 0.0
    %v203 = vand.u32 %v91, 4294901760
    %v204 = vsub.f32 %v91, %v203
    %v205 = vand.u32 %v204, 4294901760
    %v206 = vsub.f32 %v204, %v205
    %v207 = vand.u32 %v206, 4294901760
    %208 = vmatpush1.xpose.msra.mxu0 %v207
    %209 = vmatprep.subr.mxu0 0.0
    %v210 = vand.u32 %v90, 4294901760
    %v211 = vsub.f32 %v90, %v210
    %v212 = vand.u32 %v211, 4294901760
    %v213 = vsub.f32 %v211, %v212
    %v214 = vand.u32 %v213, 4294901760
    %215 = vmatpush1.xpose.msra.mxu0 %v214
    %216 = vmatprep.subr.mxu0 0.0
    %v217 = vand.u32 %v89, 4294901760
    %v218 = vsub.f32 %v89, %v217
    %v219 = vand.u32 %v218, 4294901760
    %v220 = vsub.f32 %v218, %v219
    %v221 = vand.u32 %v220, 4294901760
    %222 = vmatpush1.xpose.msra.mxu0 %v221
    %223 = vmatprep.subr.mxu0 0.0
    %v224 = vand.u32 %v88, 4294901760
    %v225 = vsub.f32 %v88, %v224
    %v226 = vand.u32 %v225, 4294901760
    %v227 = vsub.f32 %v225, %v226
    %v228 = vand.u32 %v227, 4294901760
    %229 = vmatpush1.xpose.msra.mxu0 %v228
    %230 = vmatprep.subr.mxu0 0.0
    %v231 = vand.u32 %v87, 4294901760
    %v232 = vsub.f32 %v87, %v231
    %v233 = vand.u32 %v232, 4294901760
    %v234 = vsub.f32 %v232, %v233
    %v235 = vand.u32 %v234, 4294901760
    %236 = vmatpush1.xpose.msra.mxu0 %v235
    %237 = vmatprep.subr.mxu0 0.0
    %v238 = vand.u32 %v86, 4294901760
    %v239 = vsub.f32 %v86, %v238
    %v240 = vand.u32 %v239, 4294901760
    %v241 = vsub.f32 %v239, %v240
    %v242 = vand.u32 %v241, 4294901760
    %243 = vmatpush1.xpose.msra.mxu0 %v242
    %244 = vmatprep.subr.mxu0 0.0
    %v245 = vand.u32 %v85, 4294901760
    %v246 = vsub.f32 %v85, %v245
    %v247 = vand.u32 %v246, 4294901760
    %v248 = vsub.f32 %v246, %v247
    %v249 = vand.u32 %v248, 4294901760
    %250 = vmatpush1.xpose.msra.mxu0 %v249
    %251 = vmatprep.subr.mxu0 0.0
    %v252 = vand.u32 %v84, 4294901760
    %v253 = vsub.f32 %v84, %v252
    %v254 = vand.u32 %v253, 4294901760
    %v255 = vsub.f32 %v253, %v254
    %v256 = vand.u32 %v255, 4294901760
    %257 = vmatpush1.xpose.msra.mxu0 %v256
    %258 = vmatprep.subr.mxu0 0.0
    %v259 = vand.u32 %v83, 4294901760
    %v260 = vsub.f32 %v83, %v259
    %v261 = vand.u32 %v260, 4294901760
    %v262 = vsub.f32 %v260, %v261
    %v263 = vand.u32 %v262, 4294901760
    %264 = vmatpush1.xpose.msra.mxu0 %v263
    %265 = vmatprep.subr.mxu0 0.0
    %v266 = vand.u32 %v82, 4294901760
    %v267 = vsub.f32 %v82, %v266
    %v268 = vand.u32 %v267, 4294901760
    %v269 = vsub.f32 %v267, %v268
    %v270 = vand.u32 %v269, 4294901760
    %271 = vmatpush1.xpose.msra.mxu0 %v270
    %272 = vmatprep.subr.mxu0 0.0
    %v273 = vand.u32 %v81, 4294901760
    %v274 = vsub.f32 %v81, %v273
    %v275 = vand.u32 %v274, 4294901760
    %v276 = vsub.f32 %v274, %v275
    %v277 = vand.u32 %v276, 4294901760
    %278 = vmatpush1.xpose.msra.mxu0 %v277
    %279 = vmatprep.subr.mxu0 0.0
    %280 = vmatpush2.xpose.msra.mxu0 0.0
    %281 = vmatprep.subr.mxu0 0.0
    %282 = vmatpush2.xpose.msra.mxu0 0.0
    %283 = vmatprep.subr.mxu0 0.0
    %284 = vmatpush2.xpose.msra.mxu0 0.0
    %285 = vmatprep.subr.mxu0 0.0
    %286 = vmatpush2.xpose.msra.mxu0 0.0
    %287 = vmatprep.subr.mxu0 0.0
    %288 = vmatpush2.xpose.msra.mxu0 0.0
    %289 = vmatprep.subr.mxu0 0.0
    %290 = vmatpush2.xpose.msra.mxu0 0.0
    %291 = vmatprep.subr.mxu0 0.0
    %292 = vmatpush2.xpose.msra.mxu0 0.0
    %293 = vmatprep.subr.mxu0 0.0
    %294 = vmatpush2.xpose.msra.mxu0 0.0
    %295 = vmatprep.subr.mxu0 0.0
    %296 = vmatpush2.xpose.msra.mxu0 0.0
    %297 = vmatprep.subr.mxu0 0.0
    %298 = vmatpush2.xpose.msra.mxu0 0.0
    %299 = vmatprep.subr.mxu0 0.0
    %300 = vmatpush2.xpose.msra.mxu0 0.0
    %301 = vmatprep.subr.mxu0 0.0
    %302 = vmatpush2.xpose.msra.mxu0 0.0
    %303 = vmatprep.subr.mxu0 0.0
    %304 = vmatpush2.xpose.msra.mxu0 0.0
    %305 = vmatprep.subr.mxu0 0.0
    %306 = vmatpush2.xpose.msra.mxu0 0.0
    %307 = vmatprep.subr.mxu0 0.0
    %308 = vmatpush2.xpose.msra.mxu0 0.0
    %309 = vmatprep.subr.mxu0 0.0
    %310 = vmatpush2.xpose.msra.mxu0 0.0
    %311 = vmatprep.mubr.f32.mxu0 0.0
    %v312 = vand.u32 %v80, 4294901760
    %313 = vmatmul.mubr.f32.gmra.mxu0 %v312
    %v314 = vpop.f32.mrf.mxu0
    %v315 = vadd.f32 %v184, %v314
    %v316 = vpop.f32.mrf.mxu0
    %317 = vdwg.mxu0
    %318 = vmatprep.subr.mxu0 0.0
    %319 = vmatpush1.xpose.msra.mxu0 0.0
    %320 = vmatprep.subr.mxu0 0.0
    %321 = vmatpush1.xpose.msra.mxu0 0.0
    %322 = vmatprep.subr.mxu0 0.0
    %323 = vmatpush1.xpose.msra.mxu0 0.0
    %324 = vmatprep.subr.mxu0 0.0
    %325 = vmatpush1.xpose.msra.mxu0 0.0
    %326 = vmatprep.subr.mxu0 0.0
    %v327 = vand.u32 %v92, 4294901760
    %v328 = vsub.f32 %v92, %v327
    %329 = vmatpush1.xpose.msra.mxu0 %v328
    %330 = vmatprep.subr.mxu0 0.0
    %v331 = vand.u32 %v91, 4294901760
    %v332 = vsub.f32 %v91, %v331
    %333 = vmatpush1.xpose.msra.mxu0 %v332
    %334 = vmatprep.subr.mxu0 0.0
    %v335 = vand.u32 %v90, 4294901760
    %v336 = vsub.f32 %v90, %v335
    %337 = vmatpush1.xpose.msra.mxu0 %v336
    %338 = vmatprep.subr.mxu0 0.0
    %v339 = vand.u32 %v89, 4294901760
    %v340 = vsub.f32 %v89, %v339
    %341 = vmatpush1.xpose.msra.mxu0 %v340
    %342 = vmatprep.subr.mxu0 0.0
    %v343 = vand.u32 %v88, 4294901760
    %v344 = vsub.f32 %v88, %v343
    %345 = vmatpush1.xpose.msra.mxu0 %v344
    %346 = vmatprep.subr.mxu0 0.0
    %v347 = vand.u32 %v87, 4294901760
    %v348 = vsub.f32 %v87, %v347
    %349 = vmatpush1.xpose.msra.mxu0 %v348
    %350 = vmatprep.subr.mxu0 0.0
    %v351 = vand.u32 %v86, 4294901760
    %v352 = vsub.f32 %v86, %v351
    %353 = vmatpush1.xpose.msra.mxu0 %v352
    %354 = vmatprep.subr.mxu0 0.0
    %v355 = vand.u32 %v85, 4294901760
    %v356 = vsub.f32 %v85, %v355
    %357 = vmatpush1.xpose.msra.mxu0 %v356
    %358 = vmatprep.subr.mxu0 0.0
    %v359 = vand.u32 %v84, 4294901760
    %v360 = vsub.f32 %v84, %v359
    %361 = vmatpush1.xpose.msra.mxu0 %v360
    %362 = vmatprep.subr.mxu0 0.0
    %v363 = vand.u32 %v83, 4294901760
    %v364 = vsub.f32 %v83, %v363
    %365 = vmatpush1.xpose.msra.mxu0 %v364
    %366 = vmatprep.subr.mxu0 0.0
    %v367 = vand.u32 %v82, 4294901760
    %v368 = vsub.f32 %v82, %v367
    %369 = vmatpush1.xpose.msra.mxu0 %v368
    %370 = vmatprep.subr.mxu0 0.0
    %v371 = vand.u32 %v81, 4294901760
    %v372 = vsub.f32 %v81, %v371
    %373 = vmatpush1.xpose.msra.mxu0 %v372
    %374 = vmatprep.subr.mxu0 0.0
    %375 = vmatpush2.xpose.msra.mxu0 0.0
    %376 = vmatprep.subr.mxu0 0.0
    %377 = vmatpush2.xpose.msra.mxu0 0.0
    %378 = vmatprep.subr.mxu0 0.0
    %379 = vmatpush2.xpose.msra.mxu0 0.0
    %380 = vmatprep.subr.mxu0 0.0
    %381 = vmatpush2.xpose.msra.mxu0 0.0
    %382 = vmatprep.subr.mxu0 0.0
    %383 = vmatpush2.xpose.msra.mxu0 0.0
    %384 = vmatprep.subr.mxu0 0.0
    %385 = vmatpush2.xpose.msra.mxu0 0.0
    %386 = vmatprep.subr.mxu0 0.0
    %387 = vmatpush2.xpose.msra.mxu0 0.0
    %388 = vmatprep.subr.mxu0 0.0
    %389 = vmatpush2.xpose.msra.mxu0 0.0
    %390 = vmatprep.subr.mxu0 0.0
    %391 = vmatpush2.xpose.msra.mxu0 0.0
    %392 = vmatprep.subr.mxu0 0.0
    %393 = vmatpush2.xpose.msra.mxu0 0.0
    %394 = vmatprep.subr.mxu0 0.0
    %395 = vmatpush2.xpose.msra.mxu0 0.0
    %396 = vmatprep.subr.mxu0 0.0
    %397 = vmatpush2.xpose.msra.mxu0 0.0
    %398 = vmatprep.subr.mxu0 0.0
    %399 = vmatpush2.xpose.msra.mxu0 0.0
    %400 = vmatprep.subr.mxu0 0.0
    %401 = vmatpush2.xpose.msra.mxu0 0.0
    %402 = vmatprep.subr.mxu0 0.0
    %403 = vmatpush2.xpose.msra.mxu0 0.0
    %404 = vmatprep.subr.mxu0 0.0
    %405 = vmatpush2.xpose.msra.mxu0 0.0
    %406 = vmatprep.mubr.f32.mxu0 0.0
    %v407 = vand.u32 %v80, 4294901760
    %v408 = vsub.f32 %v80, %v407
    %409 = vmatmul.mubr.f32.gmra.mxu0 %v408
    %v410 = vpop.f32.mrf.mxu0
    %v411 = vadd.f32 %v315, %v410
    %v412 = vpop.f32.mrf.mxu0
    %413 = vdwg.mxu0
    %414 = vmatprep.subr.mxu0 0.0
    %415 = vmatpush1.xpose.msra.mxu0 0.0
    %416 = vmatprep.subr.mxu0 0.0
    %417 = vmatpush1.xpose.msra.mxu0 0.0
    %418 = vmatprep.subr.mxu0 0.0
    %419 = vmatpush1.xpose.msra.mxu0 0.0
    %420 = vmatprep.subr.mxu0 0.0
    %421 = vmatpush1.xpose.msra.mxu0 0.0
    %422 = vmatprep.subr.mxu0 0.0
    %v423 = vand.u32 %v92, 4294901760
    %424 = vmatpush1.xpose.msra.mxu0 %v423
    %425 = vmatprep.subr.mxu0 0.0
    %v426 = vand.u32 %v91, 4294901760
    %427 = vmatpush1.xpose.msra.mxu0 %v426
    %428 = vmatprep.subr.mxu0 0.0
    %v429 = vand.u32 %v90, 4294901760
    %430 = vmatpush1.xpose.msra.mxu0 %v429
    %431 = vmatprep.subr.mxu0 0.0
    %v432 = vand.u32 %v89, 4294901760
    %433 = vmatpush1.xpose.msra.mxu0 %v432
    %434 = vmatprep.subr.mxu0 0.0
    %v435 = vand.u32 %v88, 4294901760
    %436 = vmatpush1.xpose.msra.mxu0 %v435
    %437 = vmatprep.subr.mxu0 0.0
    %v438 = vand.u32 %v87, 4294901760
    %439 = vmatpush1.xpose.msra.mxu0 %v438
    %440 = vmatprep.subr.mxu0 0.0
    %v441 = vand.u32 %v86, 4294901760
    %442 = vmatpush1.xpose.msra.mxu0 %v441
    %443 = vmatprep.subr.mxu0 0.0
    %v444 = vand.u32 %v85, 4294901760
    %445 = vmatpush1.xpose.msra.mxu0 %v444
    %446 = vmatprep.subr.mxu0 0.0
    %v447 = vand.u32 %v84, 4294901760
    %448 = vmatpush1.xpose.msra.mxu0 %v447
    %449 = vmatprep.subr.mxu0 0.0
    %v450 = vand.u32 %v83, 4294901760
    %451 = vmatpush1.xpose.msra.mxu0 %v450
    %452 = vmatprep.subr.mxu0 0.0
    %v453 = vand.u32 %v82, 4294901760
    %454 = vmatpush1.xpose.msra.mxu0 %v453
    %455 = vmatprep.subr.mxu0 0.0
    %v456 = vand.u32 %v81, 4294901760
    %457 = vmatpush1.xpose.msra.mxu0 %v456
    %458 = vmatprep.subr.mxu0 0.0
    %459 = vmatpush2.xpose.msra.mxu0 0.0
    %460 = vmatprep.subr.mxu0 0.0
    %461 = vmatpush2.xpose.msra.mxu0 0.0
    %462 = vmatprep.subr.mxu0 0.0
    %463 = vmatpush2.xpose.msra.mxu0 0.0
    %464 = vmatprep.subr.mxu0 0.0
    %465 = vmatpush2.xpose.msra.mxu0 0.0
    %466 = vmatprep.subr.mxu0 0.0
    %467 = vmatpush2.xpose.msra.mxu0 0.0
    %468 = vmatprep.subr.mxu0 0.0
    %469 = vmatpush2.xpose.msra.mxu0 0.0
    %470 = vmatprep.subr.mxu0 0.0
    %471 = vmatpush2.xpose.msra.mxu0 0.0
    %472 = vmatprep.subr.mxu0 0.0
    %473 = vmatpush2.xpose.msra.mxu0 0.0
    %474 = vmatprep.subr.mxu0 0.0
    %475 = vmatpush2.xpose.msra.mxu0 0.0
    %476 = vmatprep.subr.mxu0 0.0
    %477 = vmatpush2.xpose.msra.mxu0 0.0
    %478 = vmatprep.subr.mxu0 0.0
    %479 = vmatpush2.xpose.msra.mxu0 0.0
    %480 = vmatprep.subr.mxu0 0.0
    %481 = vmatpush2.xpose.msra.mxu0 0.0
    %482 = vmatprep.subr.mxu0 0.0
    %483 = vmatpush2.xpose.msra.mxu0 0.0
    %484 = vmatprep.subr.mxu0 0.0
    %485 = vmatpush2.xpose.msra.mxu0 0.0
    %486 = vmatprep.subr.mxu0 0.0
    %487 = vmatpush2.xpose.msra.mxu0 0.0
    %488 = vmatprep.subr.mxu0 0.0
    %489 = vmatpush2.xpose.msra.mxu0 0.0
    %490 = vmatprep.mubr.f32.mxu0 0.0
    %v491 = vand.u32 %v80, 4294901760
    %v492 = vsub.f32 %v80, %v491
    %v493 = vand.u32 %v492, 4294901760
    %494 = vmatmul.mubr.f32.gmra.mxu0 %v493
    %v495 = vpop.f32.mrf.mxu0
    %v496 = vadd.f32 %v411, %v495
    %v497 = vpop.f32.mrf.mxu0
    %498 = vdwg.mxu0
    %499 = vmatprep.subr.mxu0 0.0
    %500 = vmatpush1.xpose.msra.mxu0 0.0
    %501 = vmatprep.subr.mxu0 0.0
    %502 = vmatpush1.xpose.msra.mxu0 0.0
    %503 = vmatprep.subr.mxu0 0.0
    %504 = vmatpush1.xpose.msra.mxu0 0.0
    %505 = vmatprep.subr.mxu0 0.0
    %506 = vmatpush1.xpose.msra.mxu0 0.0
    %507 = vmatprep.subr.mxu0 0.0
    %v508 = vand.u32 %v92, 4294901760
    %v509 = vsub.f32 %v92, %v508
    %v510 = vand.u32 %v509, 4294901760
    %511 = vmatpush1.xpose.msra.mxu0 %v510
    %512 = vmatprep.subr.mxu0 0.0
    %v513 = vand.u32 %v91, 4294901760
    %v514 = vsub.f32 %v91, %v513
    %v515 = vand.u32 %v514, 4294901760
    %516 = vmatpush1.xpose.msra.mxu0 %v515
    %517 = vmatprep.subr.mxu0 0.0
    %v518 = vand.u32 %v90, 4294901760
    %v519 = vsub.f32 %v90, %v518
    %v520 = vand.u32 %v519, 4294901760
    %521 = vmatpush1.xpose.msra.mxu0 %v520
    %522 = vmatprep.subr.mxu0 0.0
    %v523 = vand.u32 %v89, 4294901760
    %v524 = vsub.f32 %v89, %v523
    %v525 = vand.u32 %v524, 4294901760
    %526 = vmatpush1.xpose.msra.mxu0 %v525
    %527 = vmatprep.subr.mxu0 0.0
    %v528 = vand.u32 %v88, 4294901760
    %v529 = vsub.f32 %v88, %v528
    %v530 = vand.u32 %v529, 4294901760
    %531 = vmatpush1.xpose.msra.mxu0 %v530
    %532 = vmatprep.subr.mxu0 0.0
    %v533 = vand.u32 %v87, 4294901760
    %v534 = vsub.f32 %v87, %v533
    %v535 = vand.u32 %v534, 4294901760
    %536 = vmatpush1.xpose.msra.mxu0 %v535
    %537 = vmatprep.subr.mxu0 0.0
    %v538 = vand.u32 %v86, 4294901760
    %v539 = vsub.f32 %v86, %v538
    %v540 = vand.u32 %v539, 4294901760
    %541 = vmatpush1.xpose.msra.mxu0 %v540
    %542 = vmatprep.subr.mxu0 0.0
    %v543 = vand.u32 %v85, 4294901760
    %v544 = vsub.f32 %v85, %v543
    %v545 = vand.u32 %v544, 4294901760
    %546 = vmatpush1.xpose.msra.mxu0 %v545
    %547 = vmatprep.subr.mxu0 0.0
    %v548 = vand.u32 %v84, 4294901760
    %v549 = vsub.f32 %v84, %v548
    %v550 = vand.u32 %v549, 4294901760
    %551 = vmatpush1.xpose.msra.mxu0 %v550
    %552 = vmatprep.subr.mxu0 0.0
    %v553 = vand.u32 %v83, 4294901760
    %v554 = vsub.f32 %v83, %v553
    %v555 = vand.u32 %v554, 4294901760
    %556 = vmatpush1.xpose.msra.mxu0 %v555
    %557 = vmatprep.subr.mxu0 0.0
    %v558 = vand.u32 %v82, 4294901760
    %v559 = vsub.f32 %v82, %v558
    %v560 = vand.u32 %v559, 4294901760
    %561 = vmatpush1.xpose.msra.mxu0 %v560
    %562 = vmatprep.subr.mxu0 0.0
    %v563 = vand.u32 %v81, 4294901760
    %v564 = vsub.f32 %v81, %v563
    %v565 = vand.u32 %v564, 4294901760
    %566 = vmatpush1.xpose.msra.mxu0 %v565
    %567 = vmatprep.subr.mxu0 0.0
    %568 = vmatpush2.xpose.msra.mxu0 0.0
    %569 = vmatprep.subr.mxu0 0.0
    %570 = vmatpush2.xpose.msra.mxu0 0.0
    %571 = vmatprep.subr.mxu0 0.0
    %572 = vmatpush2.xpose.msra.mxu0 0.0
    %573 = vmatprep.subr.mxu0 0.0
    %574 = vmatpush2.xpose.msra.mxu0 0.0
    %575 = vmatprep.subr.mxu0 0.0
    %576 = vmatpush2.xpose.msra.mxu0 0.0
    %577 = vmatprep.subr.mxu0 0.0
    %578 = vmatpush2.xpose.msra.mxu0 0.0
    %579 = vmatprep.subr.mxu0 0.0
    %580 = vmatpush2.xpose.msra.mxu0 0.0
    %581 = vmatprep.subr.mxu0 0.0
    %582 = vmatpush2.xpose.msra.mxu0 0.0
    %583 = vmatprep.subr.mxu0 0.0
    %584 = vmatpush2.xpose.msra.mxu0 0.0
    %585 = vmatprep.subr.mxu0 0.0
    %586 = vmatpush2.xpose.msra.mxu0 0.0
    %587 = vmatprep.subr.mxu0 0.0
    %588 = vmatpush2.xpose.msra.mxu0 0.0
    %589 = vmatprep.subr.mxu0 0.0
    %590 = vmatpush2.xpose.msra.mxu0 0.0
    %591 = vmatprep.subr.mxu0 0.0
    %592 = vmatpush2.xpose.msra.mxu0 0.0
    %593 = vmatprep.subr.mxu0 0.0
    %594 = vmatpush2.xpose.msra.mxu0 0.0
    %595 = vmatprep.subr.mxu0 0.0
    %596 = vmatpush2.xpose.msra.mxu0 0.0
    %597 = vmatprep.subr.mxu0 0.0
    %598 = vmatpush2.xpose.msra.mxu0 0.0
    %599 = vmatprep.mubr.f32.mxu0 0.0
    %v600 = vand.u32 %v80, 4294901760
    %601 = vmatmul.mubr.f32.gmra.mxu0 %v600
    %v602 = vpop.f32.mrf.mxu0
    %v603 = vadd.f32 %v496, %v602
    %v604 = vpop.f32.mrf.mxu0
    %605 = vdwg.mxu0
    %606 = vmatprep.subr.mxu0 0.0
    %607 = vmatpush1.xpose.msra.mxu0 0.0
    %608 = vmatprep.subr.mxu0 0.0
    %609 = vmatpush1.xpose.msra.mxu0 0.0
    %610 = vmatprep.subr.mxu0 0.0
    %611 = vmatpush1.xpose.msra.mxu0 0.0
    %612 = vmatprep.subr.mxu0 0.0
    %613 = vmatpush1.xpose.msra.mxu0 0.0
    %614 = vmatprep.subr.mxu0 0.0
    %v615 = vand.u32 %v92, 4294901760
    %616 = vmatpush1.xpose.msra.mxu0 %v615
    %617 = vmatprep.subr.mxu0 0.0
    %v618 = vand.u32 %v91, 4294901760
    %619 = vmatpush1.xpose.msra.mxu0 %v618
    %620 = vmatprep.subr.mxu0 0.0
    %v621 = vand.u32 %v90, 4294901760
    %622 = vmatpush1.xpose.msra.mxu0 %v621
    %623 = vmatprep.subr.mxu0 0.0
    %v624 = vand.u32 %v89, 4294901760
    %625 = vmatpush1.xpose.msra.mxu0 %v624
    %626 = vmatprep.subr.mxu0 0.0
    %v627 = vand.u32 %v88, 4294901760
    %628 = vmatpush1.xpose.msra.mxu0 %v627
    %629 = vmatprep.subr.mxu0 0.0
    %v630 = vand.u32 %v87, 4294901760
    %631 = vmatpush1.xpose.msra.mxu0 %v630
    %632 = vmatprep.subr.mxu0 0.0
    %v633 = vand.u32 %v86, 4294901760
    %634 = vmatpush1.xpose.msra.mxu0 %v633
    %635 = vmatprep.subr.mxu0 0.0
    %v636 = vand.u32 %v85, 4294901760
    %637 = vmatpush1.xpose.msra.mxu0 %v636
    %638 = vmatprep.subr.mxu0 0.0
    %v639 = vand.u32 %v84, 4294901760
    %640 = vmatpush1.xpose.msra.mxu0 %v639
    %641 = vmatprep.subr.mxu0 0.0
    %v642 = vand.u32 %v83, 4294901760
    %643 = vmatpush1.xpose.msra.mxu0 %v642
    %644 = vmatprep.subr.mxu0 0.0
    %v645 = vand.u32 %v82, 4294901760
    %646 = vmatpush1.xpose.msra.mxu0 %v645
    %647 = vmatprep.subr.mxu0 0.0
    %v648 = vand.u32 %v81, 4294901760
    %649 = vmatpush1.xpose.msra.mxu0 %v648
    %650 = vmatprep.subr.mxu0 0.0
    %651 = vmatpush2.xpose.msra.mxu0 0.0
    %652 = vmatprep.subr.mxu0 0.0
    %653 = vmatpush2.xpose.msra.mxu0 0.0
    %654 = vmatprep.subr.mxu0 0.0
    %655 = vmatpush2.xpose.msra.mxu0 0.0
    %656 = vmatprep.subr.mxu0 0.0
    %657 = vmatpush2.xpose.msra.mxu0 0.0
    %658 = vmatprep.subr.mxu0 0.0
    %659 = vmatpush2.xpose.msra.mxu0 0.0
    %660 = vmatprep.subr.mxu0 0.0
    %661 = vmatpush2.xpose.msra.mxu0 0.0
    %662 = vmatprep.subr.mxu0 0.0
    %663 = vmatpush2.xpose.msra.mxu0 0.0
    %664 = vmatprep.subr.mxu0 0.0
    %665 = vmatpush2.xpose.msra.mxu0 0.0
    %666 = vmatprep.subr.mxu0 0.0
    %667 = vmatpush2.xpose.msra.mxu0 0.0
    %668 = vmatprep.subr.mxu0 0.0
    %669 = vmatpush2.xpose.msra.mxu0 0.0
    %670 = vmatprep.subr.mxu0 0.0
    %671 = vmatpush2.xpose.msra.mxu0 0.0
    %672 = vmatprep.subr.mxu0 0.0
    %673 = vmatpush2.xpose.msra.mxu0 0.0
    %674 = vmatprep.subr.mxu0 0.0
    %675 = vmatpush2.xpose.msra.mxu0 0.0
    %676 = vmatprep.subr.mxu0 0.0
    %677 = vmatpush2.xpose.msra.mxu0 0.0
    %678 = vmatprep.subr.mxu0 0.0
    %679 = vmatpush2.xpose.msra.mxu0 0.0
    %680 = vmatprep.subr.mxu0 0.0
    %681 = vmatpush2.xpose.msra.mxu0 0.0
    %682 = vmatprep.mubr.f32.mxu0 0.0
    %v683 = vand.u32 %v80, 4294901760
    %684 = vmatmul.mubr.f32.gmra.mxu0 %v683
    %v685 = vpop.f32.mrf.mxu0
    %v686 = vadd.f32 %v603, %v685
    %v687 = vpop.f32.mrf.mxu0
    %688 = vdwg.mxu0
    %v689 = vmax.f32 %v686, 0.0
    %v690 = vld [vmem:[#allocation7] sm:$0xff]
    %v691 = vld [vmem:[#allocation7 + $0x8] sm:$0xff]
    %v692 = vld [vmem:[#allocation7 + $0x10] sm:$0xff]
    %v693 = vld [vmem:[#allocation7 + $0x18] sm:$0xff]
    %v694 = vld [vmem:[#allocation7 + $0x20] sm:$0xff]
    %v695 = vld [vmem:[#allocation7 + $0x28] sm:$0xff]
    %v696 = vld [vmem:[#allocation7 + $0x30] sm:$0xff]
    %v697 = vld [vmem:[#allocation7 + $0x38] sm:$0xff]
    %v698 = vld [vmem:[%s4] sm:$0x1]
    %v700 = vlaneseq
    %v701 = vshrl.u32 %v700, 7
    %v702 = vsub.s32 0, %v701
    %v703 = vrot.slane %v698, %v702
    %vm705 = vcmask 785408
    %v707 = vsel %vm705, %v689, 0
    %v710 = vsel %vm705, %v690, 0
    %v713 = vsel %vm705, %v691, 0
    %v716 = vsel %vm705, %v692, 0
    %v719 = vsel %vm705, %v693, 0
    %v722 = vsel %vm705, %v694, 0
    %v725 = vsel %vm705, %v695, 0
    %v728 = vsel %vm705, %v696, 0
    %v731 = vsel %vm705, %v697, 0
    %733 = vmatprep.subr.mxu0 0.0
    %734 = vmatpush1.xpose.msra.mxu0 0.0
    %735 = vmatprep.subr.mxu0 0.0
    %736 = vmatpush1.xpose.msra.mxu0 0.0
    %737 = vmatprep.subr.mxu0 0.0
    %738 = vmatpush1.xpose.msra.mxu0 0.0
    %739 = vmatprep.subr.mxu0 0.0
    %740 = vmatpush1.xpose.msra.mxu0 0.0
    %741 = vmatprep.subr.mxu0 0.0
    %742 = vmatpush1.xpose.msra.mxu0 0.0
    %743 = vmatprep.subr.mxu0 0.0
    %744 = vmatpush1.xpose.msra.mxu0 0.0
    %745 = vmatprep.subr.mxu0 0.0
    %746 = vmatpush1.xpose.msra.mxu0 0.0
    %747 = vmatprep.subr.mxu0 0.0
    %748 = vmatpush1.xpose.msra.mxu0 0.0
    %749 = vmatprep.subr.mxu0 0.0
    %v750 = vand.u32 %v731, 4294901760
    %751 = vmatpush1.xpose.msra.mxu0 %v750
    %752 = vmatprep.subr.mxu0 0.0
    %v753 = vand.u32 %v728, 4294901760
    %754 = vmatpush1.xpose.msra.mxu0 %v753
    %755 = vmatprep.subr.mxu0 0.0
    %v756 = vand.u32 %v725, 4294901760
    %757 = vmatpush1.xpose.msra.mxu0 %v756
    %758 = vmatprep.subr.mxu0 0.0
    %v759 = vand.u32 %v722, 4294901760
    %760 = vmatpush1.xpose.msra.mxu0 %v759
    %761 = vmatprep.subr.mxu0 0.0
    %v762 = vand.u32 %v719, 4294901760
    %763 = vmatpush1.xpose.msra.mxu0 %v762
    %764 = vmatprep.subr.mxu0 0.0
    %v765 = vand.u32 %v716, 4294901760
    %766 = vmatpush1.xpose.msra.mxu0 %v765
    %767 = vmatprep.subr.mxu0 0.0
    %v768 = vand.u32 %v713, 4294901760
    %769 = vmatpush1.xpose.msra.mxu0 %v768
    %770 = vmatprep.subr.mxu0 0.0
    %v771 = vand.u32 %v710, 4294901760
    %772 = vmatpush1.xpose.msra.mxu0 %v771
    %773 = vmatprep.subr.mxu0 0.0
    %774 = vmatpush2.xpose.msra.mxu0 0.0
    %775 = vmatprep.subr.mxu0 0.0
    %776 = vmatpush2.xpose.msra.mxu0 0.0
    %777 = vmatprep.subr.mxu0 0.0
    %778 = vmatpush2.xpose.msra.mxu0 0.0
    %779 = vmatprep.subr.mxu0 0.0
    %780 = vmatpush2.xpose.msra.mxu0 0.0
    %781 = vmatprep.subr.mxu0 0.0
    %782 = vmatpush2.xpose.msra.mxu0 0.0
    %783 = vmatprep.subr.mxu0 0.0
    %784 = vmatpush2.xpose.msra.mxu0 0.0
    %785 = vmatprep.subr.mxu0 0.0
    %786 = vmatpush2.xpose.msra.mxu0 0.0
    %787 = vmatprep.subr.mxu0 0.0
    %788 = vmatpush2.xpose.msra.mxu0 0.0
    %789 = vmatprep.subr.mxu0 0.0
    %790 = vmatpush2.xpose.msra.mxu0 0.0
    %791 = vmatprep.subr.mxu0 0.0
    %792 = vmatpush2.xpose.msra.mxu0 0.0
    %793 = vmatprep.subr.mxu0 0.0
    %794 = vmatpush2.xpose.msra.mxu0 0.0
    %795 = vmatprep.subr.mxu0 0.0
    %796 = vmatpush2.xpose.msra.mxu0 0.0
    %797 = vmatprep.subr.mxu0 0.0
    %798 = vmatpush2.xpose.msra.mxu0 0.0
    %799 = vmatprep.subr.mxu0 0.0
    %800 = vmatpush2.xpose.msra.mxu0 0.0
    %801 = vmatprep.subr.mxu0 0.0
    %802 = vmatpush2.xpose.msra.mxu0 0.0
    %803 = vmatprep.subr.mxu0 0.0
    %804 = vmatpush2.xpose.msra.mxu0 0.0
    %805 = vmatprep.mubr.f32.mxu0 0.0
    %v806 = vand.u32 %v707, 4294901760
    %v807 = vsub.f32 %v707, %v806
    %v808 = vand.u32 %v807, 4294901760
    %v809 = vsub.f32 %v807, %v808
    %v810 = vand.u32 %v809, 4294901760
    %811 = vmatmul.mubr.f32.gmra.mxu0 %v810
    %v812 = vpop.f32.mrf.mxu0
    %v813 = vadd.f32 %v703, %v812
    %v814 = vpop.f32.mrf.mxu0
    %815 = vdwg.mxu0
    %816 = vmatprep.subr.mxu0 0.0
    %817 = vmatpush1.xpose.msra.mxu0 0.0
    %818 = vmatprep.subr.mxu0 0.0
    %819 = vmatpush1.xpose.msra.mxu0 0.0
    %820 = vmatprep.subr.mxu0 0.0
    %821 = vmatpush1.xpose.msra.mxu0 0.0
    %822 = vmatprep.subr.mxu0 0.0
    %823 = vmatpush1.xpose.msra.mxu0 0.0
    %824 = vmatprep.subr.mxu0 0.0
    %825 = vmatpush1.xpose.msra.mxu0 0.0
    %826 = vmatprep.subr.mxu0 0.0
    %827 = vmatpush1.xpose.msra.mxu0 0.0
    %828 = vmatprep.subr.mxu0 0.0
    %829 = vmatpush1.xpose.msra.mxu0 0.0
    %830 = vmatprep.subr.mxu0 0.0
    %831 = vmatpush1.xpose.msra.mxu0 0.0
    %832 = vmatprep.subr.mxu0 0.0
    %v833 = vand.u32 %v731, 4294901760
    %v834 = vsub.f32 %v731, %v833
    %v835 = vand.u32 %v834, 4294901760
    %v836 = vsub.f32 %v834, %v835
    %v837 = vand.u32 %v836, 4294901760
    %838 = vmatpush1.xpose.msra.mxu0 %v837
    %839 = vmatprep.subr.mxu0 0.0
    %v840 = vand.u32 %v728, 4294901760
    %v841 = vsub.f32 %v728, %v840
    %v842 = vand.u32 %v841, 4294901760
    %v843 = vsub.f32 %v841, %v842
    %v844 = vand.u32 %v843, 4294901760
    %845 = vmatpush1.xpose.msra.mxu0 %v844
    %846 = vmatprep.subr.mxu0 0.0
    %v847 = vand.u32 %v725, 4294901760
    %v848 = vsub.f32 %v725, %v847
    %v849 = vand.u32 %v848, 4294901760
    %v850 = vsub.f32 %v848, %v849
    %v851 = vand.u32 %v850, 4294901760
    %852 = vmatpush1.xpose.msra.mxu0 %v851
    %853 = vmatprep.subr.mxu0 0.0
    %v854 = vand.u32 %v722, 4294901760
    %v855 = vsub.f32 %v722, %v854
    %v856 = vand.u32 %v855, 4294901760
    %v857 = vsub.f32 %v855, %v856
    %v858 = vand.u32 %v857, 4294901760
    %859 = vmatpush1.xpose.msra.mxu0 %v858
    %860 = vmatprep.subr.mxu0 0.0
    %v861 = vand.u32 %v719, 4294901760
    %v862 = vsub.f32 %v719, %v861
    %v863 = vand.u32 %v862, 4294901760
    %v864 = vsub.f32 %v862, %v863
    %v865 = vand.u32 %v864, 4294901760
    %866 = vmatpush1.xpose.msra.mxu0 %v865
    %867 = vmatprep.subr.mxu0 0.0
    %v868 = vand.u32 %v716, 4294901760
    %v869 = vsub.f32 %v716, %v868
    %v870 = vand.u32 %v869, 4294901760
    %v871 = vsub.f32 %v869, %v870
    %v872 = vand.u32 %v871, 4294901760
    %873 = vmatpush1.xpose.msra.mxu0 %v872
    %874 = vmatprep.subr.mxu0 0.0
    %v875 = vand.u32 %v713, 4294901760
    %v876 = vsub.f32 %v713, %v875
    %v877 = vand.u32 %v876, 4294901760
    %v878 = vsub.f32 %v876, %v877
    %v879 = vand.u32 %v878, 4294901760
    %880 = vmatpush1.xpose.msra.mxu0 %v879
    %881 = vmatprep.subr.mxu0 0.0
    %v882 = vand.u32 %v710, 4294901760
    %v883 = vsub.f32 %v710, %v882
    %v884 = vand.u32 %v883, 4294901760
    %v885 = vsub.f32 %v883, %v884
    %v886 = vand.u32 %v885, 4294901760
    %887 = vmatpush1.xpose.msra.mxu0 %v886
    %888 = vmatprep.subr.mxu0 0.0
    %889 = vmatpush2.xpose.msra.mxu0 0.0
    %890 = vmatprep.subr.mxu0 0.0
    %891 = vmatpush2.xpose.msra.mxu0 0.0
    %892 = vmatprep.subr.mxu0 0.0
    %893 = vmatpush2.xpose.msra.mxu0 0.0
    %894 = vmatprep.subr.mxu0 0.0
    %895 = vmatpush2.xpose.msra.mxu0 0.0
    %896 = vmatprep.subr.mxu0 0.0
    %897 = vmatpush2.xpose.msra.mxu0 0.0
    %898 = vmatprep.subr.mxu0 0.0
    %899 = vmatpush2.xpose.msra.mxu0 0.0
    %900 = vmatprep.subr.mxu0 0.0
    %901 = vmatpush2.xpose.msra.mxu0 0.0
    %902 = vmatprep.subr.mxu0 0.0
    %903 = vmatpush2.xpose.msra.mxu0 0.0
    %904 = vmatprep.subr.mxu0 0.0
    %905 = vmatpush2.xpose.msra.mxu0 0.0
    %906 = vmatprep.subr.mxu0 0.0
    %907 = vmatpush2.xpose.msra.mxu0 0.0
    %908 = vmatprep.subr.mxu0 0.0
    %909 = vmatpush2.xpose.msra.mxu0 0.0
    %910 = vmatprep.subr.mxu0 0.0
    %911 = vmatpush2.xpose.msra.mxu0 0.0
    %912 = vmatprep.subr.mxu0 0.0
    %913 = vmatpush2.xpose.msra.mxu0 0.0
    %914 = vmatprep.subr.mxu0 0.0
    %915 = vmatpush2.xpose.msra.mxu0 0.0
    %916 = vmatprep.subr.mxu0 0.0
    %917 = vmatpush2.xpose.msra.mxu0 0.0
    %918 = vmatprep.subr.mxu0 0.0
    %919 = vmatpush2.xpose.msra.mxu0 0.0
    %920 = vmatprep.mubr.f32.mxu0 0.0
    %v921 = vand.u32 %v707, 4294901760
    %922 = vmatmul.mubr.f32.gmra.mxu0 %v921
    %v923 = vpop.f32.mrf.mxu0
    %v924 = vadd.f32 %v813, %v923
    %v925 = vpop.f32.mrf.mxu0
    %926 = vdwg.mxu0
    %927 = vmatprep.subr.mxu0 0.0
    %928 = vmatpush1.xpose.msra.mxu0 0.0
    %929 = vmatprep.subr.mxu0 0.0
    %930 = vmatpush1.xpose.msra.mxu0 0.0
    %931 = vmatprep.subr.mxu0 0.0
    %932 = vmatpush1.xpose.msra.mxu0 0.0
    %933 = vmatprep.subr.mxu0 0.0
    %934 = vmatpush1.xpose.msra.mxu0 0.0
    %935 = vmatprep.subr.mxu0 0.0
    %936 = vmatpush1.xpose.msra.mxu0 0.0
    %937 = vmatprep.subr.mxu0 0.0
    %938 = vmatpush1.xpose.msra.mxu0 0.0
    %939 = vmatprep.subr.mxu0 0.0
    %940 = vmatpush1.xpose.msra.mxu0 0.0
    %941 = vmatprep.subr.mxu0 0.0
    %942 = vmatpush1.xpose.msra.mxu0 0.0
    %943 = vmatprep.subr.mxu0 0.0
    %v944 = vand.u32 %v731, 4294901760
    %v945 = vsub.f32 %v731, %v944
    %946 = vmatpush1.xpose.msra.mxu0 %v945
    %947 = vmatprep.subr.mxu0 0.0
    %v948 = vand.u32 %v728, 4294901760
    %v949 = vsub.f32 %v728, %v948
    %950 = vmatpush1.xpose.msra.mxu0 %v949
    %951 = vmatprep.subr.mxu0 0.0
    %v952 = vand.u32 %v725, 4294901760
    %v953 = vsub.f32 %v725, %v952
    %954 = vmatpush1.xpose.msra.mxu0 %v953
    %955 = vmatprep.subr.mxu0 0.0
    %v956 = vand.u32 %v722, 4294901760
    %v957 = vsub.f32 %v722, %v956
    %958 = vmatpush1.xpose.msra.mxu0 %v957
    %959 = vmatprep.subr.mxu0 0.0
    %v960 = vand.u32 %v719, 4294901760
    %v961 = vsub.f32 %v719, %v960
    %962 = vmatpush1.xpose.msra.mxu0 %v961
    %963 = vmatprep.subr.mxu0 0.0
    %v964 = vand.u32 %v716, 4294901760
    %v965 = vsub.f32 %v716, %v964
    %966 = vmatpush1.xpose.msra.mxu0 %v965
    %967 = vmatprep.subr.mxu0 0.0
    %v968 = vand.u32 %v713, 4294901760
    %v969 = vsub.f32 %v713, %v968
    %970 = vmatpush1.xpose.msra.mxu0 %v969
    %971 = vmatprep.subr.mxu0 0.0
    %v972 = vand.u32 %v710, 4294901760
    %v973 = vsub.f32 %v710, %v972
    %974 = vmatpush1.xpose.msra.mxu0 %v973
    %975 = vmatprep.subr.mxu0 0.0
    %976 = vmatpush2.xpose.msra.mxu0 0.0
    %977 = vmatprep.subr.mxu0 0.0
    %978 = vmatpush2.xpose.msra.mxu0 0.0
    %979 = vmatprep.subr.mxu0 0.0
    %980 = vmatpush2.xpose.msra.mxu0 0.0
    %981 = vmatprep.subr.mxu0 0.0
    %982 = vmatpush2.xpose.msra.mxu0 0.0
    %983 = vmatprep.subr.mxu0 0.0
    %984 = vmatpush2.xpose.msra.mxu0 0.0
    %985 = vmatprep.subr.mxu0 0.0
    %986 = vmatpush2.xpose.msra.mxu0 0.0
    %987 = vmatprep.subr.mxu0 0.0
    %988 = vmatpush2.xpose.msra.mxu0 0.0
    %989 = vmatprep.subr.mxu0 0.0
    %990 = vmatpush2.xpose.msra.mxu0 0.0
    %991 = vmatprep.subr.mxu0 0.0
    %992 = vmatpush2.xpose.msra.mxu0 0.0
    %993 = vmatprep.subr.mxu0 0.0
    %994 = vmatpush2.xpose.msra.mxu0 0.0
    %995 = vmatprep.subr.mxu0 0.0
    %996 = vmatpush2.xpose.msra.mxu0 0.0
    %997 = vmatprep.subr.mxu0 0.0
    %998 = vmatpush2.xpose.msra.mxu0 0.0
    %999 = vmatprep.subr.mxu0 0.0
    %1000 = vmatpush2.xpose.msra.mxu0 0.0
    %1001 = vmatprep.subr.mxu0 0.0
    %1002 = vmatpush2.xpose.msra.mxu0 0.0
    %1003 = vmatprep.subr.mxu0 0.0
    %1004 = vmatpush2.xpose.msra.mxu0 0.0
    %1005 = vmatprep.subr.mxu0 0.0
    %1006 = vmatpush2.xpose.msra.mxu0 0.0
    %1007 = vmatprep.mubr.f32.mxu0 0.0
    %v1008 = vand.u32 %v707, 4294901760
    %v1009 = vsub.f32 %v707, %v1008
    %1010 = vmatmul.mubr.f32.gmra.mxu0 %v1009
    %v1011 = vpop.f32.mrf.mxu0
    %v1012 = vadd.f32 %v924, %v1011
    %v1013 = vpop.f32.mrf.mxu0
    %1014 = vdwg.mxu0
    %1015 = vmatprep.subr.mxu0 0.0
    %1016 = vmatpush1.xpose.msra.mxu0 0.0
    %1017 = vmatprep.subr.mxu0 0.0
    %1018 = vmatpush1.xpose.msra.mxu0 0.0
    %1019 = vmatprep.subr.mxu0 0.0
    %1020 = vmatpush1.xpose.msra.mxu0 0.0
    %1021 = vmatprep.subr.mxu0 0.0
    %1022 = vmatpush1.xpose.msra.mxu0 0.0
    %1023 = vmatprep.subr.mxu0 0.0
    %1024 = vmatpush1.xpose.msra.mxu0 0.0
    %1025 = vmatprep.subr.mxu0 0.0
    %1026 = vmatpush1.xpose.msra.mxu0 0.0
    %1027 = vmatprep.subr.mxu0 0.0
    %1028 = vmatpush1.xpose.msra.mxu0 0.0
    %1029 = vmatprep.subr.mxu0 0.0
    %1030 = vmatpush1.xpose.msra.mxu0 0.0
    %1031 = vmatprep.subr.mxu0 0.0
    %v1032 = vand.u32 %v731, 4294901760
    %1033 = vmatpush1.xpose.msra.mxu0 %v1032
    %1034 = vmatprep.subr.mxu0 0.0
    %v1035 = vand.u32 %v728, 4294901760
    %1036 = vmatpush1.xpose.msra.mxu0 %v1035
    %1037 = vmatprep.subr.mxu0 0.0
    %v1038 = vand.u32 %v725, 4294901760
    %1039 = vmatpush1.xpose.msra.mxu0 %v1038
    %1040 = vmatprep.subr.mxu0 0.0
    %v1041 = vand.u32 %v722, 4294901760
    %1042 = vmatpush1.xpose.msra.mxu0 %v1041
    %1043 = vmatprep.subr.mxu0 0.0
    %v1044 = vand.u32 %v719, 4294901760
    %1045 = vmatpush1.xpose.msra.mxu0 %v1044
    %1046 = vmatprep.subr.mxu0 0.0
    %v1047 = vand.u32 %v716, 4294901760
    %1048 = vmatpush1.xpose.msra.mxu0 %v1047
    %1049 = vmatprep.subr.mxu0 0.0
    %v1050 = vand.u32 %v713, 4294901760
    %1051 = vmatpush1.xpose.msra.mxu0 %v1050
    %1052 = vmatprep.subr.mxu0 0.0
    %v1053 = vand.u32 %v710, 4294901760
    %1054 = vmatpush1.xpose.msra.mxu0 %v1053
    %1055 = vmatprep.subr.mxu0 0.0
    %1056 = vmatpush2.xpose.msra.mxu0 0.0
    %1057 = vmatprep.subr.mxu0 0.0
    %1058 = vmatpush2.xpose.msra.mxu0 0.0
    %1059 = vmatprep.subr.mxu0 0.0
    %1060 = vmatpush2.xpose.msra.mxu0 0.0
    %1061 = vmatprep.subr.mxu0 0.0
    %1062 = vmatpush2.xpose.msra.mxu0 0.0
    %1063 = vmatprep.subr.mxu0 0.0
    %1064 = vmatpush2.xpose.msra.mxu0 0.0
    %1065 = vmatprep.subr.mxu0 0.0
    %1066 = vmatpush2.xpose.msra.mxu0 0.0
    %1067 = vmatprep.subr.mxu0 0.0
    %1068 = vmatpush2.xpose.msra.mxu0 0.0
    %1069 = vmatprep.subr.mxu0 0.0
    %1070 = vmatpush2.xpose.msra.mxu0 0.0
    %1071 = vmatprep.subr.mxu0 0.0
    %1072 = vmatpush2.xpose.msra.mxu0 0.0
    %1073 = vmatprep.subr.mxu0 0.0
    %1074 = vmatpush2.xpose.msra.mxu0 0.0
    %1075 = vmatprep.subr.mxu0 0.0
    %1076 = vmatpush2.xpose.msra.mxu0 0.0
    %1077 = vmatprep.subr.mxu0 0.0
    %1078 = vmatpush2.xpose.msra.mxu0 0.0
    %1079 = vmatprep.subr.mxu0 0.0
    %1080 = vmatpush2.xpose.msra.mxu0 0.0
    %1081 = vmatprep.subr.mxu0 0.0
    %1082 = vmatpush2.xpose.msra.mxu0 0.0
    %1083 = vmatprep.subr.mxu0 0.0
    %1084 = vmatpush2.xpose.msra.mxu0 0.0
    %1085 = vmatprep.subr.mxu0 0.0
    %1086 = vmatpush2.xpose.msra.mxu0 0.0
    %1087 = vmatprep.mubr.f32.mxu0 0.0
    %v1088 = vand.u32 %v707, 4294901760
    %v1089 = vsub.f32 %v707, %v1088
    %v1090 = vand.u32 %v1089, 4294901760
    %1091 = vmatmul.mubr.f32.gmra.mxu0 %v1090
    %v1092 = vpop.f32.mrf.mxu0
    %v1093 = vadd.f32 %v1012, %v1092
    %v1094 = vpop.f32.mrf.mxu0
    %1095 = vdwg.mxu0
    %1096 = vmatprep.subr.mxu0 0.0
    %1097 = vmatpush1.xpose.msra.mxu0 0.0
    %1098 = vmatprep.subr.mxu0 0.0
    %1099 = vmatpush1.xpose.msra.mxu0 0.0
    %1100 = vmatprep.subr.mxu0 0.0
    %1101 = vmatpush1.xpose.msra.mxu0 0.0
    %1102 = vmatprep.subr.mxu0 0.0
    %1103 = vmatpush1.xpose.msra.mxu0 0.0
    %1104 = vmatprep.subr.mxu0 0.0
    %1105 = vmatpush1.xpose.msra.mxu0 0.0
    %1106 = vmatprep.subr.mxu0 0.0
    %1107 = vmatpush1.xpose.msra.mxu0 0.0
    %1108 = vmatprep.subr.mxu0 0.0
    %1109 = vmatpush1.xpose.msra.mxu0 0.0
    %1110 = vmatprep.subr.mxu0 0.0
    %1111 = vmatpush1.xpose.msra.mxu0 0.0
    %1112 = vmatprep.subr.mxu0 0.0
    %v1113 = vand.u32 %v731, 4294901760
    %v1114 = vsub.f32 %v731, %v1113
    %v1115 = vand.u32 %v1114, 4294901760
    %1116 = vmatpush1.xpose.msra.mxu0 %v1115
    %1117 = vmatprep.subr.mxu0 0.0
    %v1118 = vand.u32 %v728, 4294901760
    %v1119 = vsub.f32 %v728, %v1118
    %v1120 = vand.u32 %v1119, 4294901760
    %1121 = vmatpush1.xpose.msra.mxu0 %v1120
    %1122 = vmatprep.subr.mxu0 0.0
    %v1123 = vand.u32 %v725, 4294901760
    %v1124 = vsub.f32 %v725, %v1123
    %v1125 = vand.u32 %v1124, 4294901760
    %1126 = vmatpush1.xpose.msra.mxu0 %v1125
    %1127 = vmatprep.subr.mxu0 0.0
    %v1128 = vand.u32 %v722, 4294901760
    %v1129 = vsub.f32 %v722, %v1128
    %v1130 = vand.u32 %v1129, 4294901760
    %1131 = vmatpush1.xpose.msra.mxu0 %v1130
    %1132 = vmatprep.subr.mxu0 0.0
    %v1133 = vand.u32 %v719, 4294901760
    %v1134 = vsub.f32 %v719, %v1133
    %v1135 = vand.u32 %v1134, 4294901760
    %1136 = vmatpush1.xpose.msra.mxu0 %v1135
    %1137 = vmatprep.subr.mxu0 0.0
    %v1138 = vand.u32 %v716, 4294901760
    %v1139 = vsub.f32 %v716, %v1138
    %v1140 = vand.u32 %v1139, 4294901760
    %1141 = vmatpush1.xpose.msra.mxu0 %v1140
    %1142 = vmatprep.subr.mxu0 0.0
    %v1143 = vand.u32 %v713, 4294901760
    %v1144 = vsub.f32 %v713, %v1143
    %v1145 = vand.u32 %v1144, 4294901760
    %1146 = vmatpush1.xpose.msra.mxu0 %v1145
    %1147 = vmatprep.subr.mxu0 0.0
    %v1148 = vand.u32 %v710, 4294901760
    %v1149 = vsub.f32 %v710, %v1148
    %v1150 = vand.u32 %v1149, 4294901760
    %1151 = vmatpush1.xpose.msra.mxu0 %v1150
    %1152 = vmatprep.subr.mxu0 0.0
    %1153 = vmatpush2.xpose.msra.mxu0 0.0
    %1154 = vmatprep.subr.mxu0 0.0
    %1155 = vmatpush2.xpose.msra.mxu0 0.0
    %1156 = vmatprep.subr.mxu0 0.0
    %1157 = vmatpush2.xpose.msra.mxu0 0.0
    %1158 = vmatprep.subr.mxu0 0.0
    %1159 = vmatpush2.xpose.msra.mxu0 0.0
    %1160 = vmatprep.subr.mxu0 0.0
    %1161 = vmatpush2.xpose.msra.mxu0 0.0
    %1162 = vmatprep.subr.mxu0 0.0
    %1163 = vmatpush2.xpose.msra.mxu0 0.0
    %1164 = vmatprep.subr.mxu0 0.0
    %1165 = vmatpush2.xpose.msra.mxu0 0.0
    %1166 = vmatprep.subr.mxu0 0.0
    %1167 = vmatpush2.xpose.msra.mxu0 0.0
    %1168 = vmatprep.subr.mxu0 0.0
    %1169 = vmatpush2.xpose.msra.mxu0 0.0
    %1170 = vmatprep.subr.mxu0 0.0
    %1171 = vmatpush2.xpose.msra.mxu0 0.0
    %1172 = vmatprep.subr.mxu0 0.0
    %1173 = vmatpush2.xpose.msra.mxu0 0.0
    %1174 = vmatprep.subr.mxu0 0.0
    %1175 = vmatpush2.xpose.msra.mxu0 0.0
    %1176 = vmatprep.subr.mxu0 0.0
    %1177 = vmatpush2.xpose.msra.mxu0 0.0
    %1178 = vmatprep.subr.mxu0 0.0
    %1179 = vmatpush2.xpose.msra.mxu0 0.0
    %1180 = vmatprep.subr.mxu0 0.0
    %1181 = vmatpush2.xpose.msra.mxu0 0.0
    %1182 = vmatprep.subr.mxu0 0.0
    %1183 = vmatpush2.xpose.msra.mxu0 0.0
    %1184 = vmatprep.mubr.f32.mxu0 0.0
    %v1185 = vand.u32 %v707, 4294901760
    %1186 = vmatmul.mubr.f32.gmra.mxu0 %v1185
    %v1187 = vpop.f32.mrf.mxu0
    %v1188 = vadd.f32 %v1093, %v1187
    %v1189 = vpop.f32.mrf.mxu0
    %1190 = vdwg.mxu0
    %1191 = vmatprep.subr.mxu0 0.0
    %1192 = vmatpush1.xpose.msra.mxu0 0.0
    %1193 = vmatprep.subr.mxu0 0.0
    %1194 = vmatpush1.xpose.msra.mxu0 0.0
    %1195 = vmatprep.subr.mxu0 0.0
    %1196 = vmatpush1.xpose.msra.mxu0 0.0
    %1197 = vmatprep.subr.mxu0 0.0
    %1198 = vmatpush1.xpose.msra.mxu0 0.0
    %1199 = vmatprep.subr.mxu0 0.0
    %1200 = vmatpush1.xpose.msra.mxu0 0.0
    %1201 = vmatprep.subr.mxu0 0.0
    %1202 = vmatpush1.xpose.msra.mxu0 0.0
    %1203 = vmatprep.subr.mxu0 0.0
    %1204 = vmatpush1.xpose.msra.mxu0 0.0
    %1205 = vmatprep.subr.mxu0 0.0
    %1206 = vmatpush1.xpose.msra.mxu0 0.0
    %1207 = vmatprep.subr.mxu0 0.0
    %v1208 = vand.u32 %v731, 4294901760
    %1209 = vmatpush1.xpose.msra.mxu0 %v1208
    %1210 = vmatprep.subr.mxu0 0.0
    %v1211 = vand.u32 %v728, 4294901760
    %1212 = vmatpush1.xpose.msra.mxu0 %v1211
    %1213 = vmatprep.subr.mxu0 0.0
    %v1214 = vand.u32 %v725, 4294901760
    %1215 = vmatpush1.xpose.msra.mxu0 %v1214
    %1216 = vmatprep.subr.mxu0 0.0
    %v1217 = vand.u32 %v722, 4294901760
    %1218 = vmatpush1.xpose.msra.mxu0 %v1217
    %1219 = vmatprep.subr.mxu0 0.0
    %v1220 = vand.u32 %v719, 4294901760
    %1221 = vmatpush1.xpose.msra.mxu0 %v1220
    %1222 = vmatprep.subr.mxu0 0.0
    %v1223 = vand.u32 %v716, 4294901760
    %1224 = vmatpush1.xpose.msra.mxu0 %v1223
    %1225 = vmatprep.subr.mxu0 0.0
    %v1226 = vand.u32 %v713, 4294901760
    %1227 = vmatpush1.xpose.msra.mxu0 %v1226
    %1228 = vmatprep.subr.mxu0 0.0
    %v1229 = vand.u32 %v710, 4294901760
    %1230 = vmatpush1.xpose.msra.mxu0 %v1229
    %1231 = vmatprep.subr.mxu0 0.0
    %1232 = vmatpush2.xpose.msra.mxu0 0.0
    %1233 = vmatprep.subr.mxu0 0.0
    %1234 = vmatpush2.xpose.msra.mxu0 0.0
    %1235 = vmatprep.subr.mxu0 0.0
    %1236 = vmatpush2.xpose.msra.mxu0 0.0
    %1237 = vmatprep.subr.mxu0 0.0
    %1238 = vmatpush2.xpose.msra.mxu0 0.0
    %1239 = vmatprep.subr.mxu0 0.0
    %1240 = vmatpush2.xpose.msra.mxu0 0.0
    %1241 = vmatprep.subr.mxu0 0.0
    %1242 = vmatpush2.xpose.msra.mxu0 0.0
    %1243 = vmatprep.subr.mxu0 0.0
    %1244 = vmatpush2.xpose.msra.mxu0 0.0
    %1245 = vmatprep.subr.mxu0 0.0
    %1246 = vmatpush2.xpose.msra.mxu0 0.0
    %1247 = vmatprep.subr.mxu0 0.0
    %1248 = vmatpush2.xpose.msra.mxu0 0.0
    %1249 = vmatprep.subr.mxu0 0.0
    %1250 = vmatpush2.xpose.msra.mxu0 0.0
    %1251 = vmatprep.subr.mxu0 0.0
    %1252 = vmatpush2.xpose.msra.mxu0 0.0
    %1253 = vmatprep.subr.mxu0 0.0
    %1254 = vmatpush2.xpose.msra.mxu0 0.0
    %1255 = vmatprep.subr.mxu0 0.0
    %1256 = vmatpush2.xpose.msra.mxu0 0.0
    %1257 = vmatprep.subr.mxu0 0.0
    %1258 = vmatpush2.xpose.msra.mxu0 0.0
    %1259 = vmatprep.subr.mxu0 0.0
    %1260 = vmatpush2.xpose.msra.mxu0 0.0
    %1261 = vmatprep.subr.mxu0 0.0
    %1262 = vmatpush2.xpose.msra.mxu0 0.0
    %1263 = vmatprep.mubr.f32.mxu0 0.0
    %v1264 = vand.u32 %v707, 4294901760
    %1265 = vmatmul.mubr.f32.gmra.mxu0 %v1264
    %v1266 = vpop.f32.mrf.mxu0
    %v1267 = vadd.f32 %v1188, %v1266
    %v1268 = vpop.f32.mrf.mxu0
    %1269 = vdwg.mxu0
    %v1270 = vmax.f32 %v1267, 0.0
    %v1271 = vld [vmem:[#allocation8] sm:$0xff]
    %v1272 = vld [vmem:[#allocation8 + $0x8] sm:$0xff]
    %v1273 = vld [vmem:[#allocation8 + $0x10] sm:$0xff]
    %v1274 = vld [vmem:[#allocation8 + $0x18] sm:$0xff]
    %v1275 = vld [vmem:[%s6] sm:$0x1]
    %v1277 = vlaneseq
    %v1278 = vshrl.u32 %v1277, 7
    %v1279 = vsub.s32 0, %v1278
    %v1280 = vrot.slane %v1275, %v1279
    %vm1282 = vcmask 523264
    %v1284 = vsel %vm1282, %v1270, 0
    %v1287 = vsel %vm1282, %v1271, 0
    %v1290 = vsel %vm1282, %v1272, 0
    %v1293 = vsel %vm1282, %v1273, 0
    %v1296 = vsel %vm1282, %v1274, 0
    %1298 = vmatprep.subr.mxu0 0.0
    %1299 = vmatpush1.xpose.msra.mxu0 0.0
    %1300 = vmatprep.subr.mxu0 0.0
    %1301 = vmatpush1.xpose.msra.mxu0 0.0
    %1302 = vmatprep.subr.mxu0 0.0
    %1303 = vmatpush1.xpose.msra.mxu0 0.0
    %1304 = vmatprep.subr.mxu0 0.0
    %1305 = vmatpush1.xpose.msra.mxu0 0.0
    %1306 = vmatprep.subr.mxu0 0.0
    %1307 = vmatpush1.xpose.msra.mxu0 0.0
    %1308 = vmatprep.subr.mxu0 0.0
    %1309 = vmatpush1.xpose.msra.mxu0 0.0
    %1310 = vmatprep.subr.mxu0 0.0
    %1311 = vmatpush1.xpose.msra.mxu0 0.0
    %1312 = vmatprep.subr.mxu0 0.0
    %1313 = vmatpush1.xpose.msra.mxu0 0.0
    %1314 = vmatprep.subr.mxu0 0.0
    %1315 = vmatpush1.xpose.msra.mxu0 0.0
    %1316 = vmatprep.subr.mxu0 0.0
    %1317 = vmatpush1.xpose.msra.mxu0 0.0
    %1318 = vmatprep.subr.mxu0 0.0
    %1319 = vmatpush1.xpose.msra.mxu0 0.0
    %1320 = vmatprep.subr.mxu0 0.0
    %1321 = vmatpush1.xpose.msra.mxu0 0.0
    %1322 = vmatprep.subr.mxu0 0.0
    %v1323 = vand.u32 %v1296, 4294901760
    %1324 = vmatpush1.xpose.msra.mxu0 %v1323
    %1325 = vmatprep.subr.mxu0 0.0
    %v1326 = vand.u32 %v1293, 4294901760
    %1327 = vmatpush1.xpose.msra.mxu0 %v1326
    %1328 = vmatprep.subr.mxu0 0.0
    %v1329 = vand.u32 %v1290, 4294901760
    %1330 = vmatpush1.xpose.msra.mxu0 %v1329
    %1331 = vmatprep.subr.mxu0 0.0
    %v1332 = vand.u32 %v1287, 4294901760
    %1333 = vmatpush1.xpose.msra.mxu0 %v1332
    %1334 = vmatprep.subr.mxu0 0.0
    %1335 = vmatpush2.xpose.msra.mxu0 0.0
    %1336 = vmatprep.subr.mxu0 0.0
    %1337 = vmatpush2.xpose.msra.mxu0 0.0
    %1338 = vmatprep.subr.mxu0 0.0
    %1339 = vmatpush2.xpose.msra.mxu0 0.0
    %1340 = vmatprep.subr.mxu0 0.0
    %1341 = vmatpush2.xpose.msra.mxu0 0.0
    %1342 = vmatprep.subr.mxu0 0.0
    %1343 = vmatpush2.xpose.msra.mxu0 0.0
    %1344 = vmatprep.subr.mxu0 0.0
    %1345 = vmatpush2.xpose.msra.mxu0 0.0
    %1346 = vmatprep.subr.mxu0 0.0
    %1347 = vmatpush2.xpose.msra.mxu0 0.0
    %1348 = vmatprep.subr.mxu0 0.0
    %1349 = vmatpush2.xpose.msra.mxu0 0.0
    %1350 = vmatprep.subr.mxu0 0.0
    %1351 = vmatpush2.xpose.msra.mxu0 0.0
    %1352 = vmatprep.subr.mxu0 0.0
    %1353 = vmatpush2.xpose.msra.mxu0 0.0
    %1354 = vmatprep.subr.mxu0 0.0
    %1355 = vmatpush2.xpose.msra.mxu0 0.0
    %1356 = vmatprep.subr.mxu0 0.0
    %1357 = vmatpush2.xpose.msra.mxu0 0.0
    %1358 = vmatprep.subr.mxu0 0.0
    %1359 = vmatpush2.xpose.msra.mxu0 0.0
    %1360 = vmatprep.subr.mxu0 0.0
    %1361 = vmatpush2.xpose.msra.mxu0 0.0
    %1362 = vmatprep.subr.mxu0 0.0
    %1363 = vmatpush2.xpose.msra.mxu0 0.0
    %1364 = vmatprep.subr.mxu0 0.0
    %1365 = vmatpush2.xpose.msra.mxu0 0.0
    %1366 = vmatprep.mubr.f32.mxu0 0.0
    %v1367 = vand.u32 %v1284, 4294901760
    %v1368 = vsub.f32 %v1284, %v1367
    %v1369 = vand.u32 %v1368, 4294901760
    %v1370 = vsub.f32 %v1368, %v1369
    %v1371 = vand.u32 %v1370, 4294901760
    %1372 = vmatmul.mubr.f32.gmra.mxu0 %v1371
    %v1373 = vpop.f32.mrf.mxu0
    %v1374 = vadd.f32 %v1280, %v1373
    %v1375 = vpop.f32.mrf.mxu0
    %1376 = vdwg.mxu0
    %1377 = vmatprep.subr.mxu0 0.0
    %1378 = vmatpush1.xpose.msra.mxu0 0.0
    %1379 = vmatprep.subr.mxu0 0.0
    %1380 = vmatpush1.xpose.msra.mxu0 0.0
    %1381 = vmatprep.subr.mxu0 0.0
    %1382 = vmatpush1.xpose.msra.mxu0 0.0
    %1383 = vmatprep.subr.mxu0 0.0
    %1384 = vmatpush1.xpose.msra.mxu0 0.0
    %1385 = vmatprep.subr.mxu0 0.0
    %1386 = vmatpush1.xpose.msra.mxu0 0.0
    %1387 = vmatprep.subr.mxu0 0.0
    %1388 = vmatpush1.xpose.msra.mxu0 0.0
    %1389 = vmatprep.subr.mxu0 0.0
    %1390 = vmatpush1.xpose.msra.mxu0 0.0
    %1391 = vmatprep.subr.mxu0 0.0
    %1392 = vmatpush1.xpose.msra.mxu0 0.0
    %1393 = vmatprep.subr.mxu0 0.0
    %1394 = vmatpush1.xpose.msra.mxu0 0.0
    %1395 = vmatprep.subr.mxu0 0.0
    %1396 = vmatpush1.xpose.msra.mxu0 0.0
    %1397 = vmatprep.subr.mxu0 0.0
    %1398 = vmatpush1.xpose.msra.mxu0 0.0
    %1399 = vmatprep.subr.mxu0 0.0
    %1400 = vmatpush1.xpose.msra.mxu0 0.0
    %1401 = vmatprep.subr.mxu0 0.0
    %v1402 = vand.u32 %v1296, 4294901760
    %v1403 = vsub.f32 %v1296, %v1402
    %v1404 = vand.u32 %v1403, 4294901760
    %v1405 = vsub.f32 %v1403, %v1404
    %v1406 = vand.u32 %v1405, 4294901760
    %1407 = vmatpush1.xpose.msra.mxu0 %v1406
    %1408 = vmatprep.subr.mxu0 0.0
    %v1409 = vand.u32 %v1293, 4294901760
    %v1410 = vsub.f32 %v1293, %v1409
    %v1411 = vand.u32 %v1410, 4294901760
    %v1412 = vsub.f32 %v1410, %v1411
    %v1413 = vand.u32 %v1412, 4294901760
    %1414 = vmatpush1.xpose.msra.mxu0 %v1413
    %1415 = vmatprep.subr.mxu0 0.0
    %v1416 = vand.u32 %v1290, 4294901760
    %v1417 = vsub.f32 %v1290, %v1416
    %v1418 = vand.u32 %v1417, 4294901760
    %v1419 = vsub.f32 %v1417, %v1418
    %v1420 = vand.u32 %v1419, 4294901760
    %1421 = vmatpush1.xpose.msra.mxu0 %v1420
    %1422 = vmatprep.subr.mxu0 0.0
    %v1423 = vand.u32 %v1287, 4294901760
    %v1424 = vsub.f32 %v1287, %v1423
    %v1425 = vand.u32 %v1424, 4294901760
    %v1426 = vsub.f32 %v1424, %v1425
    %v1427 = vand.u32 %v1426, 4294901760
    %1428 = vmatpush1.xpose.msra.mxu0 %v1427
    %1429 = vmatprep.subr.mxu0 0.0
    %1430 = vmatpush2.xpose.msra.mxu0 0.0
    %1431 = vmatprep.subr.mxu0 0.0
    %1432 = vmatpush2.xpose.msra.mxu0 0.0
    %1433 = vmatprep.subr.mxu0 0.0
    %1434 = vmatpush2.xpose.msra.mxu0 0.0
    %1435 = vmatprep.subr.mxu0 0.0
    %1436 = vmatpush2.xpose.msra.mxu0 0.0
    %1437 = vmatprep.subr.mxu0 0.0
    %1438 = vmatpush2.xpose.msra.mxu0 0.0
    %1439 = vmatprep.subr.mxu0 0.0
    %1440 = vmatpush2.xpose.msra.mxu0 0.0
    %1441 = vmatprep.subr.mxu0 0.0
    %1442 = vmatpush2.xpose.msra.mxu0 0.0
    %1443 = vmatprep.subr.mxu0 0.0
    %1444 = vmatpush2.xpose.msra.mxu0 0.0
    %1445 = vmatprep.subr.mxu0 0.0
    %1446 = vmatpush2.xpose.msra.mxu0 0.0
    %1447 = vmatprep.subr.mxu0 0.0
    %1448 = vmatpush2.xpose.msra.mxu0 0.0
    %1449 = vmatprep.subr.mxu0 0.0
    %1450 = vmatpush2.xpose.msra.mxu0 0.0
    %1451 = vmatprep.subr.mxu0 0.0
    %1452 = vmatpush2.xpose.msra.mxu0 0.0
    %1453 = vmatprep.subr.mxu0 0.0
    %1454 = vmatpush2.xpose.msra.mxu0 0.0
    %1455 = vmatprep.subr.mxu0 0.0
    %1456 = vmatpush2.xpose.msra.mxu0 0.0
    %1457 = vmatprep.subr.mxu0 0.0
    %1458 = vmatpush2.xpose.msra.mxu0 0.0
    %1459 = vmatprep.subr.mxu0 0.0
    %1460 = vmatpush2.xpose.msra.mxu0 0.0
    %1461 = vmatprep.mubr.f32.mxu0 0.0
    %v1462 = vand.u32 %v1284, 4294901760
    %1463 = vmatmul.mubr.f32.gmra.mxu0 %v1462
    %v1464 = vpop.f32.mrf.mxu0
    %v1465 = vadd.f32 %v1374, %v1464
    %v1466 = vpop.f32.mrf.mxu0
    %1467 = vdwg.mxu0
    %1468 = vmatprep.subr.mxu0 0.0
    %1469 = vmatpush1.xpose.msra.mxu0 0.0
    %1470 = vmatprep.subr.mxu0 0.0
    %1471 = vmatpush1.xpose.msra.mxu0 0.0
    %1472 = vmatprep.subr.mxu0 0.0
    %1473 = vmatpush1.xpose.msra.mxu0 0.0
    %1474 = vmatprep.subr.mxu0 0.0
    %1475 = vmatpush1.xpose.msra.mxu0 0.0
    %1476 = vmatprep.subr.mxu0 0.0
    %1477 = vmatpush1.xpose.msra.mxu0 0.0
    %1478 = vmatprep.subr.mxu0 0.0
    %1479 = vmatpush1.xpose.msra.mxu0 0.0
    %1480 = vmatprep.subr.mxu0 0.0
    %1481 = vmatpush1.xpose.msra.mxu0 0.0
    %1482 = vmatprep.subr.mxu0 0.0
    %1483 = vmatpush1.xpose.msra.mxu0 0.0
    %1484 = vmatprep.subr.mxu0 0.0
    %1485 = vmatpush1.xpose.msra.mxu0 0.0
    %1486 = vmatprep.subr.mxu0 0.0
    %1487 = vmatpush1.xpose.msra.mxu0 0.0
    %1488 = vmatprep.subr.mxu0 0.0
    %1489 = vmatpush1.xpose.msra.mxu0 0.0
    %1490 = vmatprep.subr.mxu0 0.0
    %1491 = vmatpush1.xpose.msra.mxu0 0.0
    %1492 = vmatprep.subr.mxu0 0.0
    %v1493 = vand.u32 %v1296, 4294901760
    %v1494 = vsub.f32 %v1296, %v1493
    %1495 = vmatpush1.xpose.msra.mxu0 %v1494
    %1496 = vmatprep.subr.mxu0 0.0
    %v1497 = vand.u32 %v1293, 4294901760
    %v1498 = vsub.f32 %v1293, %v1497
    %1499 = vmatpush1.xpose.msra.mxu0 %v1498
    %1500 = vmatprep.subr.mxu0 0.0
    %v1501 = vand.u32 %v1290, 4294901760
    %v1502 = vsub.f32 %v1290, %v1501
    %1503 = vmatpush1.xpose.msra.mxu0 %v1502
    %1504 = vmatprep.subr.mxu0 0.0
    %v1505 = vand.u32 %v1287, 4294901760
    %v1506 = vsub.f32 %v1287, %v1505
    %1507 = vmatpush1.xpose.msra.mxu0 %v1506
    %1508 = vmatprep.subr.mxu0 0.0
    %1509 = vmatpush2.xpose.msra.mxu0 0.0
    %1510 = vmatprep.subr.mxu0 0.0
    %1511 = vmatpush2.xpose.msra.mxu0 0.0
    %1512 = vmatprep.subr.mxu0 0.0
    %1513 = vmatpush2.xpose.msra.mxu0 0.0
    %1514 = vmatprep.subr.mxu0 0.0
    %1515 = vmatpush2.xpose.msra.mxu0 0.0
    %1516 = vmatprep.subr.mxu0 0.0
    %1517 = vmatpush2.xpose.msra.mxu0 0.0
    %1518 = vmatprep.subr.mxu0 0.0
    %1519 = vmatpush2.xpose.msra.mxu0 0.0
    %1520 = vmatprep.subr.mxu0 0.0
    %1521 = vmatpush2.xpose.msra.mxu0 0.0
    %1522 = vmatprep.subr.mxu0 0.0
    %1523 = vmatpush2.xpose.msra.mxu0 0.0
    %1524 = vmatprep.subr.mxu0 0.0
    %1525 = vmatpush2.xpose.msra.mxu0 0.0
    %1526 = vmatprep.subr.mxu0 0.0
    %1527 = vmatpush2.xpose.msra.mxu0 0.0
    %1528 = vmatprep.subr.mxu0 0.0
    %1529 = vmatpush2.xpose.msra.mxu0 0.0
    %1530 = vmatprep.subr.mxu0 0.0
    %1531 = vmatpush2.xpose.msra.mxu0 0.0
    %1532 = vmatprep.subr.mxu0 0.0
    %1533 = vmatpush2.xpose.msra.mxu0 0.0
    %1534 = vmatprep.subr.mxu0 0.0
    %1535 = vmatpush2.xpose.msra.mxu0 0.0
    %1536 = vmatprep.subr.mxu0 0.0
    %1537 = vmatpush2.xpose.msra.mxu0 0.0
    %1538 = vmatprep.subr.mxu0 0.0
    %1539 = vmatpush2.xpose.msra.mxu0 0.0
    %1540 = vmatprep.mubr.f32.mxu0 0.0
    %v1541 = vand.u32 %v1284, 4294901760
    %v1542 = vsub.f32 %v1284, %v1541
    %1543 = vmatmul.mubr.f32.gmra.mxu0 %v1542
    %v1544 = vpop.f32.mrf.mxu0
    %v1545 = vadd.f32 %v1465, %v1544
    %v1546 = vpop.f32.mrf.mxu0
    %1547 = vdwg.mxu0
    %1548 = vmatprep.subr.mxu0 0.0
    %1549 = vmatpush1.xpose.msra.mxu0 0.0
    %1550 = vmatprep.subr.mxu0 0.0
    %1551 = vmatpush1.xpose.msra.mxu0 0.0
    %1552 = vmatprep.subr.mxu0 0.0
    %1553 = vmatpush1.xpose.msra.mxu0 0.0
    %1554 = vmatprep.subr.mxu0 0.0
    %1555 = vmatpush1.xpose.msra.mxu0 0.0
    %1556 = vmatprep.subr.mxu0 0.0
    %1557 = vmatpush1.xpose.msra.mxu0 0.0
    %1558 = vmatprep.subr.mxu0 0.0
    %1559 = vmatpush1.xpose.msra.mxu0 0.0
    %1560 = vmatprep.subr.mxu0 0.0
    %1561 = vmatpush1.xpose.msra.mxu0 0.0
    %1562 = vmatprep.subr.mxu0 0.0
    %1563 = vmatpush1.xpose.msra.mxu0 0.0
    %1564 = vmatprep.subr.mxu0 0.0
    %1565 = vmatpush1.xpose.msra.mxu0 0.0
    %1566 = vmatprep.subr.mxu0 0.0
    %1567 = vmatpush1.xpose.msra.mxu0 0.0
    %1568 = vmatprep.subr.mxu0 0.0
    %1569 = vmatpush1.xpose.msra.mxu0 0.0
    %1570 = vmatprep.subr.mxu0 0.0
    %1571 = vmatpush1.xpose.msra.mxu0 0.0
    %1572 = vmatprep.subr.mxu0 0.0
    %v1573 = vand.u32 %v1296, 4294901760
    %1574 = vmatpush1.xpose.msra.mxu0 %v1573
    %1575 = vmatprep.subr.mxu0 0.0
    %v1576 = vand.u32 %v1293, 4294901760
    %1577 = vmatpush1.xpose.msra.mxu0 %v1576
    %1578 = vmatprep.subr.mxu0 0.0
    %v1579 = vand.u32 %v1290, 4294901760
    %1580 = vmatpush1.xpose.msra.mxu0 %v1579
    %1581 = vmatprep.subr.mxu0 0.0
    %v1582 = vand.u32 %v1287, 4294901760
    %1583 = vmatpush1.xpose.msra.mxu0 %v1582
    %1584 = vmatprep.subr.mxu0 0.0
    %1585 = vmatpush2.xpose.msra.mxu0 0.0
    %1586 = vmatprep.subr.mxu0 0.0
    %1587 = vmatpush2.xpose.msra.mxu0 0.0
    %1588 = vmatprep.subr.mxu0 0.0
    %1589 = vmatpush2.xpose.msra.mxu0 0.0
    %1590 = vmatprep.subr.mxu0 0.0
    %1591 = vmatpush2.xpose.msra.mxu0 0.0
    %1592 = vmatprep.subr.mxu0 0.0
    %1593 = vmatpush2.xpose.msra.mxu0 0.0
    %1594 = vmatprep.subr.mxu0 0.0
    %1595 = vmatpush2.xpose.msra.mxu0 0.0
    %1596 = vmatprep.subr.mxu0 0.0
    %1597 = vmatpush2.xpose.msra.mxu0 0.0
    %1598 = vmatprep.subr.mxu0 0.0
    %1599 = vmatpush2.xpose.msra.mxu0 0.0
    %1600 = vmatprep.subr.mxu0 0.0
    %1601 = vmatpush2.xpose.msra.mxu0 0.0
    %1602 = vmatprep.subr.mxu0 0.0
    %1603 = vmatpush2.xpose.msra.mxu0 0.0
    %1604 = vmatprep.subr.mxu0 0.0
    %1605 = vmatpush2.xpose.msra.mxu0 0.0
    %1606 = vmatprep.subr.mxu0 0.0
    %1607 = vmatpush2.xpose.msra.mxu0 0.0
    %1608 = vmatprep.subr.mxu0 0.0
    %1609 = vmatpush2.xpose.msra.mxu0 0.0
    %1610 = vmatprep.subr.mxu0 0.0
    %1611 = vmatpush2.xpose.msra.mxu0 0.0
    %1612 = vmatprep.subr.mxu0 0.0
    %1613 = vmatpush2.xpose.msra.mxu0 0.0
    %1614 = vmatprep.subr.mxu0 0.0
    %1615 = vmatpush2.xpose.msra.mxu0 0.0
    %1616 = vmatprep.mubr.f32.mxu0 0.0
    %v1617 = vand.u32 %v1284, 4294901760
    %v1618 = vsub.f32 %v1284, %v1617
    %v1619 = vand.u32 %v1618, 4294901760
    %1620 = vmatmul.mubr.f32.gmra.mxu0 %v1619
    %v1621 = vpop.f32.mrf.mxu0
    %v1622 = vadd.f32 %v1545, %v1621
    %v1623 = vpop.f32.mrf.mxu0
    %1624 = vdwg.mxu0
    %1625 = vmatprep.subr.mxu0 0.0
    %1626 = vmatpush1.xpose.msra.mxu0 0.0
    %1627 = vmatprep.subr.mxu0 0.0
    %1628 = vmatpush1.xpose.msra.mxu0 0.0
    %1629 = vmatprep.subr.mxu0 0.0
    %1630 = vmatpush1.xpose.msra.mxu0 0.0
    %1631 = vmatprep.subr.mxu0 0.0
    %1632 = vmatpush1.xpose.msra.mxu0 0.0
    %1633 = vmatprep.subr.mxu0 0.0
    %1634 = vmatpush1.xpose.msra.mxu0 0.0
    %1635 = vmatprep.subr.mxu0 0.0
    %1636 = vmatpush1.xpose.msra.mxu0 0.0
    %1637 = vmatprep.subr.mxu0 0.0
    %1638 = vmatpush1.xpose.msra.mxu0 0.0
    %1639 = vmatprep.subr.mxu0 0.0
    %1640 = vmatpush1.xpose.msra.mxu0 0.0
    %1641 = vmatprep.subr.mxu0 0.0
    %1642 = vmatpush1.xpose.msra.mxu0 0.0
    %1643 = vmatprep.subr.mxu0 0.0
    %1644 = vmatpush1.xpose.msra.mxu0 0.0
    %1645 = vmatprep.subr.mxu0 0.0
    %1646 = vmatpush1.xpose.msra.mxu0 0.0
    %1647 = vmatprep.subr.mxu0 0.0
    %1648 = vmatpush1.xpose.msra.mxu0 0.0
    %1649 = vmatprep.subr.mxu0 0.0
    %v1650 = vand.u32 %v1296, 4294901760
    %v1651 = vsub.f32 %v1296, %v1650
    %v1652 = vand.u32 %v1651, 4294901760
    %1653 = vmatpush1.xpose.msra.mxu0 %v1652
    %1654 = vmatprep.subr.mxu0 0.0
    %v1655 = vand.u32 %v1293, 4294901760
    %v1656 = vsub.f32 %v1293, %v1655
    %v1657 = vand.u32 %v1656, 4294901760
    %1658 = vmatpush1.xpose.msra.mxu0 %v1657
    %1659 = vmatprep.subr.mxu0 0.0
    %v1660 = vand.u32 %v1290, 4294901760
    %v1661 = vsub.f32 %v1290, %v1660
    %v1662 = vand.u32 %v1661, 4294901760
    %1663 = vmatpush1.xpose.msra.mxu0 %v1662
    %1664 = vmatprep.subr.mxu0 0.0
    %v1665 = vand.u32 %v1287, 4294901760
    %v1666 = vsub.f32 %v1287, %v1665
    %v1667 = vand.u32 %v1666, 4294901760
    %1668 = vmatpush1.xpose.msra.mxu0 %v1667
    %1669 = vmatprep.subr.mxu0 0.0
    %1670 = vmatpush2.xpose.msra.mxu0 0.0
    %1671 = vmatprep.subr.mxu0 0.0
    %1672 = vmatpush2.xpose.msra.mxu0 0.0
    %1673 = vmatprep.subr.mxu0 0.0
    %1674 = vmatpush2.xpose.msra.mxu0 0.0
    %1675 = vmatprep.subr.mxu0 0.0
    %1676 = vmatpush2.xpose.msra.mxu0 0.0
    %1677 = vmatprep.subr.mxu0 0.0
    %1678 = vmatpush2.xpose.msra.mxu0 0.0
    %1679 = vmatprep.subr.mxu0 0.0
    %1680 = vmatpush2.xpose.msra.mxu0 0.0
    %1681 = vmatprep.subr.mxu0 0.0
    %1682 = vmatpush2.xpose.msra.mxu0 0.0
    %1683 = vmatprep.subr.mxu0 0.0
    %1684 = vmatpush2.xpose.msra.mxu0 0.0
    %1685 = vmatprep.subr.mxu0 0.0
    %1686 = vmatpush2.xpose.msra.mxu0 0.0
    %1687 = vmatprep.subr.mxu0 0.0
    %1688 = vmatpush2.xpose.msra.mxu0 0.0
    %1689 = vmatprep.subr.mxu0 0.0
    %1690 = vmatpush2.xpose.msra.mxu0 0.0
    %1691 = vmatprep.subr.mxu0 0.0
    %1692 = vmatpush2.xpose.msra.mxu0 0.0
    %1693 = vmatprep.subr.mxu0 0.0
    %1694 = vmatpush2.xpose.msra.mxu0 0.0
    %1695 = vmatprep.subr.mxu0 0.0
    %1696 = vmatpush2.xpose.msra.mxu0 0.0
    %1697 = vmatprep.subr.mxu0 0.0
    %1698 = vmatpush2.xpose.msra.mxu0 0.0
    %1699 = vmatprep.subr.mxu0 0.0
    %1700 = vmatpush2.xpose.msra.mxu0 0.0
    %1701 = vmatprep.mubr.f32.mxu0 0.0
    %v1702 = vand.u32 %v1284, 4294901760
    %1703 = vmatmul.mubr.f32.gmra.mxu0 %v1702
    %v1704 = vpop.f32.mrf.mxu0
    %v1705 = vadd.f32 %v1622, %v1704
    %v1706 = vpop.f32.mrf.mxu0
    %1707 = vdwg.mxu0
    %1708 = vmatprep.subr.mxu0 0.0
    %1709 = vmatpush1.xpose.msra.mxu0 0.0
    %1710 = vmatprep.subr.mxu0 0.0
    %1711 = vmatpush1.xpose.msra.mxu0 0.0
    %1712 = vmatprep.subr.mxu0 0.0
    %1713 = vmatpush1.xpose.msra.mxu0 0.0
    %1714 = vmatprep.subr.mxu0 0.0
    %1715 = vmatpush1.xpose.msra.mxu0 0.0
    %1716 = vmatprep.subr.mxu0 0.0
    %1717 = vmatpush1.xpose.msra.mxu0 0.0
    %1718 = vmatprep.subr.mxu0 0.0
    %1719 = vmatpush1.xpose.msra.mxu0 0.0
    %1720 = vmatprep.subr.mxu0 0.0
    %1721 = vmatpush1.xpose.msra.mxu0 0.0
    %1722 = vmatprep.subr.mxu0 0.0
    %1723 = vmatpush1.xpose.msra.mxu0 0.0
    %1724 = vmatprep.subr.mxu0 0.0
    %1725 = vmatpush1.xpose.msra.mxu0 0.0
    %1726 = vmatprep.subr.mxu0 0.0
    %1727 = vmatpush1.xpose.msra.mxu0 0.0
    %1728 = vmatprep.subr.mxu0 0.0
    %1729 = vmatpush1.xpose.msra.mxu0 0.0
    %1730 = vmatprep.subr.mxu0 0.0
    %1731 = vmatpush1.xpose.msra.mxu0 0.0
    %1732 = vmatprep.subr.mxu0 0.0
    %v1733 = vand.u32 %v1296, 4294901760
    %1734 = vmatpush1.xpose.msra.mxu0 %v1733
    %1735 = vmatprep.subr.mxu0 0.0
    %v1736 = vand.u32 %v1293, 4294901760
    %1737 = vmatpush1.xpose.msra.mxu0 %v1736
    %1738 = vmatprep.subr.mxu0 0.0
    %v1739 = vand.u32 %v1290, 4294901760
    %1740 = vmatpush1.xpose.msra.mxu0 %v1739
    %1741 = vmatprep.subr.mxu0 0.0
    %v1742 = vand.u32 %v1287, 4294901760
    %1743 = vmatpush1.xpose.msra.mxu0 %v1742
    %1744 = vmatprep.subr.mxu0 0.0
    %1745 = vmatpush2.xpose.msra.mxu0 0.0
    %1746 = vmatprep.subr.mxu0 0.0
    %1747 = vmatpush2.xpose.msra.mxu0 0.0
    %1748 = vmatprep.subr.mxu0 0.0
    %1749 = vmatpush2.xpose.msra.mxu0 0.0
    %1750 = vmatprep.subr.mxu0 0.0
    %1751 = vmatpush2.xpose.msra.mxu0 0.0
    %1752 = vmatprep.subr.mxu0 0.0
    %1753 = vmatpush2.xpose.msra.mxu0 0.0
    %1754 = vmatprep.subr.mxu0 0.0
    %1755 = vmatpush2.xpose.msra.mxu0 0.0
    %1756 = vmatprep.subr.mxu0 0.0
    %1757 = vmatpush2.xpose.msra.mxu0 0.0
    %1758 = vmatprep.subr.mxu0 0.0
    %1759 = vmatpush2.xpose.msra.mxu0 0.0
    %1760 = vmatprep.subr.mxu0 0.0
    %1761 = vmatpush2.xpose.msra.mxu0 0.0
    %1762 = vmatprep.subr.mxu0 0.0
    %1763 = vmatpush2.xpose.msra.mxu0 0.0
    %1764 = vmatprep.subr.mxu0 0.0
    %1765 = vmatpush2.xpose.msra.mxu0 0.0
    %1766 = vmatprep.subr.mxu0 0.0
    %1767 = vmatpush2.xpose.msra.mxu0 0.0
    %1768 = vmatprep.subr.mxu0 0.0
    %1769 = vmatpush2.xpose.msra.mxu0 0.0
    %1770 = vmatprep.subr.mxu0 0.0
    %1771 = vmatpush2.xpose.msra.mxu0 0.0
    %1772 = vmatprep.subr.mxu0 0.0
    %1773 = vmatpush2.xpose.msra.mxu0 0.0
    %1774 = vmatprep.subr.mxu0 0.0
    %1775 = vmatpush2.xpose.msra.mxu0 0.0
    %1776 = vmatprep.mubr.f32.mxu0 0.0
    %v1777 = vand.u32 %v1284, 4294901760
    %1778 = vmatmul.mubr.f32.gmra.mxu0 %v1777
    %v1779 = vpop.f32.mrf.mxu0
    %v1780 = vadd.f32 %v1705, %v1779
    %v1781 = vpop.f32.mrf.mxu0
    %1782 = vdwg.mxu0
    %v1783 = vmax.f32 %v1780, 0.0
    %vm1784 = vcmask 261120
    %v1786 = vsel %vm1784, %v1783, 0
    %1788 = vmatprep.subr.mxu0 0.0
    %1789 = vmatpush1.msra.mxu0 0.0
    %1790 = vmatprep.subr.mxu0 0.0
    %1791 = vmatpush1.msra.mxu0 0.0
    %1792 = vmatprep.subr.mxu0 0.0
    %1793 = vmatpush1.msra.mxu0 0.0
    %1794 = vmatprep.subr.mxu0 0.0
    %1795 = vmatpush1.msra.mxu0 0.0
    %1796 = vmatprep.subr.mxu0 0.0
    %1797 = vmatpush1.msra.mxu0 0.0
    %1798 = vmatprep.subr.mxu0 0.0
    %1799 = vmatpush1.msra.mxu0 0.0
    %1800 = vmatprep.subr.mxu0 0.0
    %1801 = vmatpush1.msra.mxu0 0.0
    %1802 = vmatprep.subr.mxu0 0.0
    %1803 = vmatpush1.msra.mxu0 0.0
    %1804 = vmatprep.subr.mxu0 0.0
    %1805 = vmatpush1.msra.mxu0 0.0
    %1806 = vmatprep.subr.mxu0 0.0
    %1807 = vmatpush1.msra.mxu0 0.0
    %1808 = vmatprep.subr.mxu0 0.0
    %1809 = vmatpush1.msra.mxu0 0.0
    %1810 = vmatprep.subr.mxu0 0.0
    %1811 = vmatpush1.msra.mxu0 0.0
    %1812 = vmatprep.subr.mxu0 0.0
    %v1813 = vand.u32 %v1274, 4294901760
    %1814 = vmatpush1.msra.mxu0 %v1813
    %1815 = vmatprep.subr.mxu0 0.0
    %v1816 = vand.u32 %v1273, 4294901760
    %1817 = vmatpush1.msra.mxu0 %v1816
    %1818 = vmatprep.subr.mxu0 0.0
    %v1819 = vand.u32 %v1272, 4294901760
    %1820 = vmatpush1.msra.mxu0 %v1819
    %1821 = vmatprep.subr.mxu0 0.0
    %v1822 = vand.u32 %v1271, 4294901760
    %1823 = vmatpush1.msra.mxu0 %v1822
    %1824 = vmatprep.subr.mxu0 0.0
    %1825 = vmatpush2.msra.mxu0 0.0
    %1826 = vmatprep.subr.mxu0 0.0
    %1827 = vmatpush2.msra.mxu0 0.0
    %1828 = vmatprep.subr.mxu0 0.0
    %1829 = vmatpush2.msra.mxu0 0.0
    %1830 = vmatprep.subr.mxu0 0.0
    %1831 = vmatpush2.msra.mxu0 0.0
    %1832 = vmatprep.subr.mxu0 0.0
    %1833 = vmatpush2.msra.mxu0 0.0
    %1834 = vmatprep.subr.mxu0 0.0
    %1835 = vmatpush2.msra.mxu0 0.0
    %1836 = vmatprep.subr.mxu0 0.0
    %1837 = vmatpush2.msra.mxu0 0.0
    %1838 = vmatprep.subr.mxu0 0.0
    %1839 = vmatpush2.msra.mxu0 0.0
    %1840 = vmatprep.subr.mxu0 0.0
    %1841 = vmatpush2.msra.mxu0 0.0
    %1842 = vmatprep.subr.mxu0 0.0
    %1843 = vmatpush2.msra.mxu0 0.0
    %1844 = vmatprep.subr.mxu0 0.0
    %1845 = vmatpush2.msra.mxu0 0.0
    %1846 = vmatprep.subr.mxu0 0.0
    %1847 = vmatpush2.msra.mxu0 0.0
    %1848 = vmatprep.subr.mxu0 0.0
    %1849 = vmatpush2.msra.mxu0 0.0
    %1850 = vmatprep.subr.mxu0 0.0
    %1851 = vmatpush2.msra.mxu0 0.0
    %1852 = vmatprep.subr.mxu0 0.0
    %1853 = vmatpush2.msra.mxu0 0.0
    %1854 = vmatprep.subr.mxu0 0.0
    %1855 = vmatpush2.msra.mxu0 0.0
    %1856 = vmatprep.mubr.f32.mxu0 0.0
    %v1857 = vand.u32 %v1786, 4294901760
    %v1858 = vsub.f32 %v1786, %v1857
    %v1859 = vand.u32 %v1858, 4294901760
    %v1860 = vsub.f32 %v1858, %v1859
    %v1861 = vand.u32 %v1860, 4294901760
    %1862 = vmatmul.mubr.f32.gmra.mxu0 %v1861
    %v1863 = vpop.f32.mrf.mxu0
    %v1864 = vadd.f32 0.0, %v1863
    %v1865 = vpop.f32.mrf.mxu0
    %1866 = vdwg.mxu0
    %1867 = vmatprep.subr.mxu0 0.0
    %1868 = vmatpush1.msra.mxu0 0.0
    %1869 = vmatprep.subr.mxu0 0.0
    %1870 = vmatpush1.msra.mxu0 0.0
    %1871 = vmatprep.subr.mxu0 0.0
    %1872 = vmatpush1.msra.mxu0 0.0
    %1873 = vmatprep.subr.mxu0 0.0
    %1874 = vmatpush1.msra.mxu0 0.0
    %1875 = vmatprep.subr.mxu0 0.0
    %1876 = vmatpush1.msra.mxu0 0.0
    %1877 = vmatprep.subr.mxu0 0.0
    %1878 = vmatpush1.msra.mxu0 0.0
    %1879 = vmatprep.subr.mxu0 0.0
    %1880 = vmatpush1.msra.mxu0 0.0
    %1881 = vmatprep.subr.mxu0 0.0
    %1882 = vmatpush1.msra.mxu0 0.0
    %1883 = vmatprep.subr.mxu0 0.0
    %1884 = vmatpush1.msra.mxu0 0.0
    %1885 = vmatprep.subr.mxu0 0.0
    %1886 = vmatpush1.msra.mxu0 0.0
    %1887 = vmatprep.subr.mxu0 0.0
    %1888 = vmatpush1.msra.mxu0 0.0
    %1889 = vmatprep.subr.mxu0 0.0
    %1890 = vmatpush1.msra.mxu0 0.0
    %1891 = vmatprep.subr.mxu0 0.0
    %v1892 = vand.u32 %v1274, 4294901760
    %v1893 = vsub.f32 %v1274, %v1892
    %v1894 = vand.u32 %v1893, 4294901760
    %v1895 = vsub.f32 %v1893, %v1894
    %v1896 = vand.u32 %v1895, 4294901760
    %1897 = vmatpush1.msra.mxu0 %v1896
    %1898 = vmatprep.subr.mxu0 0.0
    %v1899 = vand.u32 %v1273, 4294901760
    %v1900 = vsub.f32 %v1273, %v1899
    %v1901 = vand.u32 %v1900, 4294901760
    %v1902 = vsub.f32 %v1900, %v1901
    %v1903 = vand.u32 %v1902, 4294901760
    %1904 = vmatpush1.msra.mxu0 %v1903
    %1905 = vmatprep.subr.mxu0 0.0
    %v1906 = vand.u32 %v1272, 4294901760
    %v1907 = vsub.f32 %v1272, %v1906
    %v1908 = vand.u32 %v1907, 4294901760
    %v1909 = vsub.f32 %v1907, %v1908
    %v1910 = vand.u32 %v1909, 4294901760
    %1911 = vmatpush1.msra.mxu0 %v1910
    %1912 = vmatprep.subr.mxu0 0.0
    %v1913 = vand.u32 %v1271, 4294901760
    %v1914 = vsub.f32 %v1271, %v1913
    %v1915 = vand.u32 %v1914, 4294901760
    %v1916 = vsub.f32 %v1914, %v1915
    %v1917 = vand.u32 %v1916, 4294901760
    %1918 = vmatpush1.msra.mxu0 %v1917
    %1919 = vmatprep.subr.mxu0 0.0
    %1920 = vmatpush2.msra.mxu0 0.0
    %1921 = vmatprep.subr.mxu0 0.0
    %1922 = vmatpush2.msra.mxu0 0.0
    %1923 = vmatprep.subr.mxu0 0.0
    %1924 = vmatpush2.msra.mxu0 0.0
    %1925 = vmatprep.subr.mxu0 0.0
    %1926 = vmatpush2.msra.mxu0 0.0
    %1927 = vmatprep.subr.mxu0 0.0
    %1928 = vmatpush2.msra.mxu0 0.0
    %1929 = vmatprep.subr.mxu0 0.0
    %1930 = vmatpush2.msra.mxu0 0.0
    %1931 = vmatprep.subr.mxu0 0.0
    %1932 = vmatpush2.msra.mxu0 0.0
    %1933 = vmatprep.subr.mxu0 0.0
    %1934 = vmatpush2.msra.mxu0 0.0
    %1935 = vmatprep.subr.mxu0 0.0
    %1936 = vmatpush2.msra.mxu0 0.0
    %1937 = vmatprep.subr.mxu0 0.0
    %1938 = vmatpush2.msra.mxu0 0.0
    %1939 = vmatprep.subr.mxu0 0.0
    %1940 = vmatpush2.msra.mxu0 0.0
    %1941 = vmatprep.subr.mxu0 0.0
    %1942 = vmatpush2.msra.mxu0 0.0
    %1943 = vmatprep.subr.mxu0 0.0
    %1944 = vmatpush2.msra.mxu0 0.0
    %1945 = vmatprep.subr.mxu0 0.0
    %1946 = vmatpush2.msra.mxu0 0.0
    %1947 = vmatprep.subr.mxu0 0.0
    %1948 = vmatpush2.msra.mxu0 0.0
    %1949 = vmatprep.subr.mxu0 0.0
    %1950 = vmatpush2.msra.mxu0 0.0
    %1951 = vmatprep.mubr.f32.mxu0 0.0
    %v1952 = vand.u32 %v1786, 4294901760
    %1953 = vmatmul.mubr.f32.gmra.mxu0 %v1952
    %v1954 = vpop.f32.mrf.mxu0
    %v1955 = vadd.f32 %v1864, %v1954
    %v1956 = vpop.f32.mrf.mxu0
    %1957 = vdwg.mxu0
    %1958 = vmatprep.subr.mxu0 0.0
    %1959 = vmatpush1.msra.mxu0 0.0
    %1960 = vmatprep.subr.mxu0 0.0
    %1961 = vmatpush1.msra.mxu0 0.0
    %1962 = vmatprep.subr.mxu0 0.0
    %1963 = vmatpush1.msra.mxu0 0.0
    %1964 = vmatprep.subr.mxu0 0.0
    %1965 = vmatpush1.msra.mxu0 0.0
    %1966 = vmatprep.subr.mxu0 0.0
    %1967 = vmatpush1.msra.mxu0 0.0
    %1968 = vmatprep.subr.mxu0 0.0
    %1969 = vmatpush1.msra.mxu0 0.0
    %1970 = vmatprep.subr.mxu0 0.0
    %1971 = vmatpush1.msra.mxu0 0.0
    %1972 = vmatprep.subr.mxu0 0.0
    %1973 = vmatpush1.msra.mxu0 0.0
    %1974 = vmatprep.subr.mxu0 0.0
    %1975 = vmatpush1.msra.mxu0 0.0
    %1976 = vmatprep.subr.mxu0 0.0
    %1977 = vmatpush1.msra.mxu0 0.0
    %1978 = vmatprep.subr.mxu0 0.0
    %1979 = vmatpush1.msra.mxu0 0.0
    %1980 = vmatprep.subr.mxu0 0.0
    %1981 = vmatpush1.msra.mxu0 0.0
    %1982 = vmatprep.subr.mxu0 0.0
    %v1983 = vand.u32 %v1274, 4294901760
    %v1984 = vsub.f32 %v1274, %v1983
    %1985 = vmatpush1.msra.mxu0 %v1984
    %1986 = vmatprep.subr.mxu0 0.0
    %v1987 = vand.u32 %v1273, 4294901760
    %v1988 = vsub.f32 %v1273, %v1987
    %1989 = vmatpush1.msra.mxu0 %v1988
    %1990 = vmatprep.subr.mxu0 0.0
    %v1991 = vand.u32 %v1272, 4294901760
    %v1992 = vsub.f32 %v1272, %v1991
    %1993 = vmatpush1.msra.mxu0 %v1992
    %1994 = vmatprep.subr.mxu0 0.0
    %v1995 = vand.u32 %v1271, 4294901760
    %v1996 = vsub.f32 %v1271, %v1995
    %1997 = vmatpush1.msra.mxu0 %v1996
    %1998 = vmatprep.subr.mxu0 0.0
    %1999 = vmatpush2.msra.mxu0 0.0
    %2000 = vmatprep.subr.mxu0 0.0
    %2001 = vmatpush2.msra.mxu0 0.0
    %2002 = vmatprep.subr.mxu0 0.0
    %2003 = vmatpush2.msra.mxu0 0.0
    %2004 = vmatprep.subr.mxu0 0.0
    %2005 = vmatpush2.msra.mxu0 0.0
    %2006 = vmatprep.subr.mxu0 0.0
    %2007 = vmatpush2.msra.mxu0 0.0
    %2008 = vmatprep.subr.mxu0 0.0
    %2009 = vmatpush2.msra.mxu0 0.0
    %2010 = vmatprep.subr.mxu0 0.0
    %2011 = vmatpush2.msra.mxu0 0.0
    %2012 = vmatprep.subr.mxu0 0.0
    %2013 = vmatpush2.msra.mxu0 0.0
    %2014 = vmatprep.subr.mxu0 0.0
    %2015 = vmatpush2.msra.mxu0 0.0
    %2016 = vmatprep.subr.mxu0 0.0
    %2017 = vmatpush2.msra.mxu0 0.0
    %2018 = vmatprep.subr.mxu0 0.0
    %2019 = vmatpush2.msra.mxu0 0.0
    %2020 = vmatprep.subr.mxu0 0.0
    %2021 = vmatpush2.msra.mxu0 0.0
    %2022 = vmatprep.subr.mxu0 0.0
    %2023 = vmatpush2.msra.mxu0 0.0
    %2024 = vmatprep.subr.mxu0 0.0
    %2025 = vmatpush2.msra.mxu0 0.0
    %2026 = vmatprep.subr.mxu0 0.0
    %2027 = vmatpush2.msra.mxu0 0.0
    %2028 = vmatprep.subr.mxu0 0.0
    %2029 = vmatpush2.msra.mxu0 0.0
    %2030 = vmatprep.mubr.f32.mxu0 0.0
    %v2031 = vand.u32 %v1786, 4294901760
    %v2032 = vsub.f32 %v1786, %v2031
    %2033 = vmatmul.mubr.f32.gmra.mxu0 %v2032
    %v2034 = vpop.f32.mrf.mxu0
    %v2035 = vadd.f32 %v1955, %v2034
    %v2036 = vpop.f32.mrf.mxu0
    %2037 = vdwg.mxu0
    %2038 = vmatprep.subr.mxu0 0.0
    %2039 = vmatpush1.msra.mxu0 0.0
    %2040 = vmatprep.subr.mxu0 0.0
    %2041 = vmatpush1.msra.mxu0 0.0
    %2042 = vmatprep.subr.mxu0 0.0
    %2043 = vmatpush1.msra.mxu0 0.0
    %2044 = vmatprep.subr.mxu0 0.0
    %2045 = vmatpush1.msra.mxu0 0.0
    %2046 = vmatprep.subr.mxu0 0.0
    %2047 = vmatpush1.msra.mxu0 0.0
    %2048 = vmatprep.subr.mxu0 0.0
    %2049 = vmatpush1.msra.mxu0 0.0
    %2050 = vmatprep.subr.mxu0 0.0
    %2051 = vmatpush1.msra.mxu0 0.0
    %2052 = vmatprep.subr.mxu0 0.0
    %2053 = vmatpush1.msra.mxu0 0.0
    %2054 = vmatprep.subr.mxu0 0.0
    %2055 = vmatpush1.msra.mxu0 0.0
    %2056 = vmatprep.subr.mxu0 0.0
    %2057 = vmatpush1.msra.mxu0 0.0
    %2058 = vmatprep.subr.mxu0 0.0
    %2059 = vmatpush1.msra.mxu0 0.0
    %2060 = vmatprep.subr.mxu0 0.0
    %2061 = vmatpush1.msra.mxu0 0.0
    %2062 = vmatprep.subr.mxu0 0.0
    %v2063 = vand.u32 %v1274, 4294901760
    %2064 = vmatpush1.msra.mxu0 %v2063
    %2065 = vmatprep.subr.mxu0 0.0
    %v2066 = vand.u32 %v1273, 4294901760
    %2067 = vmatpush1.msra.mxu0 %v2066
    %2068 = vmatprep.subr.mxu0 0.0
    %v2069 = vand.u32 %v1272, 4294901760
    %2070 = vmatpush1.msra.mxu0 %v2069
    %2071 = vmatprep.subr.mxu0 0.0
    %v2072 = vand.u32 %v1271, 4294901760
    %2073 = vmatpush1.msra.mxu0 %v2072
    %2074 = vmatprep.subr.mxu0 0.0
    %2075 = vmatpush2.msra.mxu0 0.0
    %2076 = vmatprep.subr.mxu0 0.0
    %2077 = vmatpush2.msra.mxu0 0.0
    %2078 = vmatprep.subr.mxu0 0.0
    %2079 = vmatpush2.msra.mxu0 0.0
    %2080 = vmatprep.subr.mxu0 0.0
    %2081 = vmatpush2.msra.mxu0 0.0
    %2082 = vmatprep.subr.mxu0 0.0
    %2083 = vmatpush2.msra.mxu0 0.0
    %2084 = vmatprep.subr.mxu0 0.0
    %2085 = vmatpush2.msra.mxu0 0.0
    %2086 = vmatprep.subr.mxu0 0.0
    %2087 = vmatpush2.msra.mxu0 0.0
    %2088 = vmatprep.subr.mxu0 0.0
    %2089 = vmatpush2.msra.mxu0 0.0
    %2090 = vmatprep.subr.mxu0 0.0
    %2091 = vmatpush2.msra.mxu0 0.0
    %2092 = vmatprep.subr.mxu0 0.0
    %2093 = vmatpush2.msra.mxu0 0.0
    %2094 = vmatprep.subr.mxu0 0.0
    %2095 = vmatpush2.msra.mxu0 0.0
    %2096 = vmatprep.subr.mxu0 0.0
    %2097 = vmatpush2.msra.mxu0 0.0
    %2098 = vmatprep.subr.mxu0 0.0
    %2099 = vmatpush2.msra.mxu0 0.0
    %2100 = vmatprep.subr.mxu0 0.0
    %2101 = vmatpush2.msra.mxu0 0.0
    %2102 = vmatprep.subr.mxu0 0.0
    %2103 = vmatpush2.msra.mxu0 0.0
    %2104 = vmatprep.subr.mxu0 0.0
    %2105 = vmatpush2.msra.mxu0 0.0
    %2106 = vmatprep.mubr.f32.mxu0 0.0
    %v2107 = vand.u32 %v1786, 4294901760
    %v2108 = vsub.f32 %v1786, %v2107
    %v2109 = vand.u32 %v2108, 4294901760
    %2110 = vmatmul.mubr.f32.gmra.mxu0 %v2109
    %v2111 = vpop.f32.mrf.mxu0
    %v2112 = vadd.f32 %v2035, %v2111
    %v2113 = vpop.f32.mrf.mxu0
    %2114 = vdwg.mxu0
    %2115 = vmatprep.subr.mxu0 0.0
    %2116 = vmatpush1.msra.mxu0 0.0
    %2117 = vmatprep.subr.mxu0 0.0
    %2118 = vmatpush1.msra.mxu0 0.0
    %2119 = vmatprep.subr.mxu0 0.0
    %2120 = vmatpush1.msra.mxu0 0.0
    %2121 = vmatprep.subr.mxu0 0.0
    %2122 = vmatpush1.msra.mxu0 0.0
    %2123 = vmatprep.subr.mxu0 0.0
    %2124 = vmatpush1.msra.mxu0 0.0
    %2125 = vmatprep.subr.mxu0 0.0
    %2126 = vmatpush1.msra.mxu0 0.0
    %2127 = vmatprep.subr.mxu0 0.0
    %2128 = vmatpush1.msra.mxu0 0.0
    %2129 = vmatprep.subr.mxu0 0.0
    %2130 = vmatpush1.msra.mxu0 0.0
    %2131 = vmatprep.subr.mxu0 0.0
    %2132 = vmatpush1.msra.mxu0 0.0
    %2133 = vmatprep.subr.mxu0 0.0
    %2134 = vmatpush1.msra.mxu0 0.0
    %2135 = vmatprep.subr.mxu0 0.0
    %2136 = vmatpush1.msra.mxu0 0.0
    %2137 = vmatprep.subr.mxu0 0.0
    %2138 = vmatpush1.msra.mxu0 0.0
    %2139 = vmatprep.subr.mxu0 0.0
    %v2140 = vand.u32 %v1274, 4294901760
    %v2141 = vsub.f32 %v1274, %v2140
    %v2142 = vand.u32 %v2141, 4294901760
    %2143 = vmatpush1.msra.mxu0 %v2142
    %2144 = vmatprep.subr.mxu0 0.0
    %v2145 = vand.u32 %v1273, 4294901760
    %v2146 = vsub.f32 %v1273, %v2145
    %v2147 = vand.u32 %v2146, 4294901760
    %2148 = vmatpush1.msra.mxu0 %v2147
    %2149 = vmatprep.subr.mxu0 0.0
    %v2150 = vand.u32 %v1272, 4294901760
    %v2151 = vsub.f32 %v1272, %v2150
    %v2152 = vand.u32 %v2151, 4294901760
    %2153 = vmatpush1.msra.mxu0 %v2152
    %2154 = vmatprep.subr.mxu0 0.0
    %v2155 = vand.u32 %v1271, 4294901760
    %v2156 = vsub.f32 %v1271, %v2155
    %v2157 = vand.u32 %v2156, 4294901760
    %2158 = vmatpush1.msra.mxu0 %v2157
    %2159 = vmatprep.subr.mxu0 0.0
    %2160 = vmatpush2.msra.mxu0 0.0
    %2161 = vmatprep.subr.mxu0 0.0
    %2162 = vmatpush2.msra.mxu0 0.0
    %2163 = vmatprep.subr.mxu0 0.0
    %2164 = vmatpush2.msra.mxu0 0.0
    %2165 = vmatprep.subr.mxu0 0.0
    %2166 = vmatpush2.msra.mxu0 0.0
    %2167 = vmatprep.subr.mxu0 0.0
    %2168 = vmatpush2.msra.mxu0 0.0
    %2169 = vmatprep.subr.mxu0 0.0
    %2170 = vmatpush2.msra.mxu0 0.0
    %2171 = vmatprep.subr.mxu0 0.0
    %2172 = vmatpush2.msra.mxu0 0.0
    %2173 = vmatprep.subr.mxu0 0.0
    %2174 = vmatpush2.msra.mxu0 0.0
    %2175 = vmatprep.subr.mxu0 0.0
    %2176 = vmatpush2.msra.mxu0 0.0
    %2177 = vmatprep.subr.mxu0 0.0
    %2178 = vmatpush2.msra.mxu0 0.0
    %2179 = vmatprep.subr.mxu0 0.0
    %2180 = vmatpush2.msra.mxu0 0.0
    %2181 = vmatprep.subr.mxu0 0.0
    %2182 = vmatpush2.msra.mxu0 0.0
    %2183 = vmatprep.subr.mxu0 0.0
    %2184 = vmatpush2.msra.mxu0 0.0
    %2185 = vmatprep.subr.mxu0 0.0
    %2186 = vmatpush2.msra.mxu0 0.0
    %2187 = vmatprep.subr.mxu0 0.0
    %2188 = vmatpush2.msra.mxu0 0.0
    %2189 = vmatprep.subr.mxu0 0.0
    %2190 = vmatpush2.msra.mxu0 0.0
    %2191 = vmatprep.mubr.f32.mxu0 0.0
    %v2192 = vand.u32 %v1786, 4294901760
    %2193 = vmatmul.mubr.f32.gmra.mxu0 %v2192
    %v2194 = vpop.f32.mrf.mxu0
    %v2195 = vadd.f32 %v2112, %v2194
    %v2196 = vpop.f32.mrf.mxu0
    %2197 = vdwg.mxu0
    %2198 = vmatprep.subr.mxu0 0.0
    %2199 = vmatpush1.msra.mxu0 0.0
    %2200 = vmatprep.subr.mxu0 0.0
    %2201 = vmatpush1.msra.mxu0 0.0
    %2202 = vmatprep.subr.mxu0 0.0
    %2203 = vmatpush1.msra.mxu0 0.0
    %2204 = vmatprep.subr.mxu0 0.0
    %2205 = vmatpush1.msra.mxu0 0.0
    %2206 = vmatprep.subr.mxu0 0.0
    %2207 = vmatpush1.msra.mxu0 0.0
    %2208 = vmatprep.subr.mxu0 0.0
    %2209 = vmatpush1.msra.mxu0 0.0
    %2210 = vmatprep.subr.mxu0 0.0
    %2211 = vmatpush1.msra.mxu0 0.0
    %2212 = vmatprep.subr.mxu0 0.0
    %2213 = vmatpush1.msra.mxu0 0.0
    %2214 = vmatprep.subr.mxu0 0.0
    %2215 = vmatpush1.msra.mxu0 0.0
    %2216 = vmatprep.subr.mxu0 0.0
    %2217 = vmatpush1.msra.mxu0 0.0
    %2218 = vmatprep.subr.mxu0 0.0
    %2219 = vmatpush1.msra.mxu0 0.0
    %2220 = vmatprep.subr.mxu0 0.0
    %2221 = vmatpush1.msra.mxu0 0.0
    %2222 = vmatprep.subr.mxu0 0.0
    %v2223 = vand.u32 %v1274, 4294901760
    %2224 = vmatpush1.msra.mxu0 %v2223
    %2225 = vmatprep.subr.mxu0 0.0
    %v2226 = vand.u32 %v1273, 4294901760
    %2227 = vmatpush1.msra.mxu0 %v2226
    %2228 = vmatprep.subr.mxu0 0.0
    %v2229 = vand.u32 %v1272, 4294901760
    %2230 = vmatpush1.msra.mxu0 %v2229
    %2231 = vmatprep.subr.mxu0 0.0
    %v2232 = vand.u32 %v1271, 4294901760
    %2233 = vmatpush1.msra.mxu0 %v2232
    %2234 = vmatprep.subr.mxu0 0.0
    %2235 = vmatpush2.msra.mxu0 0.0
    %2236 = vmatprep.subr.mxu0 0.0
    %2237 = vmatpush2.msra.mxu0 0.0
    %2238 = vmatprep.subr.mxu0 0.0
    %2239 = vmatpush2.msra.mxu0 0.0
    %2240 = vmatprep.subr.mxu0 0.0
    %2241 = vmatpush2.msra.mxu0 0.0
    %2242 = vmatprep.subr.mxu0 0.0
    %2243 = vmatpush2.msra.mxu0 0.0
    %2244 = vmatprep.subr.mxu0 0.0
    %2245 = vmatpush2.msra.mxu0 0.0
    %2246 = vmatprep.subr.mxu0 0.0
    %2247 = vmatpush2.msra.mxu0 0.0
    %2248 = vmatprep.subr.mxu0 0.0
    %2249 = vmatpush2.msra.mxu0 0.0
    %2250 = vmatprep.subr.mxu0 0.0
    %2251 = vmatpush2.msra.mxu0 0.0
    %2252 = vmatprep.subr.mxu0 0.0
    %2253 = vmatpush2.msra.mxu0 0.0
    %2254 = vmatprep.subr.mxu0 0.0
    %2255 = vmatpush2.msra.mxu0 0.0
    %2256 = vmatprep.subr.mxu0 0.0
    %2257 = vmatpush2.msra.mxu0 0.0
    %2258 = vmatprep.subr.mxu0 0.0
    %2259 = vmatpush2.msra.mxu0 0.0
    %2260 = vmatprep.subr.mxu0 0.0
    %2261 = vmatpush2.msra.mxu0 0.0
    %2262 = vmatprep.subr.mxu0 0.0
    %2263 = vmatpush2.msra.mxu0 0.0
    %2264 = vmatprep.subr.mxu0 0.0
    %2265 = vmatpush2.msra.mxu0 0.0
    %2266 = vmatprep.mubr.f32.mxu0 0.0
    %v2267 = vand.u32 %v1786, 4294901760
    %2268 = vmatmul.mubr.f32.gmra.mxu0 %v2267
    %v2269 = vpop.f32.mrf.mxu0
    %v2270 = vadd.f32 %v2195, %v2269
    %v2271 = vpop.f32.mrf.mxu0
    %2272 = vdwg.mxu0
    %v2273 = vmax.f32 %v2270, 0.0
    %v2275 = vsel %vm1282, %v2273, 0
    %2277 = vmatprep.subr.mxu0 0.0
    %2278 = vmatpush1.msra.mxu0 0.0
    %2279 = vmatprep.subr.mxu0 0.0
    %2280 = vmatpush1.msra.mxu0 0.0
    %2281 = vmatprep.subr.mxu0 0.0
    %2282 = vmatpush1.msra.mxu0 0.0
    %2283 = vmatprep.subr.mxu0 0.0
    %2284 = vmatpush1.msra.mxu0 0.0
    %2285 = vmatprep.subr.mxu0 0.0
    %2286 = vmatpush1.msra.mxu0 0.0
    %2287 = vmatprep.subr.mxu0 0.0
    %2288 = vmatpush1.msra.mxu0 0.0
    %2289 = vmatprep.subr.mxu0 0.0
    %2290 = vmatpush1.msra.mxu0 0.0
    %2291 = vmatprep.subr.mxu0 0.0
    %2292 = vmatpush1.msra.mxu0 0.0
    %2293 = vmatprep.subr.mxu0 0.0
    %v2294 = vand.u32 %v697, 4294901760
    %2295 = vmatpush1.msra.mxu0 %v2294
    %2296 = vmatprep.subr.mxu0 0.0
    %v2297 = vand.u32 %v696, 4294901760
    %2298 = vmatpush1.msra.mxu0 %v2297
    %2299 = vmatprep.subr.mxu0 0.0
    %v2300 = vand.u32 %v695, 4294901760
    %2301 = vmatpush1.msra.mxu0 %v2300
    %2302 = vmatprep.subr.mxu0 0.0
    %v2303 = vand.u32 %v694, 4294901760
    %2304 = vmatpush1.msra.mxu0 %v2303
    %2305 = vmatprep.subr.mxu0 0.0
    %v2306 = vand.u32 %v693, 4294901760
    %2307 = vmatpush1.msra.mxu0 %v2306
    %2308 = vmatprep.subr.mxu0 0.0
    %v2309 = vand.u32 %v692, 4294901760
    %2310 = vmatpush1.msra.mxu0 %v2309
    %2311 = vmatprep.subr.mxu0 0.0
    %v2312 = vand.u32 %v691, 4294901760
    %2313 = vmatpush1.msra.mxu0 %v2312
    %2314 = vmatprep.subr.mxu0 0.0
    %v2315 = vand.u32 %v690, 4294901760
    %2316 = vmatpush1.msra.mxu0 %v2315
    %2317 = vmatprep.subr.mxu0 0.0
    %2318 = vmatpush2.msra.mxu0 0.0
    %2319 = vmatprep.subr.mxu0 0.0
    %2320 = vmatpush2.msra.mxu0 0.0
    %2321 = vmatprep.subr.mxu0 0.0
    %2322 = vmatpush2.msra.mxu0 0.0
    %2323 = vmatprep.subr.mxu0 0.0
    %2324 = vmatpush2.msra.mxu0 0.0
    %2325 = vmatprep.subr.mxu0 0.0
    %2326 = vmatpush2.msra.mxu0 0.0
    %2327 = vmatprep.subr.mxu0 0.0
    %2328 = vmatpush2.msra.mxu0 0.0
    %2329 = vmatprep.subr.mxu0 0.0
    %2330 = vmatpush2.msra.mxu0 0.0
    %2331 = vmatprep.subr.mxu0 0.0
    %2332 = vmatpush2.msra.mxu0 0.0
    %2333 = vmatprep.subr.mxu0 0.0
    %2334 = vmatpush2.msra.mxu0 0.0
    %2335 = vmatprep.subr.mxu0 0.0
    %2336 = vmatpush2.msra.mxu0 0.0
    %2337 = vmatprep.subr.mxu0 0.0
    %2338 = vmatpush2.msra.mxu0 0.0
    %2339 = vmatprep.subr.mxu0 0.0
    %2340 = vmatpush2.msra.mxu0 0.0
    %2341 = vmatprep.subr.mxu0 0.0
    %2342 = vmatpush2.msra.mxu0 0.0
    %2343 = vmatprep.subr.mxu0 0.0
    %2344 = vmatpush2.msra.mxu0 0.0
    %2345 = vmatprep.subr.mxu0 0.0
    %2346 = vmatpush2.msra.mxu0 0.0
    %2347 = vmatprep.subr.mxu0 0.0
    %2348 = vmatpush2.msra.mxu0 0.0
    %2349 = vmatprep.mubr.f32.mxu0 0.0
    %v2350 = vand.u32 %v2275, 4294901760
    %v2351 = vsub.f32 %v2275, %v2350
    %v2352 = vand.u32 %v2351, 4294901760
    %v2353 = vsub.f32 %v2351, %v2352
    %v2354 = vand.u32 %v2353, 4294901760
    %2355 = vmatmul.mubr.f32.gmra.mxu0 %v2354
    %v2356 = vpop.f32.mrf.mxu0
    %v2357 = vadd.f32 0.0, %v2356
    %v2358 = vpop.f32.mrf.mxu0
    %2359 = vdwg.mxu0
    %2360 = vmatprep.subr.mxu0 0.0
    %2361 = vmatpush1.msra.mxu0 0.0
    %2362 = vmatprep.subr.mxu0 0.0
    %2363 = vmatpush1.msra.mxu0 0.0
    %2364 = vmatprep.subr.mxu0 0.0
    %2365 = vmatpush1.msra.mxu0 0.0
    %2366 = vmatprep.subr.mxu0 0.0
    %2367 = vmatpush1.msra.mxu0 0.0
    %2368 = vmatprep.subr.mxu0 0.0
    %2369 = vmatpush1.msra.mxu0 0.0
    %2370 = vmatprep.subr.mxu0 0.0
    %2371 = vmatpush1.msra.mxu0 0.0
    %2372 = vmatprep.subr.mxu0 0.0
    %2373 = vmatpush1.msra.mxu0 0.0
    %2374 = vmatprep.subr.mxu0 0.0
    %2375 = vmatpush1.msra.mxu0 0.0
    %2376 = vmatprep.subr.mxu0 0.0
    %v2377 = vand.u32 %v697, 4294901760
    %v2378 = vsub.f32 %v697, %v2377
    %v2379 = vand.u32 %v2378, 4294901760
    %v2380 = vsub.f32 %v2378, %v2379
    %v2381 = vand.u32 %v2380, 4294901760
    %2382 = vmatpush1.msra.mxu0 %v2381
    %2383 = vmatprep.subr.mxu0 0.0
    %v2384 = vand.u32 %v696, 4294901760
    %v2385 = vsub.f32 %v696, %v2384
    %v2386 = vand.u32 %v2385, 4294901760
    %v2387 = vsub.f32 %v2385, %v2386
    %v2388 = vand.u32 %v2387, 4294901760
    %2389 = vmatpush1.msra.mxu0 %v2388
    %2390 = vmatprep.subr.mxu0 0.0
    %v2391 = vand.u32 %v695, 4294901760
    %v2392 = vsub.f32 %v695, %v2391
    %v2393 = vand.u32 %v2392, 4294901760
    %v2394 = vsub.f32 %v2392, %v2393
    %v2395 = vand.u32 %v2394, 4294901760
    %2396 = vmatpush1.msra.mxu0 %v2395
    %2397 = vmatprep.subr.mxu0 0.0
    %v2398 = vand.u32 %v694, 4294901760
    %v2399 = vsub.f32 %v694, %v2398
    %v2400 = vand.u32 %v2399, 4294901760
    %v2401 = vsub.f32 %v2399, %v2400
    %v2402 = vand.u32 %v2401, 4294901760
    %2403 = vmatpush1.msra.mxu0 %v2402
    %2404 = vmatprep.subr.mxu0 0.0
    %v2405 = vand.u32 %v693, 4294901760
    %v2406 = vsub.f32 %v693, %v2405
    %v2407 = vand.u32 %v2406, 4294901760
    %v2408 = vsub.f32 %v2406, %v2407
    %v2409 = vand.u32 %v2408, 4294901760
    %2410 = vmatpush1.msra.mxu0 %v2409
    %2411 = vmatprep.subr.mxu0 0.0
    %v2412 = vand.u32 %v692, 4294901760
    %v2413 = vsub.f32 %v692, %v2412
    %v2414 = vand.u32 %v2413, 4294901760
    %v2415 = vsub.f32 %v2413, %v2414
    %v2416 = vand.u32 %v2415, 4294901760
    %2417 = vmatpush1.msra.mxu0 %v2416
    %2418 = vmatprep.subr.mxu0 0.0
    %v2419 = vand.u32 %v691, 4294901760
    %v2420 = vsub.f32 %v691, %v2419
    %v2421 = vand.u32 %v2420, 4294901760
    %v2422 = vsub.f32 %v2420, %v2421
    %v2423 = vand.u32 %v2422, 4294901760
    %2424 = vmatpush1.msra.mxu0 %v2423
    %2425 = vmatprep.subr.mxu0 0.0
    %v2426 = vand.u32 %v690, 4294901760
    %v2427 = vsub.f32 %v690, %v2426
    %v2428 = vand.u32 %v2427, 4294901760
    %v2429 = vsub.f32 %v2427, %v2428
    %v2430 = vand.u32 %v2429, 4294901760
    %2431 = vmatpush1.msra.mxu0 %v2430
    %2432 = vmatprep.subr.mxu0 0.0
    %2433 = vmatpush2.msra.mxu0 0.0
    %2434 = vmatprep.subr.mxu0 0.0
    %2435 = vmatpush2.msra.mxu0 0.0
    %2436 = vmatprep.subr.mxu0 0.0
    %2437 = vmatpush2.msra.mxu0 0.0
    %2438 = vmatprep.subr.mxu0 0.0
    %2439 = vmatpush2.msra.mxu0 0.0
    %2440 = vmatprep.subr.mxu0 0.0
    %2441 = vmatpush2.msra.mxu0 0.0
    %2442 = vmatprep.subr.mxu0 0.0
    %2443 = vmatpush2.msra.mxu0 0.0
    %2444 = vmatprep.subr.mxu0 0.0
    %2445 = vmatpush2.msra.mxu0 0.0
    %2446 = vmatprep.subr.mxu0 0.0
    %2447 = vmatpush2.msra.mxu0 0.0
    %2448 = vmatprep.subr.mxu0 0.0
    %2449 = vmatpush2.msra.mxu0 0.0
    %2450 = vmatprep.subr.mxu0 0.0
    %2451 = vmatpush2.msra.mxu0 0.0
    %2452 = vmatprep.subr.mxu0 0.0
    %2453 = vmatpush2.msra.mxu0 0.0
    %2454 = vmatprep.subr.mxu0 0.0
    %2455 = vmatpush2.msra.mxu0 0.0
    %2456 = vmatprep.subr.mxu0 0.0
    %2457 = vmatpush2.msra.mxu0 0.0
    %2458 = vmatprep.subr.mxu0 0.0
    %2459 = vmatpush2.msra.mxu0 0.0
    %2460 = vmatprep.subr.mxu0 0.0
    %2461 = vmatpush2.msra.mxu0 0.0
    %2462 = vmatprep.subr.mxu0 0.0
    %2463 = vmatpush2.msra.mxu0 0.0
    %2464 = vmatprep.mubr.f32.mxu0 0.0
    %v2465 = vand.u32 %v2275, 4294901760
    %2466 = vmatmul.mubr.f32.gmra.mxu0 %v2465
    %v2467 = vpop.f32.mrf.mxu0
    %v2468 = vadd.f32 %v2357, %v2467
    %v2469 = vpop.f32.mrf.mxu0
    %2470 = vdwg.mxu0
    %2471 = vmatprep.subr.mxu0 0.0
    %2472 = vmatpush1.msra.mxu0 0.0
    %2473 = vmatprep.subr.mxu0 0.0
    %2474 = vmatpush1.msra.mxu0 0.0
    %2475 = vmatprep.subr.mxu0 0.0
    %2476 = vmatpush1.msra.mxu0 0.0
    %2477 = vmatprep.subr.mxu0 0.0
    %2478 = vmatpush1.msra.mxu0 0.0
    %2479 = vmatprep.subr.mxu0 0.0
    %2480 = vmatpush1.msra.mxu0 0.0
    %2481 = vmatprep.subr.mxu0 0.0
    %2482 = vmatpush1.msra.mxu0 0.0
    %2483 = vmatprep.subr.mxu0 0.0
    %2484 = vmatpush1.msra.mxu0 0.0
    %2485 = vmatprep.subr.mxu0 0.0
    %2486 = vmatpush1.msra.mxu0 0.0
    %2487 = vmatprep.subr.mxu0 0.0
    %v2488 = vand.u32 %v697, 4294901760
    %v2489 = vsub.f32 %v697, %v2488
    %2490 = vmatpush1.msra.mxu0 %v2489
    %2491 = vmatprep.subr.mxu0 0.0
    %v2492 = vand.u32 %v696, 4294901760
    %v2493 = vsub.f32 %v696, %v2492
    %2494 = vmatpush1.msra.mxu0 %v2493
    %2495 = vmatprep.subr.mxu0 0.0
    %v2496 = vand.u32 %v695, 4294901760
    %v2497 = vsub.f32 %v695, %v2496
    %2498 = vmatpush1.msra.mxu0 %v2497
    %2499 = vmatprep.subr.mxu0 0.0
    %v2500 = vand.u32 %v694, 4294901760
    %v2501 = vsub.f32 %v694, %v2500
    %2502 = vmatpush1.msra.mxu0 %v2501
    %2503 = vmatprep.subr.mxu0 0.0
    %v2504 = vand.u32 %v693, 4294901760
    %v2505 = vsub.f32 %v693, %v2504
    %2506 = vmatpush1.msra.mxu0 %v2505
    %2507 = vmatprep.subr.mxu0 0.0
    %v2508 = vand.u32 %v692, 4294901760
    %v2509 = vsub.f32 %v692, %v2508
    %2510 = vmatpush1.msra.mxu0 %v2509
    %2511 = vmatprep.subr.mxu0 0.0
    %v2512 = vand.u32 %v691, 4294901760
    %v2513 = vsub.f32 %v691, %v2512
    %2514 = vmatpush1.msra.mxu0 %v2513
    %2515 = vmatprep.subr.mxu0 0.0
    %v2516 = vand.u32 %v690, 4294901760
    %v2517 = vsub.f32 %v690, %v2516
    %2518 = vmatpush1.msra.mxu0 %v2517
    %2519 = vmatprep.subr.mxu0 0.0
    %2520 = vmatpush2.msra.mxu0 0.0
    %2521 = vmatprep.subr.mxu0 0.0
    %2522 = vmatpush2.msra.mxu0 0.0
    %2523 = vmatprep.subr.mxu0 0.0
    %2524 = vmatpush2.msra.mxu0 0.0
    %2525 = vmatprep.subr.mxu0 0.0
    %2526 = vmatpush2.msra.mxu0 0.0
    %2527 = vmatprep.subr.mxu0 0.0
    %2528 = vmatpush2.msra.mxu0 0.0
    %2529 = vmatprep.subr.mxu0 0.0
    %2530 = vmatpush2.msra.mxu0 0.0
    %2531 = vmatprep.subr.mxu0 0.0
    %2532 = vmatpush2.msra.mxu0 0.0
    %2533 = vmatprep.subr.mxu0 0.0
    %2534 = vmatpush2.msra.mxu0 0.0
    %2535 = vmatprep.subr.mxu0 0.0
    %2536 = vmatpush2.msra.mxu0 0.0
    %2537 = vmatprep.subr.mxu0 0.0
    %2538 = vmatpush2.msra.mxu0 0.0
    %2539 = vmatprep.subr.mxu0 0.0
    %2540 = vmatpush2.msra.mxu0 0.0
    %2541 = vmatprep.subr.mxu0 0.0
    %2542 = vmatpush2.msra.mxu0 0.0
    %2543 = vmatprep.subr.mxu0 0.0
    %2544 = vmatpush2.msra.mxu0 0.0
    %2545 = vmatprep.subr.mxu0 0.0
    %2546 = vmatpush2.msra.mxu0 0.0
    %2547 = vmatprep.subr.mxu0 0.0
    %2548 = vmatpush2.msra.mxu0 0.0
    %2549 = vmatprep.subr.mxu0 0.0
    %2550 = vmatpush2.msra.mxu0 0.0
    %2551 = vmatprep.mubr.f32.mxu0 0.0
    %v2552 = vand.u32 %v2275, 4294901760
    %v2553 = vsub.f32 %v2275, %v2552
    %2554 = vmatmul.mubr.f32.gmra.mxu0 %v2553
    %v2555 = vpop.f32.mrf.mxu0
    %v2556 = vadd.f32 %v2468, %v2555
    %v2557 = vpop.f32.mrf.mxu0
    %2558 = vdwg.mxu0
    %2559 = vmatprep.subr.mxu0 0.0
    %2560 = vmatpush1.msra.mxu0 0.0
    %2561 = vmatprep.subr.mxu0 0.0
    %2562 = vmatpush1.msra.mxu0 0.0
    %2563 = vmatprep.subr.mxu0 0.0
    %2564 = vmatpush1.msra.mxu0 0.0
    %2565 = vmatprep.subr.mxu0 0.0
    %2566 = vmatpush1.msra.mxu0 0.0
    %2567 = vmatprep.subr.mxu0 0.0
    %2568 = vmatpush1.msra.mxu0 0.0
    %2569 = vmatprep.subr.mxu0 0.0
    %2570 = vmatpush1.msra.mxu0 0.0
    %2571 = vmatprep.subr.mxu0 0.0
    %2572 = vmatpush1.msra.mxu0 0.0
    %2573 = vmatprep.subr.mxu0 0.0
    %2574 = vmatpush1.msra.mxu0 0.0
    %2575 = vmatprep.subr.mxu0 0.0
    %v2576 = vand.u32 %v697, 4294901760
    %2577 = vmatpush1.msra.mxu0 %v2576
    %2578 = vmatprep.subr.mxu0 0.0
    %v2579 = vand.u32 %v696, 4294901760
    %2580 = vmatpush1.msra.mxu0 %v2579
    %2581 = vmatprep.subr.mxu0 0.0
    %v2582 = vand.u32 %v695, 4294901760
    %2583 = vmatpush1.msra.mxu0 %v2582
    %2584 = vmatprep.subr.mxu0 0.0
    %v2585 = vand.u32 %v694, 4294901760
    %2586 = vmatpush1.msra.mxu0 %v2585
    %2587 = vmatprep.subr.mxu0 0.0
    %v2588 = vand.u32 %v693, 4294901760
    %2589 = vmatpush1.msra.mxu0 %v2588
    %2590 = vmatprep.subr.mxu0 0.0
    %v2591 = vand.u32 %v692, 4294901760
    %2592 = vmatpush1.msra.mxu0 %v2591
    %2593 = vmatprep.subr.mxu0 0.0
    %v2594 = vand.u32 %v691, 4294901760
    %2595 = vmatpush1.msra.mxu0 %v2594
    %2596 = vmatprep.subr.mxu0 0.0
    %v2597 = vand.u32 %v690, 4294901760
    %2598 = vmatpush1.msra.mxu0 %v2597
    %2599 = vmatprep.subr.mxu0 0.0
    %2600 = vmatpush2.msra.mxu0 0.0
    %2601 = vmatprep.subr.mxu0 0.0
    %2602 = vmatpush2.msra.mxu0 0.0
    %2603 = vmatprep.subr.mxu0 0.0
    %2604 = vmatpush2.msra.mxu0 0.0
    %2605 = vmatprep.subr.mxu0 0.0
    %2606 = vmatpush2.msra.mxu0 0.0
    %2607 = vmatprep.subr.mxu0 0.0
    %2608 = vmatpush2.msra.mxu0 0.0
    %2609 = vmatprep.subr.mxu0 0.0
    %2610 = vmatpush2.msra.mxu0 0.0
    %2611 = vmatprep.subr.mxu0 0.0
    %2612 = vmatpush2.msra.mxu0 0.0
    %2613 = vmatprep.subr.mxu0 0.0
    %2614 = vmatpush2.msra.mxu0 0.0
    %2615 = vmatprep.subr.mxu0 0.0
    %2616 = vmatpush2.msra.mxu0 0.0
    %2617 = vmatprep.subr.mxu0 0.0
    %2618 = vmatpush2.msra.mxu0 0.0
    %2619 = vmatprep.subr.mxu0 0.0
    %2620 = vmatpush2.msra.mxu0 0.0
    %2621 = vmatprep.subr.mxu0 0.0
    %2622 = vmatpush2.msra.mxu0 0.0
    %2623 = vmatprep.subr.mxu0 0.0
    %2624 = vmatpush2.msra.mxu0 0.0
    %2625 = vmatprep.subr.mxu0 0.0
    %2626 = vmatpush2.msra.mxu0 0.0
    %2627 = vmatprep.subr.mxu0 0.0
    %2628 = vmatpush2.msra.mxu0 0.0
    %2629 = vmatprep.subr.mxu0 0.0
    %2630 = vmatpush2.msra.mxu0 0.0
    %2631 = vmatprep.mubr.f32.mxu0 0.0
    %v2632 = vand.u32 %v2275, 4294901760
    %v2633 = vsub.f32 %v2275, %v2632
    %v2634 = vand.u32 %v2633, 4294901760
    %2635 = vmatmul.mubr.f32.gmra.mxu0 %v2634
    %v2636 = vpop.f32.mrf.mxu0
    %v2637 = vadd.f32 %v2556, %v2636
    %v2638 = vpop.f32.mrf.mxu0
    %2639 = vdwg.mxu0
    %2640 = vmatprep.subr.mxu0 0.0
    %2641 = vmatpush1.msra.mxu0 0.0
    %2642 = vmatprep.subr.mxu0 0.0
    %2643 = vmatpush1.msra.mxu0 0.0
    %2644 = vmatprep.subr.mxu0 0.0
    %2645 = vmatpush1.msra.mxu0 0.0
    %2646 = vmatprep.subr.mxu0 0.0
    %2647 = vmatpush1.msra.mxu0 0.0
    %2648 = vmatprep.subr.mxu0 0.0
    %2649 = vmatpush1.msra.mxu0 0.0
    %2650 = vmatprep.subr.mxu0 0.0
    %2651 = vmatpush1.msra.mxu0 0.0
    %2652 = vmatprep.subr.mxu0 0.0
    %2653 = vmatpush1.msra.mxu0 0.0
    %2654 = vmatprep.subr.mxu0 0.0
    %2655 = vmatpush1.msra.mxu0 0.0
    %2656 = vmatprep.subr.mxu0 0.0
    %v2657 = vand.u32 %v697, 4294901760
    %v2658 = vsub.f32 %v697, %v2657
    %v2659 = vand.u32 %v2658, 4294901760
    %2660 = vmatpush1.msra.mxu0 %v2659
    %2661 = vmatprep.subr.mxu0 0.0
    %v2662 = vand.u32 %v696, 4294901760
    %v2663 = vsub.f32 %v696, %v2662
    %v2664 = vand.u32 %v2663, 4294901760
    %2665 = vmatpush1.msra.mxu0 %v2664
    %2666 = vmatprep.subr.mxu0 0.0
    %v2667 = vand.u32 %v695, 4294901760
    %v2668 = vsub.f32 %v695, %v2667
    %v2669 = vand.u32 %v2668, 4294901760
    %2670 = vmatpush1.msra.mxu0 %v2669
    %2671 = vmatprep.subr.mxu0 0.0
    %v2672 = vand.u32 %v694, 4294901760
    %v2673 = vsub.f32 %v694, %v2672
    %v2674 = vand.u32 %v2673, 4294901760
    %2675 = vmatpush1.msra.mxu0 %v2674
    %2676 = vmatprep.subr.mxu0 0.0
    %v2677 = vand.u32 %v693, 4294901760
    %v2678 = vsub.f32 %v693, %v2677
    %v2679 = vand.u32 %v2678, 4294901760
    %2680 = vmatpush1.msra.mxu0 %v2679
    %2681 = vmatprep.subr.mxu0 0.0
    %v2682 = vand.u32 %v692, 4294901760
    %v2683 = vsub.f32 %v692, %v2682
    %v2684 = vand.u32 %v2683, 4294901760
    %2685 = vmatpush1.msra.mxu0 %v2684
    %2686 = vmatprep.subr.mxu0 0.0
    %v2687 = vand.u32 %v691, 4294901760
    %v2688 = vsub.f32 %v691, %v2687
    %v2689 = vand.u32 %v2688, 4294901760
    %2690 = vmatpush1.msra.mxu0 %v2689
    %2691 = vmatprep.subr.mxu0 0.0
    %v2692 = vand.u32 %v690, 4294901760
    %v2693 = vsub.f32 %v690, %v2692
    %v2694 = vand.u32 %v2693, 4294901760
    %2695 = vmatpush1.msra.mxu0 %v2694
    %2696 = vmatprep.subr.mxu0 0.0
    %2697 = vmatpush2.msra.mxu0 0.0
    %2698 = vmatprep.subr.mxu0 0.0
    %2699 = vmatpush2.msra.mxu0 0.0
    %2700 = vmatprep.subr.mxu0 0.0
    %2701 = vmatpush2.msra.mxu0 0.0
    %2702 = vmatprep.subr.mxu0 0.0
    %2703 = vmatpush2.msra.mxu0 0.0
    %2704 = vmatprep.subr.mxu0 0.0
    %2705 = vmatpush2.msra.mxu0 0.0
    %2706 = vmatprep.subr.mxu0 0.0
    %2707 = vmatpush2.msra.mxu0 0.0
    %2708 = vmatprep.subr.mxu0 0.0
    %2709 = vmatpush2.msra.mxu0 0.0
    %2710 = vmatprep.subr.mxu0 0.0
    %2711 = vmatpush2.msra.mxu0 0.0
    %2712 = vmatprep.subr.mxu0 0.0
    %2713 = vmatpush2.msra.mxu0 0.0
    %2714 = vmatprep.subr.mxu0 0.0
    %2715 = vmatpush2.msra.mxu0 0.0
    %2716 = vmatprep.subr.mxu0 0.0
    %2717 = vmatpush2.msra.mxu0 0.0
    %2718 = vmatprep.subr.mxu0 0.0
    %2719 = vmatpush2.msra.mxu0 0.0
    %2720 = vmatprep.subr.mxu0 0.0
    %2721 = vmatpush2.msra.mxu0 0.0
    %2722 = vmatprep.subr.mxu0 0.0
    %2723 = vmatpush2.msra.mxu0 0.0
    %2724 = vmatprep.subr.mxu0 0.0
    %2725 = vmatpush2.msra.mxu0 0.0
    %2726 = vmatprep.subr.mxu0 0.0
    %2727 = vmatpush2.msra.mxu0 0.0
    %2728 = vmatprep.mubr.f32.mxu0 0.0
    %v2729 = vand.u32 %v2275, 4294901760
    %2730 = vmatmul.mubr.f32.gmra.mxu0 %v2729
    %v2731 = vpop.f32.mrf.mxu0
    %v2732 = vadd.f32 %v2637, %v2731
    %v2733 = vpop.f32.mrf.mxu0
    %2734 = vdwg.mxu0
    %2735 = vmatprep.subr.mxu0 0.0
    %2736 = vmatpush1.msra.mxu0 0.0
    %2737 = vmatprep.subr.mxu0 0.0
    %2738 = vmatpush1.msra.mxu0 0.0
    %2739 = vmatprep.subr.mxu0 0.0
    %2740 = vmatpush1.msra.mxu0 0.0
    %2741 = vmatprep.subr.mxu0 0.0
    %2742 = vmatpush1.msra.mxu0 0.0
    %2743 = vmatprep.subr.mxu0 0.0
    %2744 = vmatpush1.msra.mxu0 0.0
    %2745 = vmatprep.subr.mxu0 0.0
    %2746 = vmatpush1.msra.mxu0 0.0
    %2747 = vmatprep.subr.mxu0 0.0
    %2748 = vmatpush1.msra.mxu0 0.0
    %2749 = vmatprep.subr.mxu0 0.0
    %2750 = vmatpush1.msra.mxu0 0.0
    %2751 = vmatprep.subr.mxu0 0.0
    %v2752 = vand.u32 %v697, 4294901760
    %2753 = vmatpush1.msra.mxu0 %v2752
    %2754 = vmatprep.subr.mxu0 0.0
    %v2755 = vand.u32 %v696, 4294901760
    %2756 = vmatpush1.msra.mxu0 %v2755
    %2757 = vmatprep.subr.mxu0 0.0
    %v2758 = vand.u32 %v695, 4294901760
    %2759 = vmatpush1.msra.mxu0 %v2758
    %2760 = vmatprep.subr.mxu0 0.0
    %v2761 = vand.u32 %v694, 4294901760
    %2762 = vmatpush1.msra.mxu0 %v2761
    %2763 = vmatprep.subr.mxu0 0.0
    %v2764 = vand.u32 %v693, 4294901760
    %2765 = vmatpush1.msra.mxu0 %v2764
    %2766 = vmatprep.subr.mxu0 0.0
    %v2767 = vand.u32 %v692, 4294901760
    %2768 = vmatpush1.msra.mxu0 %v2767
    %2769 = vmatprep.subr.mxu0 0.0
    %v2770 = vand.u32 %v691, 4294901760
    %2771 = vmatpush1.msra.mxu0 %v2770
    %2772 = vmatprep.subr.mxu0 0.0
    %v2773 = vand.u32 %v690, 4294901760
    %2774 = vmatpush1.msra.mxu0 %v2773
    %2775 = vmatprep.subr.mxu0 0.0
    %2776 = vmatpush2.msra.mxu0 0.0
    %2777 = vmatprep.subr.mxu0 0.0
    %2778 = vmatpush2.msra.mxu0 0.0
    %2779 = vmatprep.subr.mxu0 0.0
    %2780 = vmatpush2.msra.mxu0 0.0
    %2781 = vmatprep.subr.mxu0 0.0
    %2782 = vmatpush2.msra.mxu0 0.0
    %2783 = vmatprep.subr.mxu0 0.0
    %2784 = vmatpush2.msra.mxu0 0.0
    %2785 = vmatprep.subr.mxu0 0.0
    %2786 = vmatpush2.msra.mxu0 0.0
    %2787 = vmatprep.subr.mxu0 0.0
    %2788 = vmatpush2.msra.mxu0 0.0
    %2789 = vmatprep.subr.mxu0 0.0
    %2790 = vmatpush2.msra.mxu0 0.0
    %2791 = vmatprep.subr.mxu0 0.0
    %2792 = vmatpush2.msra.mxu0 0.0
    %2793 = vmatprep.subr.mxu0 0.0
    %2794 = vmatpush2.msra.mxu0 0.0
    %2795 = vmatprep.subr.mxu0 0.0
    %2796 = vmatpush2.msra.mxu0 0.0
    %2797 = vmatprep.subr.mxu0 0.0
    %2798 = vmatpush2.msra.mxu0 0.0
    %2799 = vmatprep.subr.mxu0 0.0
    %2800 = vmatpush2.msra.mxu0 0.0
    %2801 = vmatprep.subr.mxu0 0.0
    %2802 = vmatpush2.msra.mxu0 0.0
    %2803 = vmatprep.subr.mxu0 0.0
    %2804 = vmatpush2.msra.mxu0 0.0
    %2805 = vmatprep.subr.mxu0 0.0
    %2806 = vmatpush2.msra.mxu0 0.0
    %2807 = vmatprep.mubr.f32.mxu0 0.0
    %v2808 = vand.u32 %v2275, 4294901760
    %2809 = vmatmul.mubr.f32.gmra.mxu0 %v2808
    %v2810 = vpop.f32.mrf.mxu0
    %v2811 = vadd.f32 %v2732, %v2810
    %v2812 = vpop.f32.mrf.mxu0
    %2813 = vdwg.mxu0
    %v2814 = vmax.f32 %v2811, 0.0
    %v2816 = vsel %vm705, %v2814, 0
    %2818 = vmatprep.subr.mxu0 0.0
    %2819 = vmatpush1.msra.mxu0 0.0
    %2820 = vmatprep.subr.mxu0 0.0
    %2821 = vmatpush1.msra.mxu0 0.0
    %2822 = vmatprep.subr.mxu0 0.0
    %2823 = vmatpush1.msra.mxu0 0.0
    %2824 = vmatprep.subr.mxu0 0.0
    %2825 = vmatpush1.msra.mxu0 0.0
    %2826 = vmatprep.subr.mxu0 0.0
    %v2827 = vand.u32 %v92, 4294901760
    %2828 = vmatpush1.msra.mxu0 %v2827
    %2829 = vmatprep.subr.mxu0 0.0
    %v2830 = vand.u32 %v91, 4294901760
    %2831 = vmatpush1.msra.mxu0 %v2830
    %2832 = vmatprep.subr.mxu0 0.0
    %v2833 = vand.u32 %v90, 4294901760
    %2834 = vmatpush1.msra.mxu0 %v2833
    %2835 = vmatprep.subr.mxu0 0.0
    %v2836 = vand.u32 %v89, 4294901760
    %2837 = vmatpush1.msra.mxu0 %v2836
    %2838 = vmatprep.subr.mxu0 0.0
    %v2839 = vand.u32 %v88, 4294901760
    %2840 = vmatpush1.msra.mxu0 %v2839
    %2841 = vmatprep.subr.mxu0 0.0
    %v2842 = vand.u32 %v87, 4294901760
    %2843 = vmatpush1.msra.mxu0 %v2842
    %2844 = vmatprep.subr.mxu0 0.0
    %v2845 = vand.u32 %v86, 4294901760
    %2846 = vmatpush1.msra.mxu0 %v2845
    %2847 = vmatprep.subr.mxu0 0.0
    %v2848 = vand.u32 %v85, 4294901760
    %2849 = vmatpush1.msra.mxu0 %v2848
    %2850 = vmatprep.subr.mxu0 0.0
    %v2851 = vand.u32 %v84, 4294901760
    %2852 = vmatpush1.msra.mxu0 %v2851
    %2853 = vmatprep.subr.mxu0 0.0
    %v2854 = vand.u32 %v83, 4294901760
    %2855 = vmatpush1.msra.mxu0 %v2854
    %2856 = vmatprep.subr.mxu0 0.0
    %v2857 = vand.u32 %v82, 4294901760
    %2858 = vmatpush1.msra.mxu0 %v2857
    %2859 = vmatprep.subr.mxu0 0.0
    %v2860 = vand.u32 %v81, 4294901760
    %2861 = vmatpush1.msra.mxu0 %v2860
    %2862 = vmatprep.subr.mxu0 0.0
    %2863 = vmatpush2.msra.mxu0 0.0
    %2864 = vmatprep.subr.mxu0 0.0
    %2865 = vmatpush2.msra.mxu0 0.0
    %2866 = vmatprep.subr.mxu0 0.0
    %2867 = vmatpush2.msra.mxu0 0.0
    %2868 = vmatprep.subr.mxu0 0.0
    %2869 = vmatpush2.msra.mxu0 0.0
    %2870 = vmatprep.subr.mxu0 0.0
    %2871 = vmatpush2.msra.mxu0 0.0
    %2872 = vmatprep.subr.mxu0 0.0
    %2873 = vmatpush2.msra.mxu0 0.0
    %2874 = vmatprep.subr.mxu0 0.0
    %2875 = vmatpush2.msra.mxu0 0.0
    %2876 = vmatprep.subr.mxu0 0.0
    %2877 = vmatpush2.msra.mxu0 0.0
    %2878 = vmatprep.subr.mxu0 0.0
    %2879 = vmatpush2.msra.mxu0 0.0
    %2880 = vmatprep.subr.mxu0 0.0
    %2881 = vmatpush2.msra.mxu0 0.0
    %2882 = vmatprep.subr.mxu0 0.0
    %2883 = vmatpush2.msra.mxu0 0.0
    %2884 = vmatprep.subr.mxu0 0.0
    %2885 = vmatpush2.msra.mxu0 0.0
    %2886 = vmatprep.subr.mxu0 0.0
    %2887 = vmatpush2.msra.mxu0 0.0
    %2888 = vmatprep.subr.mxu0 0.0
    %2889 = vmatpush2.msra.mxu0 0.0
    %2890 = vmatprep.subr.mxu0 0.0
    %2891 = vmatpush2.msra.mxu0 0.0
    %2892 = vmatprep.subr.mxu0 0.0
    %2893 = vmatpush2.msra.mxu0 0.0
    %2894 = vmatprep.mubr.f32.mxu0 0.0
    %v2895 = vand.u32 %v2816, 4294901760
    %v2896 = vsub.f32 %v2816, %v2895
    %v2897 = vand.u32 %v2896, 4294901760
    %v2898 = vsub.f32 %v2896, %v2897
    %v2899 = vand.u32 %v2898, 4294901760
    %2900 = vmatmul.mubr.f32.gmra.mxu0 %v2899
    %v2901 = vpop.f32.mrf.mxu0
    %v2902 = vadd.f32 0.0, %v2901
    %v2903 = vpop.f32.mrf.mxu0
    %2904 = vdwg.mxu0
    %2905 = vmatprep.subr.mxu0 0.0
    %2906 = vmatpush1.msra.mxu0 0.0
    %2907 = vmatprep.subr.mxu0 0.0
    %2908 = vmatpush1.msra.mxu0 0.0
    %2909 = vmatprep.subr.mxu0 0.0
    %2910 = vmatpush1.msra.mxu0 0.0
    %2911 = vmatprep.subr.mxu0 0.0
    %2912 = vmatpush1.msra.mxu0 0.0
    %2913 = vmatprep.subr.mxu0 0.0
    %v2914 = vand.u32 %v92, 4294901760
    %v2915 = vsub.f32 %v92, %v2914
    %v2916 = vand.u32 %v2915, 4294901760
    %v2917 = vsub.f32 %v2915, %v2916
    %v2918 = vand.u32 %v2917, 4294901760
    %2919 = vmatpush1.msra.mxu0 %v2918
    %2920 = vmatprep.subr.mxu0 0.0
    %v2921 = vand.u32 %v91, 4294901760
    %v2922 = vsub.f32 %v91, %v2921
    %v2923 = vand.u32 %v2922, 4294901760
    %v2924 = vsub.f32 %v2922, %v2923
    %v2925 = vand.u32 %v2924, 4294901760
    %2926 = vmatpush1.msra.mxu0 %v2925
    %2927 = vmatprep.subr.mxu0 0.0
    %v2928 = vand.u32 %v90, 4294901760
    %v2929 = vsub.f32 %v90, %v2928
    %v2930 = vand.u32 %v2929, 4294901760
    %v2931 = vsub.f32 %v2929, %v2930
    %v2932 = vand.u32 %v2931, 4294901760
    %2933 = vmatpush1.msra.mxu0 %v2932
    %2934 = vmatprep.subr.mxu0 0.0
    %v2935 = vand.u32 %v89, 4294901760
    %v2936 = vsub.f32 %v89, %v2935
    %v2937 = vand.u32 %v2936, 4294901760
    %v2938 = vsub.f32 %v2936, %v2937
    %v2939 = vand.u32 %v2938, 4294901760
    %2940 = vmatpush1.msra.mxu0 %v2939
    %2941 = vmatprep.subr.mxu0 0.0
    %v2942 = vand.u32 %v88, 4294901760
    %v2943 = vsub.f32 %v88, %v2942
    %v2944 = vand.u32 %v2943, 4294901760
    %v2945 = vsub.f32 %v2943, %v2944
    %v2946 = vand.u32 %v2945, 4294901760
    %2947 = vmatpush1.msra.mxu0 %v2946
    %2948 = vmatprep.subr.mxu0 0.0
    %v2949 = vand.u32 %v87, 4294901760
    %v2950 = vsub.f32 %v87, %v2949
    %v2951 = vand.u32 %v2950, 4294901760
    %v2952 = vsub.f32 %v2950, %v2951
    %v2953 = vand.u32 %v2952, 4294901760
    %2954 = vmatpush1.msra.mxu0 %v2953
    %2955 = vmatprep.subr.mxu0 0.0
    %v2956 = vand.u32 %v86, 4294901760
    %v2957 = vsub.f32 %v86, %v2956
    %v2958 = vand.u32 %v2957, 4294901760
    %v2959 = vsub.f32 %v2957, %v2958
    %v2960 = vand.u32 %v2959, 4294901760
    %2961 = vmatpush1.msra.mxu0 %v2960
    %2962 = vmatprep.subr.mxu0 0.0
    %v2963 = vand.u32 %v85, 4294901760
    %v2964 = vsub.f32 %v85, %v2963
    %v2965 = vand.u32 %v2964, 4294901760
    %v2966 = vsub.f32 %v2964, %v2965
    %v2967 = vand.u32 %v2966, 4294901760
    %2968 = vmatpush1.msra.mxu0 %v2967
    %2969 = vmatprep.subr.mxu0 0.0
    %v2970 = vand.u32 %v84, 4294901760
    %v2971 = vsub.f32 %v84, %v2970
    %v2972 = vand.u32 %v2971, 4294901760
    %v2973 = vsub.f32 %v2971, %v2972
    %v2974 = vand.u32 %v2973, 4294901760
    %2975 = vmatpush1.msra.mxu0 %v2974
    %2976 = vmatprep.subr.mxu0 0.0
    %v2977 = vand.u32 %v83, 4294901760
    %v2978 = vsub.f32 %v83, %v2977
    %v2979 = vand.u32 %v2978, 4294901760
    %v2980 = vsub.f32 %v2978, %v2979
    %v2981 = vand.u32 %v2980, 4294901760
    %2982 = vmatpush1.msra.mxu0 %v2981
    %2983 = vmatprep.subr.mxu0 0.0
    %v2984 = vand.u32 %v82, 4294901760
    %v2985 = vsub.f32 %v82, %v2984
    %v2986 = vand.u32 %v2985, 4294901760
    %v2987 = vsub.f32 %v2985, %v2986
    %v2988 = vand.u32 %v2987, 4294901760
    %2989 = vmatpush1.msra.mxu0 %v2988
    %2990 = vmatprep.subr.mxu0 0.0
    %v2991 = vand.u32 %v81, 4294901760
    %v2992 = vsub.f32 %v81, %v2991
    %v2993 = vand.u32 %v2992, 4294901760
    %v2994 = vsub.f32 %v2992, %v2993
    %v2995 = vand.u32 %v2994, 4294901760
    %2996 = vmatpush1.msra.mxu0 %v2995
    %2997 = vmatprep.subr.mxu0 0.0
    %2998 = vmatpush2.msra.mxu0 0.0
    %2999 = vmatprep.subr.mxu0 0.0
    %3000 = vmatpush2.msra.mxu0 0.0
    %3001 = vmatprep.subr.mxu0 0.0
    %3002 = vmatpush2.msra.mxu0 0.0
    %3003 = vmatprep.subr.mxu0 0.0
    %3004 = vmatpush2.msra.mxu0 0.0
    %3005 = vmatprep.subr.mxu0 0.0
    %3006 = vmatpush2.msra.mxu0 0.0
    %3007 = vmatprep.subr.mxu0 0.0
    %3008 = vmatpush2.msra.mxu0 0.0
    %3009 = vmatprep.subr.mxu0 0.0
    %3010 = vmatpush2.msra.mxu0 0.0
    %3011 = vmatprep.subr.mxu0 0.0
    %3012 = vmatpush2.msra.mxu0 0.0
    %3013 = vmatprep.subr.mxu0 0.0
    %3014 = vmatpush2.msra.mxu0 0.0
    %3015 = vmatprep.subr.mxu0 0.0
    %3016 = vmatpush2.msra.mxu0 0.0
    %3017 = vmatprep.subr.mxu0 0.0
    %3018 = vmatpush2.msra.mxu0 0.0
    %3019 = vmatprep.subr.mxu0 0.0
    %3020 = vmatpush2.msra.mxu0 0.0
    %3021 = vmatprep.subr.mxu0 0.0
    %3022 = vmatpush2.msra.mxu0 0.0
    %3023 = vmatprep.subr.mxu0 0.0
    %3024 = vmatpush2.msra.mxu0 0.0
    %3025 = vmatprep.subr.mxu0 0.0
    %3026 = vmatpush2.msra.mxu0 0.0
    %3027 = vmatprep.subr.mxu0 0.0
    %3028 = vmatpush2.msra.mxu0 0.0
    %3029 = vmatprep.mubr.f32.mxu0 0.0
    %v3030 = vand.u32 %v2816, 4294901760
    %3031 = vmatmul.mubr.f32.gmra.mxu0 %v3030
    %v3032 = vpop.f32.mrf.mxu0
    %v3033 = vadd.f32 %v2902, %v3032
    %v3034 = vpop.f32.mrf.mxu0
    %3035 = vdwg.mxu0
    %3036 = vmatprep.subr.mxu0 0.0
    %3037 = vmatpush1.msra.mxu0 0.0
    %3038 = vmatprep.subr.mxu0 0.0
    %3039 = vmatpush1.msra.mxu0 0.0
    %3040 = vmatprep.subr.mxu0 0.0
    %3041 = vmatpush1.msra.mxu0 0.0
    %3042 = vmatprep.subr.mxu0 0.0
    %3043 = vmatpush1.msra.mxu0 0.0
    %3044 = vmatprep.subr.mxu0 0.0
    %v3045 = vand.u32 %v92, 4294901760
    %v3046 = vsub.f32 %v92, %v3045
    %3047 = vmatpush1.msra.mxu0 %v3046
    %3048 = vmatprep.subr.mxu0 0.0
    %v3049 = vand.u32 %v91, 4294901760
    %v3050 = vsub.f32 %v91, %v3049
    %3051 = vmatpush1.msra.mxu0 %v3050
    %3052 = vmatprep.subr.mxu0 0.0
    %v3053 = vand.u32 %v90, 4294901760
    %v3054 = vsub.f32 %v90, %v3053
    %3055 = vmatpush1.msra.mxu0 %v3054
    %3056 = vmatprep.subr.mxu0 0.0
    %v3057 = vand.u32 %v89, 4294901760
    %v3058 = vsub.f32 %v89, %v3057
    %3059 = vmatpush1.msra.mxu0 %v3058
    %3060 = vmatprep.subr.mxu0 0.0
    %v3061 = vand.u32 %v88, 4294901760
    %v3062 = vsub.f32 %v88, %v3061
    %3063 = vmatpush1.msra.mxu0 %v3062
    %3064 = vmatprep.subr.mxu0 0.0
    %v3065 = vand.u32 %v87, 4294901760
    %v3066 = vsub.f32 %v87, %v3065
    %3067 = vmatpush1.msra.mxu0 %v3066
    %3068 = vmatprep.subr.mxu0 0.0
    %v3069 = vand.u32 %v86, 4294901760
    %v3070 = vsub.f32 %v86, %v3069
    %3071 = vmatpush1.msra.mxu0 %v3070
    %3072 = vmatprep.subr.mxu0 0.0
    %v3073 = vand.u32 %v85, 4294901760
    %v3074 = vsub.f32 %v85, %v3073
    %3075 = vmatpush1.msra.mxu0 %v3074
    %3076 = vmatprep.subr.mxu0 0.0
    %v3077 = vand.u32 %v84, 4294901760
    %v3078 = vsub.f32 %v84, %v3077
    %3079 = vmatpush1.msra.mxu0 %v3078
    %3080 = vmatprep.subr.mxu0 0.0
    %v3081 = vand.u32 %v83, 4294901760
    %v3082 = vsub.f32 %v83, %v3081
    %3083 = vmatpush1.msra.mxu0 %v3082
    %3084 = vmatprep.subr.mxu0 0.0
    %v3085 = vand.u32 %v82, 4294901760
    %v3086 = vsub.f32 %v82, %v3085
    %3087 = vmatpush1.msra.mxu0 %v3086
    %3088 = vmatprep.subr.mxu0 0.0
    %v3089 = vand.u32 %v81, 4294901760
    %v3090 = vsub.f32 %v81, %v3089
    %3091 = vmatpush1.msra.mxu0 %v3090
    %3092 = vmatprep.subr.mxu0 0.0
    %3093 = vmatpush2.msra.mxu0 0.0
    %3094 = vmatprep.subr.mxu0 0.0
    %3095 = vmatpush2.msra.mxu0 0.0
    %3096 = vmatprep.subr.mxu0 0.0
    %3097 = vmatpush2.msra.mxu0 0.0
    %3098 = vmatprep.subr.mxu0 0.0
    %3099 = vmatpush2.msra.mxu0 0.0
    %3100 = vmatprep.subr.mxu0 0.0
    %3101 = vmatpush2.msra.mxu0 0.0
    %3102 = vmatprep.subr.mxu0 0.0
    %3103 = vmatpush2.msra.mxu0 0.0
    %3104 = vmatprep.subr.mxu0 0.0
    %3105 = vmatpush2.msra.mxu0 0.0
    %3106 = vmatprep.subr.mxu0 0.0
    %3107 = vmatpush2.msra.mxu0 0.0
    %3108 = vmatprep.subr.mxu0 0.0
    %3109 = vmatpush2.msra.mxu0 0.0
    %3110 = vmatprep.subr.mxu0 0.0
    %3111 = vmatpush2.msra.mxu0 0.0
    %3112 = vmatprep.subr.mxu0 0.0
    %3113 = vmatpush2.msra.mxu0 0.0
    %3114 = vmatprep.subr.mxu0 0.0
    %3115 = vmatpush2.msra.mxu0 0.0
    %3116 = vmatprep.subr.mxu0 0.0
    %3117 = vmatpush2.msra.mxu0 0.0
    %3118 = vmatprep.subr.mxu0 0.0
    %3119 = vmatpush2.msra.mxu0 0.0
    %3120 = vmatprep.subr.mxu0 0.0
    %3121 = vmatpush2.msra.mxu0 0.0
    %3122 = vmatprep.subr.mxu0 0.0
    %3123 = vmatpush2.msra.mxu0 0.0
    %3124 = vmatprep.mubr.f32.mxu0 0.0
    %v3125 = vand.u32 %v2816, 4294901760
    %v3126 = vsub.f32 %v2816, %v3125
    %3127 = vmatmul.mubr.f32.gmra.mxu0 %v3126
    %v3128 = vpop.f32.mrf.mxu0
    %v3129 = vadd.f32 %v3033, %v3128
    %v3130 = vpop.f32.mrf.mxu0
    %3131 = vdwg.mxu0
    %3132 = vmatprep.subr.mxu0 0.0
    %3133 = vmatpush1.msra.mxu0 0.0
    %3134 = vmatprep.subr.mxu0 0.0
    %3135 = vmatpush1.msra.mxu0 0.0
    %3136 = vmatprep.subr.mxu0 0.0
    %3137 = vmatpush1.msra.mxu0 0.0
    %3138 = vmatprep.subr.mxu0 0.0
    %3139 = vmatpush1.msra.mxu0 0.0
    %3140 = vmatprep.subr.mxu0 0.0
    %v3141 = vand.u32 %v92, 4294901760
    %3142 = vmatpush1.msra.mxu0 %v3141
    %3143 = vmatprep.subr.mxu0 0.0
    %v3144 = vand.u32 %v91, 4294901760
    %3145 = vmatpush1.msra.mxu0 %v3144
    %3146 = vmatprep.subr.mxu0 0.0
    %v3147 = vand.u32 %v90, 4294901760
    %3148 = vmatpush1.msra.mxu0 %v3147
    %3149 = vmatprep.subr.mxu0 0.0
    %v3150 = vand.u32 %v89, 4294901760
    %3151 = vmatpush1.msra.mxu0 %v3150
    %3152 = vmatprep.subr.mxu0 0.0
    %v3153 = vand.u32 %v88, 4294901760
    %3154 = vmatpush1.msra.mxu0 %v3153
    %3155 = vmatprep.subr.mxu0 0.0
    %v3156 = vand.u32 %v87, 4294901760
    %3157 = vmatpush1.msra.mxu0 %v3156
    %3158 = vmatprep.subr.mxu0 0.0
    %v3159 = vand.u32 %v86, 4294901760
    %3160 = vmatpush1.msra.mxu0 %v3159
    %3161 = vmatprep.subr.mxu0 0.0
    %v3162 = vand.u32 %v85, 4294901760
    %3163 = vmatpush1.msra.mxu0 %v3162
    %3164 = vmatprep.subr.mxu0 0.0
    %v3165 = vand.u32 %v84, 4294901760
    %3166 = vmatpush1.msra.mxu0 %v3165
    %3167 = vmatprep.subr.mxu0 0.0
    %v3168 = vand.u32 %v83, 4294901760
    %3169 = vmatpush1.msra.mxu0 %v3168
    %3170 = vmatprep.subr.mxu0 0.0
    %v3171 = vand.u32 %v82, 4294901760
    %3172 = vmatpush1.msra.mxu0 %v3171
    %3173 = vmatprep.subr.mxu0 0.0
    %v3174 = vand.u32 %v81, 4294901760
    %3175 = vmatpush1.msra.mxu0 %v3174
    %3176 = vmatprep.subr.mxu0 0.0
    %3177 = vmatpush2.msra.mxu0 0.0
    %3178 = vmatprep.subr.mxu0 0.0
    %3179 = vmatpush2.msra.mxu0 0.0
    %3180 = vmatprep.subr.mxu0 0.0
    %3181 = vmatpush2.msra.mxu0 0.0
    %3182 = vmatprep.subr.mxu0 0.0
    %3183 = vmatpush2.msra.mxu0 0.0
    %3184 = vmatprep.subr.mxu0 0.0
    %3185 = vmatpush2.msra.mxu0 0.0
    %3186 = vmatprep.subr.mxu0 0.0
    %3187 = vmatpush2.msra.mxu0 0.0
    %3188 = vmatprep.subr.mxu0 0.0
    %3189 = vmatpush2.msra.mxu0 0.0
    %3190 = vmatprep.subr.mxu0 0.0
    %3191 = vmatpush2.msra.mxu0 0.0
    %3192 = vmatprep.subr.mxu0 0.0
    %3193 = vmatpush2.msra.mxu0 0.0
    %3194 = vmatprep.subr.mxu0 0.0
    %3195 = vmatpush2.msra.mxu0 0.0
    %3196 = vmatprep.subr.mxu0 0.0
    %3197 = vmatpush2.msra.mxu0 0.0
    %3198 = vmatprep.subr.mxu0 0.0
    %3199 = vmatpush2.msra.mxu0 0.0
    %3200 = vmatprep.subr.mxu0 0.0
    %3201 = vmatpush2.msra.mxu0 0.0
    %3202 = vmatprep.subr.mxu0 0.0
    %3203 = vmatpush2.msra.mxu0 0.0
    %3204 = vmatprep.subr.mxu0 0.0
    %3205 = vmatpush2.msra.mxu0 0.0
    %3206 = vmatprep.subr.mxu0 0.0
    %3207 = vmatpush2.msra.mxu0 0.0
    %3208 = vmatprep.mubr.f32.mxu0 0.0
    %v3209 = vand.u32 %v2816, 4294901760
    %v3210 = vsub.f32 %v2816, %v3209
    %v3211 = vand.u32 %v3210, 4294901760
    %3212 = vmatmul.mubr.f32.gmra.mxu0 %v3211
    %v3213 = vpop.f32.mrf.mxu0
    %v3214 = vadd.f32 %v3129, %v3213
    %v3215 = vpop.f32.mrf.mxu0
    %3216 = vdwg.mxu0
    %3217 = vmatprep.subr.mxu0 0.0
    %3218 = vmatpush1.msra.mxu0 0.0
    %3219 = vmatprep.subr.mxu0 0.0
    %3220 = vmatpush1.msra.mxu0 0.0
    %3221 = vmatprep.subr.mxu0 0.0
    %3222 = vmatpush1.msra.mxu0 0.0
    %3223 = vmatprep.subr.mxu0 0.0
    %3224 = vmatpush1.msra.mxu0 0.0
    %3225 = vmatprep.subr.mxu0 0.0
    %v3226 = vand.u32 %v92, 4294901760
    %v3227 = vsub.f32 %v92, %v3226
    %v3228 = vand.u32 %v3227, 4294901760
    %3229 = vmatpush1.msra.mxu0 %v3228
    %3230 = vmatprep.subr.mxu0 0.0
    %v3231 = vand.u32 %v91, 4294901760
    %v3232 = vsub.f32 %v91, %v3231
    %v3233 = vand.u32 %v3232, 4294901760
    %3234 = vmatpush1.msra.mxu0 %v3233
    %3235 = vmatprep.subr.mxu0 0.0
    %v3236 = vand.u32 %v90, 4294901760
    %v3237 = vsub.f32 %v90, %v3236
    %v3238 = vand.u32 %v3237, 4294901760
    %3239 = vmatpush1.msra.mxu0 %v3238
    %3240 = vmatprep.subr.mxu0 0.0
    %v3241 = vand.u32 %v89, 4294901760
    %v3242 = vsub.f32 %v89, %v3241
    %v3243 = vand.u32 %v3242, 4294901760
    %3244 = vmatpush1.msra.mxu0 %v3243
    %3245 = vmatprep.subr.mxu0 0.0
    %v3246 = vand.u32 %v88, 4294901760
    %v3247 = vsub.f32 %v88, %v3246
    %v3248 = vand.u32 %v3247, 4294901760
    %3249 = vmatpush1.msra.mxu0 %v3248
    %3250 = vmatprep.subr.mxu0 0.0
    %v3251 = vand.u32 %v87, 4294901760
    %v3252 = vsub.f32 %v87, %v3251
    %v3253 = vand.u32 %v3252, 4294901760
    %3254 = vmatpush1.msra.mxu0 %v3253
    %3255 = vmatprep.subr.mxu0 0.0
    %v3256 = vand.u32 %v86, 4294901760
    %v3257 = vsub.f32 %v86, %v3256
    %v3258 = vand.u32 %v3257, 4294901760
    %3259 = vmatpush1.msra.mxu0 %v3258
    %3260 = vmatprep.subr.mxu0 0.0
    %v3261 = vand.u32 %v85, 4294901760
    %v3262 = vsub.f32 %v85, %v3261
    %v3263 = vand.u32 %v3262, 4294901760
    %3264 = vmatpush1.msra.mxu0 %v3263
    %3265 = vmatprep.subr.mxu0 0.0
    %v3266 = vand.u32 %v84, 4294901760
    %v3267 = vsub.f32 %v84, %v3266
    %v3268 = vand.u32 %v3267, 4294901760
    %3269 = vmatpush1.msra.mxu0 %v3268
    %3270 = vmatprep.subr.mxu0 0.0
    %v3271 = vand.u32 %v83, 4294901760
    %v3272 = vsub.f32 %v83, %v3271
    %v3273 = vand.u32 %v3272, 4294901760
    %3274 = vmatpush1.msra.mxu0 %v3273
    %3275 = vmatprep.subr.mxu0 0.0
    %v3276 = vand.u32 %v82, 4294901760
    %v3277 = vsub.f32 %v82, %v3276
    %v3278 = vand.u32 %v3277, 4294901760
    %3279 = vmatpush1.msra.mxu0 %v3278
    %3280 = vmatprep.subr.mxu0 0.0
    %v3281 = vand.u32 %v81, 4294901760
    %v3282 = vsub.f32 %v81, %v3281
    %v3283 = vand.u32 %v3282, 4294901760
    %3284 = vmatpush1.msra.mxu0 %v3283
    %3285 = vmatprep.subr.mxu0 0.0
    %3286 = vmatpush2.msra.mxu0 0.0
    %3287 = vmatprep.subr.mxu0 0.0
    %3288 = vmatpush2.msra.mxu0 0.0
    %3289 = vmatprep.subr.mxu0 0.0
    %3290 = vmatpush2.msra.mxu0 0.0
    %3291 = vmatprep.subr.mxu0 0.0
    %3292 = vmatpush2.msra.mxu0 0.0
    %3293 = vmatprep.subr.mxu0 0.0
    %3294 = vmatpush2.msra.mxu0 0.0
    %3295 = vmatprep.subr.mxu0 0.0
    %3296 = vmatpush2.msra.mxu0 0.0
    %3297 = vmatprep.subr.mxu0 0.0
    %3298 = vmatpush2.msra.mxu0 0.0
    %3299 = vmatprep.subr.mxu0 0.0
    %3300 = vmatpush2.msra.mxu0 0.0
    %3301 = vmatprep.subr.mxu0 0.0
    %3302 = vmatpush2.msra.mxu0 0.0
    %3303 = vmatprep.subr.mxu0 0.0
    %3304 = vmatpush2.msra.mxu0 0.0
    %3305 = vmatprep.subr.mxu0 0.0
    %3306 = vmatpush2.msra.mxu0 0.0
    %3307 = vmatprep.subr.mxu0 0.0
    %3308 = vmatpush2.msra.mxu0 0.0
    %3309 = vmatprep.subr.mxu0 0.0
    %3310 = vmatpush2.msra.mxu0 0.0
    %3311 = vmatprep.subr.mxu0 0.0
    %3312 = vmatpush2.msra.mxu0 0.0
    %3313 = vmatprep.subr.mxu0 0.0
    %3314 = vmatpush2.msra.mxu0 0.0
    %3315 = vmatprep.subr.mxu0 0.0
    %3316 = vmatpush2.msra.mxu0 0.0
    %3317 = vmatprep.mubr.f32.mxu0 0.0
    %v3318 = vand.u32 %v2816, 4294901760
    %3319 = vmatmul.mubr.f32.gmra.mxu0 %v3318
    %v3320 = vpop.f32.mrf.mxu0
    %v3321 = vadd.f32 %v3214, %v3320
    %v3322 = vpop.f32.mrf.mxu0
    %3323 = vdwg.mxu0
    %3324 = vmatprep.subr.mxu0 0.0
    %3325 = vmatpush1.msra.mxu0 0.0
    %3326 = vmatprep.subr.mxu0 0.0
    %3327 = vmatpush1.msra.mxu0 0.0
    %3328 = vmatprep.subr.mxu0 0.0
    %3329 = vmatpush1.msra.mxu0 0.0
    %3330 = vmatprep.subr.mxu0 0.0
    %3331 = vmatpush1.msra.mxu0 0.0
    %3332 = vmatprep.subr.mxu0 0.0
    %v3333 = vand.u32 %v92, 4294901760
    %3334 = vmatpush1.msra.mxu0 %v3333
    %3335 = vmatprep.subr.mxu0 0.0
    %v3336 = vand.u32 %v91, 4294901760
    %3337 = vmatpush1.msra.mxu0 %v3336
    %3338 = vmatprep.subr.mxu0 0.0
    %v3339 = vand.u32 %v90, 4294901760
    %3340 = vmatpush1.msra.mxu0 %v3339
    %3341 = vmatprep.subr.mxu0 0.0
    %v3342 = vand.u32 %v89, 4294901760
    %3343 = vmatpush1.msra.mxu0 %v3342
    %3344 = vmatprep.subr.mxu0 0.0
    %v3345 = vand.u32 %v88, 4294901760
    %3346 = vmatpush1.msra.mxu0 %v3345
    %3347 = vmatprep.subr.mxu0 0.0
    %v3348 = vand.u32 %v87, 4294901760
    %3349 = vmatpush1.msra.mxu0 %v3348
    %3350 = vmatprep.subr.mxu0 0.0
    %v3351 = vand.u32 %v86, 4294901760
    %3352 = vmatpush1.msra.mxu0 %v3351
    %3353 = vmatprep.subr.mxu0 0.0
    %v3354 = vand.u32 %v85, 4294901760
    %3355 = vmatpush1.msra.mxu0 %v3354
    %3356 = vmatprep.subr.mxu0 0.0
    %v3357 = vand.u32 %v84, 4294901760
    %3358 = vmatpush1.msra.mxu0 %v3357
    %3359 = vmatprep.subr.mxu0 0.0
    %v3360 = vand.u32 %v83, 4294901760
    %3361 = vmatpush1.msra.mxu0 %v3360
    %3362 = vmatprep.subr.mxu0 0.0
    %v3363 = vand.u32 %v82, 4294901760
    %3364 = vmatpush1.msra.mxu0 %v3363
    %3365 = vmatprep.subr.mxu0 0.0
    %v3366 = vand.u32 %v81, 4294901760
    %3367 = vmatpush1.msra.mxu0 %v3366
    %3368 = vmatprep.subr.mxu0 0.0
    %3369 = vmatpush2.msra.mxu0 0.0
    %3370 = vmatprep.subr.mxu0 0.0
    %3371 = vmatpush2.msra.mxu0 0.0
    %3372 = vmatprep.subr.mxu0 0.0
    %3373 = vmatpush2.msra.mxu0 0.0
    %3374 = vmatprep.subr.mxu0 0.0
    %3375 = vmatpush2.msra.mxu0 0.0
    %3376 = vmatprep.subr.mxu0 0.0
    %3377 = vmatpush2.msra.mxu0 0.0
    %3378 = vmatprep.subr.mxu0 0.0
    %3379 = vmatpush2.msra.mxu0 0.0
    %3380 = vmatprep.subr.mxu0 0.0
    %3381 = vmatpush2.msra.mxu0 0.0
    %3382 = vmatprep.subr.mxu0 0.0
    %3383 = vmatpush2.msra.mxu0 0.0
    %3384 = vmatprep.subr.mxu0 0.0
    %3385 = vmatpush2.msra.mxu0 0.0
    %3386 = vmatprep.subr.mxu0 0.0
    %3387 = vmatpush2.msra.mxu0 0.0
    %3388 = vmatprep.subr.mxu0 0.0
    %3389 = vmatpush2.msra.mxu0 0.0
    %3390 = vmatprep.subr.mxu0 0.0
    %3391 = vmatpush2.msra.mxu0 0.0
    %3392 = vmatprep.subr.mxu0 0.0
    %3393 = vmatpush2.msra.mxu0 0.0
    %3394 = vmatprep.subr.mxu0 0.0
    %3395 = vmatpush2.msra.mxu0 0.0
    %3396 = vmatprep.subr.mxu0 0.0
    %3397 = vmatpush2.msra.mxu0 0.0
    %3398 = vmatprep.subr.mxu0 0.0
    %3399 = vmatpush2.msra.mxu0 0.0
    %3400 = vmatprep.mubr.f32.mxu0 0.0
    %v3401 = vand.u32 %v2816, 4294901760
    %3402 = vmatmul.mubr.f32.gmra.mxu0 %v3401
    %v3403 = vpop.f32.mrf.mxu0
    %v3404 = vadd.f32 %v3321, %v3403
    %v3405 = vpop.f32.mrf.mxu0
    %3406 = vdwg.mxu0
    %v3407 = vxor.u32 %v3404, 2147483648
    %v3408 = vmul.f32 %v3407, 1.442695
    %v3409 = vpow.pop %v3408
    %v3410 = vadd.f32 %v3409, 1.0
    %v3411 = vrcp.pop %v3410
    %v3412 = vmul.f32 1.0, %v3411
    %3413 = vst [vmem:[#allocation10] sm:$0xff] %v3412
    // Predicated region
    $region46: #{tpu_custom_call.1} parent=1 // pred_check
      _
    $region47: #{tpu_custom_call.1} parent=1 // pred_check_branch
      %3415 = sbr.rel (0) target = $region49
    $region48: #{tpu_custom_call.1} parent=1 // pred_region
      %s3417 = ssub.s32 128, 128
      %3418 = vsyncadd [#allocation4], %s3417
      %s3420 = sshll.u32 [#allocation10], 4
      %s3421 = int_to_ptr.vmem [resolvable:$true] %s3420
      %3423 = dma.vmem_to_hbm [thread:$0]  %s3421, 128, %s7, [#allocation4]
    $region49: #{tpu_custom_call.1} parent=1 // pred_fallthru
      _
    // Predicated region
    $region50: #{tpu_custom_call.1} parent=1 // pred_check
      _
    $region51: #{tpu_custom_call.1} parent=1 // pred_check_branch
      %3425 = sbr.rel (0) target = $region53
    $region52: #{tpu_custom_call.1} parent=1 // pred_region
      %3426 = dma.done [#allocation4], 128
    $region53: #{tpu_custom_call.1} parent=1 // pred_fallthru
      _
    %3427 = vsyncpa [#allocation3], 1
    %3428 = vsyncpa [#allocation6], 1
    %3429 = vsyncpa [#allocation9], 1
    %3430 = vsyncpa [#allocation4], 1

</llo_original>
